<compile_context>
chip_gen: v7x
topology: tpu7x:2x2x1
jax: 0.10.0
libtpu: 0.0.40
codegen_flags: <defaults>
</compile_context>

<pallas_src>
from functools import partial

import numpy as np
import jax
import jax.numpy as jnp
from jax.experimental import pallas as pl
from jax.experimental.pallas import tpu as pltpu


def _reflect_index(p, k, n):
    """PyTorch/numpy 'reflect' (no edge repeat): padded index p -> original index."""
    q = p - k
    if q < 0:
        q = -q
    if q > n - 1:
        q = 2 * (n - 1) - q
    return q


def _band_matrix(n, k, lo, hi, transpose=False):
    """M[i, r] = #(padded positions p in [i+lo, i+hi] reflecting to index r)."""
    m = np.zeros((n, n), dtype=np.float32)
    for i in range(n):
        for p in range(i + lo, i + hi + 1):
            m[i, _reflect_index(p, k, n)] += 1.0
    return np.ascontiguousarray(m.T) if transpose else m


def gf_kernel(x_ref, vt_ref, vb_ref, hl_ref, hr_ref, hf_ref, out_ref, *, offset):
    # x_ref: (Nb, H, W) input block; band matrices: (H,H) x2, (W,W) x3 (resident).
    vt_m = vt_ref[...]
    vb_m = vb_ref[...]
    hl_m = hl_ref[...]
    hr_m = hr_ref[...]
    hf_m = hf_ref[...]

    def mm(a, b):
        # Full-f32 MXU matmul; band weights are small integers, x is f32.
        return jnp.dot(a, b, preferred_element_type=jnp.float32,
                       precision=jax.lax.Precision.HIGHEST)

    nb = x_ref.shape[0]
    for b in range(nb):  # small, static unroll over the batch block
        xb = x_ref[b].astype(jnp.float32)          # (H, W)
        vt = mm(vt_m, xb)                          # sum over top   (k+1) rows
        vb = mm(vb_m, xb)                          # sum over bottom(k+1) rows
        va = vt + vb - xb                          # full (2k+1)-row sum
        gx1 = mm(va, hl_m) + offset                # + left  (k+1) cols
        gx2 = mm(va, hr_m) + offset                # + right (k+1) cols
        gy1 = mm(vt, hf_m) + offset                # + full  (2k+1) cols
        gy2 = mm(vb, hf_m) + offset
        gx = jnp.log(gx1) - jnp.log(gx2)           # log(a/b) = log a - log b
        gy = jnp.log(gy1) - jnp.log(gy2)
        out_ref[b] = jnp.sqrt(gx * gx + gy * gy).astype(out_ref.dtype)


def _pick_batch_block(n, h, w):
    # ~256 KiB of f32 output per grid step, keep >= 2 parallel grid steps when
    # possible (v7x has 2 TensorCores), and require nb | n so blocks stay full.
    target = max(1, (64 * 1024) // max(1, h * w))
    nb = max(1, min(n, target))
    if n >= 2:
        nb = min(nb, max(1, n // 2))
    while n % nb:
        nb -= 1
    return nb


def gf_forward(x, kensize=5):
    """x: (N, 1, H, W) float array (NCHW). Returns (N, 1, H, W) like GF.forward."""
    k = int(kensize)
    n, c, h, w = x.shape
    assert c == 1, "GF conv weights have a single in/out channel"
    assert k <= h - 1 and k <= w - 1, "reflect padding requires k < spatial dims"

    # Band matrices fold the reflect padding into the windowed sums.
    vt = jnp.asarray(_band_matrix(h, k, 0, k))                  # left-multiply
    vb = jnp.asarray(_band_matrix(h, k, k, 2 * k))
    hl = jnp.asarray(_band_matrix(w, k, 0, k, transpose=True))  # right-multiply
    hr = jnp.asarray(_band_matrix(w, k, k, 2 * k, transpose=True))
    hf = jnp.asarray(_band_matrix(w, k, 0, 2 * k, transpose=True))
    offset = 0.01 * (2 * k + 1) * (k + 1)   # "+0.01" over the (2k+1)*(k+1) ones

    nb = _pick_batch_block(n, h, w)
    grid = (n // nb,)
    x3 = x[:, 0]  # (N, H, W)

    # TODO(synk): for very large H/W add a halo-tiled spatial grid
    # (blocks of (tH+2k, tW+2k) -> (tH, tW)) so full-image blocks never exceed
    # per-generation VMEM (64 MiB physical on v7x).
    out = pl.pallas_call(
        partial(gf_kernel, offset=offset),
        out_shape=jax.ShapeDtypeStruct((n, h, w), x.dtype),
        grid=grid,
        in_specs=[
            pl.BlockSpec((nb, h, w), lambda b: (b, 0, 0)),
            pl.BlockSpec((h, h), lambda b: (0, 0)),   # constant index_map ->
            pl.BlockSpec((h, h), lambda b: (0, 0)),   # band matrices stay
            pl.BlockSpec((w, w), lambda b: (0, 0)),   # resident in VMEM
            pl.BlockSpec((w, w), lambda b: (0, 0)),
            pl.BlockSpec((w, w), lambda b: (0, 0)),
        ],
        out_specs=pl.BlockSpec((nb, h, w), lambda b: (b, 0, 0)),
        compiler_params=pltpu.CompilerParams(
            dimension_semantics=("parallel",),
            vmem_limit_bytes=32 * 1024 * 1024,  # above v5e's 16 MiB default
        ),
    )(x3, vt, vb, hl, hr, hf)
    return out[:, None, :, :]


def gf_reference(x, kensize=5):
    """Pure-JAX mirror of the PyTorch module (slice+add box sums)."""
    k = int(kensize)
    xp = jnp.pad(x[:, 0].astype(jnp.float32),
                 ((0, 0), (k, k), (k, k)), mode="reflect") + 0.01
    n, hp, wp = xp.shape
    h, w = hp - 2 * k, wp - 2 * k

    def box(r0, r1, c0, c1):
        acc = jnp.zeros((n, h, w), jnp.float32)
        for dy in range(r0, r1 + 1):
            for dx in range(c0, c1 + 1):
                acc = acc + xp[:, dy:dy + h, dx:dx + w]
        return acc

    gx1 = box(0, 2 * k, 0, k)
    gx2 = box(0, 2 * k, k, 2 * k)
    gy1 = box(0, k, 0, 2 * k)
    gy2 = box(k, 2 * k, 0, 2 * k)
    gx = jnp.log(gx1 / gx2)
    gy = jnp.log(gy1 / gy2)
    return jnp.sqrt(gx * gx + gy * gy)[:, None]


if __name__ == "__main__":
    key = jax.random.PRNGKey(0)
    # Module's conv has a single channel; small 16x16 images, default kensize=5.
    x = jax.random.uniform(key, (2, 1, 16, 16), dtype=jnp.float32)
    y = gf_forward(x, kensize=5)
    jax.block_until_ready(y)
    assert y.shape == (2, 1, 16, 16)
    y_ref = gf_reference(x, kensize=5)
    err = float(jnp.max(jnp.abs(y - y_ref)))
    assert jnp.allclose(y, y_ref, rtol=5e-3, atol=5e-3), f"max abs err {err}"
    print("KERNEL_OK")
</pallas_src>

<mosaic_0001>
module attributes {stable_mosaic.version = 11 : i64} {
  func.func @gf_kernel(%arg0: i32, %arg1: memref<1x16x16xf32, #tpu.memory_space<vmem>>, %arg2: memref<16x16xf32, #tpu.memory_space<vmem>>, %arg3: memref<16x16xf32, #tpu.memory_space<vmem>>, %arg4: memref<16x16xf32, #tpu.memory_space<vmem>>, %arg5: memref<16x16xf32, #tpu.memory_space<vmem>>, %arg6: memref<16x16xf32, #tpu.memory_space<vmem>>, %arg7: memref<1x16x16xf32, #tpu.memory_space<vmem>>) attributes {dimension_semantics = [#tpu.dimension_semantics<parallel>], iteration_bounds = array<i64: 2>, scalar_prefetch = 0 : i64, scratch_operands = 0 : i64, tpu.core_type = #tpu.core_type<tc>, window_params = [{transform_indices = @transform_0, window_bounds = array<i64: 1, 16, 16>}, {pipeline_mode = #tpu.pipeline_mode<synchronous>, transform_indices = @transform_1, window_bounds = array<i64: 16, 16>}, {pipeline_mode = #tpu.pipeline_mode<synchronous>, transform_indices = @transform_2, window_bounds = array<i64: 16, 16>}, {pipeline_mode = #tpu.pipeline_mode<synchronous>, transform_indices = @transform_3, window_bounds = array<i64: 16, 16>}, {pipeline_mode = #tpu.pipeline_mode<synchronous>, transform_indices = @transform_4, window_bounds = array<i64: 16, 16>}, {pipeline_mode = #tpu.pipeline_mode<synchronous>, transform_indices = @transform_5, window_bounds = array<i64: 16, 16>}, {transform_indices = @transform_6, window_bounds = array<i64: 1, 16, 16>}]} {
    %c0 = arith.constant 0 : index
    %c0_0 = arith.constant 0 : index
    %0 = vector.load %arg2[%c0, %c0_0] : memref<16x16xf32, #tpu.memory_space<vmem>>, vector<16x16xf32>
    %c0_1 = arith.constant 0 : index
    %c0_2 = arith.constant 0 : index
    %1 = vector.load %arg3[%c0_1, %c0_2] : memref<16x16xf32, #tpu.memory_space<vmem>>, vector<16x16xf32>
    %c0_3 = arith.constant 0 : index
    %c0_4 = arith.constant 0 : index
    %2 = vector.load %arg4[%c0_3, %c0_4] : memref<16x16xf32, #tpu.memory_space<vmem>>, vector<16x16xf32>
    %c0_5 = arith.constant 0 : index
    %c0_6 = arith.constant 0 : index
    %3 = vector.load %arg5[%c0_5, %c0_6] : memref<16x16xf32, #tpu.memory_space<vmem>>, vector<16x16xf32>
    %c0_7 = arith.constant 0 : index
    %c0_8 = arith.constant 0 : index
    %4 = vector.load %arg6[%c0_7, %c0_8] : memref<16x16xf32, #tpu.memory_space<vmem>>, vector<16x16xf32>
    %c0_9 = arith.constant 0 : index
    %c0_10 = arith.constant 0 : index
    %c0_11 = arith.constant 0 : index
    %5 = vector.load %arg1[%c0_9, %c0_10, %c0_11] : memref<1x16x16xf32, #tpu.memory_space<vmem>>, vector<1x16x16xf32>
    %6 = vector.shape_cast %5 : vector<1x16x16xf32> to vector<16x16xf32>
    %cst = arith.constant dense<0.000000e+00> : vector<16x16xf32>
    %7 = tpu.matmul %0, %6, %cst {dimension_numbers = #tpu.dot_dimension_numbers<[1], [0], [0], [1], [0, 0, 1, 1], [], []>, precision = #tpu.contract_precision<fp32>} : vector<16x16xf32>, vector<16x16xf32>, vector<16x16xf32> -> vector<16x16xf32>
    %cst_12 = arith.constant dense<0.000000e+00> : vector<16x16xf32>
    %8 = tpu.matmul %1, %6, %cst_12 {dimension_numbers = #tpu.dot_dimension_numbers<[1], [0], [0], [1], [0, 0, 1, 1], [], []>, precision = #tpu.contract_precision<fp32>} : vector<16x16xf32>, vector<16x16xf32>, vector<16x16xf32> -> vector<16x16xf32>
    %9 = arith.addf %7, %8 : vector<16x16xf32>
    %10 = arith.subf %9, %6 : vector<16x16xf32>
    %cst_13 = arith.constant dense<0.000000e+00> : vector<16x16xf32>
    %11 = tpu.matmul %10, %2, %cst_13 {dimension_numbers = #tpu.dot_dimension_numbers<[1], [0], [0], [1], [0, 0, 1, 1], [], []>, precision = #tpu.contract_precision<fp32>} : vector<16x16xf32>, vector<16x16xf32>, vector<16x16xf32> -> vector<16x16xf32>
    %cst_14 = arith.constant 6.600000e-01 : f32
    %12 = vector.broadcast %cst_14 : f32 to vector<16x16xf32>
    %13 = arith.addf %11, %12 : vector<16x16xf32>
    %cst_15 = arith.constant dense<0.000000e+00> : vector<16x16xf32>
    %14 = tpu.matmul %10, %3, %cst_15 {dimension_numbers = #tpu.dot_dimension_numbers<[1], [0], [0], [1], [0, 0, 1, 1], [], []>, precision = #tpu.contract_precision<fp32>} : vector<16x16xf32>, vector<16x16xf32>, vector<16x16xf32> -> vector<16x16xf32>
    %cst_16 = arith.constant 6.600000e-01 : f32
    %15 = vector.broadcast %cst_16 : f32 to vector<16x16xf32>
    %16 = arith.addf %14, %15 : vector<16x16xf32>
    %cst_17 = arith.constant dense<0.000000e+00> : vector<16x16xf32>
    %17 = tpu.matmul %7, %4, %cst_17 {dimension_numbers = #tpu.dot_dimension_numbers<[1], [0], [0], [1], [0, 0, 1, 1], [], []>, precision = #tpu.contract_precision<fp32>} : vector<16x16xf32>, vector<16x16xf32>, vector<16x16xf32> -> vector<16x16xf32>
    %cst_18 = arith.constant 6.600000e-01 : f32
    %18 = vector.broadcast %cst_18 : f32 to vector<16x16xf32>
    %19 = arith.addf %17, %18 : vector<16x16xf32>
    %cst_19 = arith.constant dense<0.000000e+00> : vector<16x16xf32>
    %20 = tpu.matmul %8, %4, %cst_19 {dimension_numbers = #tpu.dot_dimension_numbers<[1], [0], [0], [1], [0, 0, 1, 1], [], []>, precision = #tpu.contract_precision<fp32>} : vector<16x16xf32>, vector<16x16xf32>, vector<16x16xf32> -> vector<16x16xf32>
    %cst_20 = arith.constant 6.600000e-01 : f32
    %21 = vector.broadcast %cst_20 : f32 to vector<16x16xf32>
    %22 = arith.addf %20, %21 : vector<16x16xf32>
    %23 = math.log %13 : vector<16x16xf32>
    %24 = math.log %16 : vector<16x16xf32>
    %25 = arith.subf %23, %24 : vector<16x16xf32>
    %26 = math.log %19 : vector<16x16xf32>
    %27 = math.log %22 : vector<16x16xf32>
    %28 = arith.subf %26, %27 : vector<16x16xf32>
    %29 = arith.mulf %25, %25 : vector<16x16xf32>
    %30 = arith.mulf %28, %28 : vector<16x16xf32>
    %31 = arith.addf %29, %30 : vector<16x16xf32>
    %32 = math.sqrt %31 : vector<16x16xf32>
    %c0_21 = arith.constant 0 : index
    %c0_22 = arith.constant 0 : index
    %c0_23 = arith.constant 0 : index
    %33 = vector.load %arg7[%c0_21, %c0_22, %c0_23] : memref<1x16x16xf32, #tpu.memory_space<vmem>>, vector<1x16x16xf32>
    %34 = vector.shape_cast %33 : vector<1x16x16xf32> to vector<16x16xf32>
    %35 = vector.shape_cast %32 : vector<16x16xf32> to vector<1x16x16xf32>
    tpu.vector_store %arg7[%c0_21, %c0_22, %c0_23], %35 {strides = array<i32>} : memref<1x16x16xf32, #tpu.memory_space<vmem>>, vector<1x16x16xf32>,
    return
  }
  func.func @transform_0(%arg0: i32) -> (i32, i32, i32) {
    %c0_i32 = arith.constant 0 : i32
    %c0_i32_0 = arith.constant 0 : i32
    %c0_i32_1 = arith.constant 0 : i32
    return %arg0, %c0_i32, %c0_i32_0 : i32, i32, i32
  }
  func.func @transform_1(%arg0: i32) -> (i32, i32) {
    %c0_i32 = arith.constant 0 : i32
    %c0_i32_0 = arith.constant 0 : i32
    %c0_i32_1 = arith.constant 0 : i32
    return %c0_i32, %c0_i32_0 : i32, i32
  }
  func.func @transform_2(%arg0: i32) -> (i32, i32) {
    %c0_i32 = arith.constant 0 : i32
    %c0_i32_0 = arith.constant 0 : i32
    %c0_i32_1 = arith.constant 0 : i32
    return %c0_i32, %c0_i32_0 : i32, i32
  }
  func.func @transform_3(%arg0: i32) -> (i32, i32) {
    %c0_i32 = arith.constant 0 : i32
    %c0_i32_0 = arith.constant 0 : i32
    %c0_i32_1 = arith.constant 0 : i32
    return %c0_i32, %c0_i32_0 : i32, i32
  }
  func.func @transform_4(%arg0: i32) -> (i32, i32) {
    %c0_i32 = arith.constant 0 : i32
    %c0_i32_0 = arith.constant 0 : i32
    %c0_i32_1 = arith.constant 0 : i32
    return %c0_i32, %c0_i32_0 : i32, i32
  }
  func.func @transform_5(%arg0: i32) -> (i32, i32) {
    %c0_i32 = arith.constant 0 : i32
    %c0_i32_0 = arith.constant 0 : i32
    %c0_i32_1 = arith.constant 0 : i32
    return %c0_i32, %c0_i32_0 : i32, i32
  }
  func.func @transform_6(%arg0: i32) -> (i32, i32, i32) {
    %c0_i32 = arith.constant 0 : i32
    %c0_i32_0 = arith.constant 0 : i32
    %c0_i32_1 = arith.constant 0 : i32
    return %arg0, %c0_i32, %c0_i32_0 : i32, i32, i32
  }
}

</mosaic_0001>

<llo_original>
// kernel: tpu_custom_call.1
$region0: #{tpu_custom_call.1}
  #allocation0 [shape = 'u32[]', space=smem, size = 0x4, offset = 0x4, fixed_abs, tag = 'smem constant byte address 0x4 - core index']
  #allocation1 [shape = 'u32[144,128]{1,0:T(1,128)}', space=vmem, size = 0x12000, scoped, tag = 'internal scratch']
  %s0 = inlined_call_operand.hbm [shape: f32[2,16,16], index: 0, kind: input, shape index: {}]
  %s1 = inlined_call_operand.hbm [shape: f32[16,16], index: 1, kind: input, shape index: {}]
  %s2 = inlined_call_operand.hbm [shape: f32[16,16], index: 2, kind: input, shape index: {}]
  %s3 = inlined_call_operand.hbm [shape: f32[16,16], index: 3, kind: input, shape index: {}]
  %s4 = inlined_call_operand.hbm [shape: f32[16,16], index: 4, kind: input, shape index: {}]
  %s5 = inlined_call_operand.vmem [shape: f32[16,16], index: 5, kind: input, shape index: {}]
  %s6 = inlined_call_operand.hbm [shape: f32[2,16,16], index: 6, kind: output, shape index: {}]
  %s7 = sld [smem:[#allocation0]]
  $region77: #{tpu_custom_call.1} parent=0
    _
  %s9 = ssub.s32 1, %s7
  %s10 = scalar_select 0, %s9, %s7
  $region1: #{tpu_custom_call.1} parent=0
    #allocation2 [shape = 'u8[16384]{0}', space=vmem, size = 0x4000, scoped, tag = 'input window, operand 0']
    #allocation3 [shape = 's32[2]{0}', space=sflag, size = 0x8, scoped, tag = 'scoped memory for tpu_custom_call.1']
    #allocation4 [shape = 's32[2]{0}', space=sflag, size = 0x8, scoped, tag = 'scoped memory for tpu_custom_call.1']
    #allocation5 [shape = 'u8[8192]{0}', space=vmem, size = 0x2000, scoped, tag = 'input window, operand 1, single buffered']
    #allocation6 [shape = 's32[1]{0}', space=sflag, size = 0x4, scoped, tag = 'scoped memory for tpu_custom_call.1']
    #allocation7 [shape = 'u8[8192]{0}', space=vmem, size = 0x2000, scoped, tag = 'input window, operand 2, single buffered']
    #allocation8 [shape = 'u8[8192]{0}', space=vmem, size = 0x2000, scoped, tag = 'input window, operand 3, single buffered']
    #allocation9 [shape = 's32[1]{0}', space=sflag, size = 0x4, scoped, tag = 'scoped memory for tpu_custom_call.1']
    #allocation10 [shape = 'u8[8192]{0}', space=vmem, size = 0x2000, scoped, tag = 'input window, operand 4, single buffered']
    #allocation11 [shape = 'u8[16384]{0}', space=vmem, size = 0x4000, scoped, tag = 'output window, operand 0']
    %11 = vsyncpa [#allocation3], 0
    %s12 = scalar_lea.sflag [#allocation3], 1
    %13 = vsyncpa %s12, 0
    %14 = vsyncpa [#allocation6], 0
    %15 = vsyncpa [#allocation9], 0
    %16 = vsyncpa [#allocation4], 0
    %s17 = scalar_lea.sflag [#allocation4], 1
    %18 = vsyncpa %s17, 0
    loop: start=0, step=1, limit=4
    $region2: #{tpu_custom_call.1} parent=1 // loop_pre_header
      _
    $region3: #{tpu_custom_call.1} parent=1 // loop_header
      %s20 = sphi 0, %s24
      %p21 = scmp.ge.s32.totalorder %s20, 4
      %s30 = sphi 0, %s32
      %s33 = sphi 0, %s30
      %s34 = sphi 0, %s33
      %s50 = sphi 0, %s34
      %s54 = sphi 0, %s54
      %s56 = sphi 0, %s54
      %s57 = sphi 0, %s56
      %s71 = sphi 0, %s57
      %s75 = sphi 0, %s75
      %s77 = sphi 0, %s75
      %s78 = sphi 0, %s77
      %s92 = sphi 0, %s78
      %s96 = sphi 0, %s96
      %s98 = sphi 0, %s96
      %s99 = sphi 0, %s98
      %s113 = sphi 0, %s99
      %s117 = sphi 0, %s117
      %s119 = sphi 0, %s117
      %s120 = sphi 0, %s119
      %s134 = sphi 0, %s120
      %s138 = sphi 0, %s138
      %s140 = sphi 0, %s138
      %s141 = sphi 0, %s140
      %s155 = sphi 0, %s141
      %s161 = sphi 0, %s163
      %s164 = sphi 0, %s161
      %s165 = sphi 0, %s164
      %s181 = sphi 0, %s165
    $region4: #{tpu_custom_call.1} parent=1 // loop_header_branch
      %23 = sbr.rel (%p21) target = $region8
    $region5: #{tpu_custom_call.1} parent=1 // loop_body
      %s25 = ssub.s32 %s20, 1
      %s26 = ssub.s32 %s20, 2
      %s27 = sadd.s32 %s20, 1
      %s28 = ssub.s32 %s20, %s27
      %p29 = scmp.eq.s32.totalorder %s28, 0
      %s31 = sadd.s32 %s30, 1
      %s32 = scalar_select %p29, %s30, %s31
      %p35 = pneg %p29
      %p36 = scmp.eq.s32.totalorder %s20, 1
      %p37 = por %p35, %p36
      %p38 = scmp.ne.s32.totalorder %s30, %s33
      %p39 = scmp.eq.s32.totalorder %s20, 0
      %p40 = por %p38, %p39
      %p41 = scmp.ne.s32.totalorder %s30, %s33
      %p42 = scmp.eq.s32.totalorder %s25, 1
      %p43 = por %p41, %p42
      %p44 = scmp.ne.s32.totalorder %s33, %s34
      %p45 = scmp.eq.s32.totalorder %s25, 0
      %p46 = por %p44, %p45
      %p47 = scmp.ne.s32.totalorder %s33, %s34
      %p48 = scmp.eq.s32.totalorder %s26, 1
      %p49 = por %p47, %p48
      %p51 = scmp.ne.s32.totalorder %s34, %s50
      %p52 = scmp.eq.s32.totalorder %s26, 0
      %p53 = por %p51, %p52
      %s55 = sadd.s32 %s54, 1
      %p58 = scmp.eq.s32.totalorder %s20, 1
      %p59 = scmp.ne.s32.totalorder %s54, %s56
      %p60 = scmp.eq.s32.totalorder %s20, 0
      %p61 = por %p59, %p60
      %p62 = scmp.ne.s32.totalorder %s54, %s56
      %p63 = scmp.eq.s32.totalorder %s25, 1
      %p64 = por %p62, %p63
      %p65 = scmp.ne.s32.totalorder %s56, %s57
      %p66 = scmp.eq.s32.totalorder %s25, 0
      %p67 = por %p65, %p66
      %p68 = scmp.ne.s32.totalorder %s56, %s57
      %p69 = scmp.eq.s32.totalorder %s26, 1
      %p70 = por %p68, %p69
      %p72 = scmp.ne.s32.totalorder %s57, %s71
      %p73 = scmp.eq.s32.totalorder %s26, 0
      %p74 = por %p72, %p73
      %s76 = sadd.s32 %s75, 1
      %p79 = scmp.eq.s32.totalorder %s20, 1
      %p80 = scmp.ne.s32.totalorder %s75, %s77
      %p81 = scmp.eq.s32.totalorder %s20, 0
      %p82 = por %p80, %p81
      %p83 = scmp.ne.s32.totalorder %s75, %s77
      %p84 = scmp.eq.s32.totalorder %s25, 1
      %p85 = por %p83, %p84
      %p86 = scmp.ne.s32.totalorder %s77, %s78
      %p87 = scmp.eq.s32.totalorder %s25, 0
      %p88 = por %p86, %p87
      %p89 = scmp.ne.s32.totalorder %s77, %s78
      %p90 = scmp.eq.s32.totalorder %s26, 1
      %p91 = por %p89, %p90
      %p93 = scmp.ne.s32.totalorder %s78, %s92
      %p94 = scmp.eq.s32.totalorder %s26, 0
      %p95 = por %p93, %p94
      %s97 = sadd.s32 %s96, 1
      %p100 = scmp.eq.s32.totalorder %s20, 1
      %p101 = scmp.ne.s32.totalorder %s96, %s98
      %p102 = scmp.eq.s32.totalorder %s20, 0
      %p103 = por %p101, %p102
      %p104 = scmp.ne.s32.totalorder %s96, %s98
      %p105 = scmp.eq.s32.totalorder %s25, 1
      %p106 = por %p104, %p105
      %p107 = scmp.ne.s32.totalorder %s98, %s99
      %p108 = scmp.eq.s32.totalorder %s25, 0
      %p109 = por %p107, %p108
      %p110 = scmp.ne.s32.totalorder %s98, %s99
      %p111 = scmp.eq.s32.totalorder %s26, 1
      %p112 = por %p110, %p111
      %p114 = scmp.ne.s32.totalorder %s99, %s113
      %p115 = scmp.eq.s32.totalorder %s26, 0
      %p116 = por %p114, %p115
      %s118 = sadd.s32 %s117, 1
      %p121 = scmp.eq.s32.totalorder %s20, 1
      %p122 = scmp.ne.s32.totalorder %s117, %s119
      %p123 = scmp.eq.s32.totalorder %s20, 0
      %p124 = por %p122, %p123
      %p125 = scmp.ne.s32.totalorder %s117, %s119
      %p126 = scmp.eq.s32.totalorder %s25, 1
      %p127 = por %p125, %p126
      %p128 = scmp.ne.s32.totalorder %s119, %s120
      %p129 = scmp.eq.s32.totalorder %s25, 0
      %p130 = por %p128, %p129
      %p131 = scmp.ne.s32.totalorder %s119, %s120
      %p132 = scmp.eq.s32.totalorder %s26, 1
      %p133 = por %p131, %p132
      %p135 = scmp.ne.s32.totalorder %s120, %s134
      %p136 = scmp.eq.s32.totalorder %s26, 0
      %p137 = por %p135, %p136
      %s139 = sadd.s32 %s138, 1
      %p142 = scmp.eq.s32.totalorder %s20, 1
      %p143 = scmp.ne.s32.totalorder %s138, %s140
      %p144 = scmp.eq.s32.totalorder %s20, 0
      %p145 = por %p143, %p144
      %p146 = scmp.ne.s32.totalorder %s138, %s140
      %p147 = scmp.eq.s32.totalorder %s25, 1
      %p148 = por %p146, %p147
      %p149 = scmp.ne.s32.totalorder %s140, %s141
      %p150 = scmp.eq.s32.totalorder %s25, 0
      %p151 = por %p149, %p150
      %p152 = scmp.ne.s32.totalorder %s140, %s141
      %p153 = scmp.eq.s32.totalorder %s26, 1
      %p154 = por %p152, %p153
      %p156 = scmp.ne.s32.totalorder %s141, %s155
      %p157 = scmp.eq.s32.totalorder %s26, 0
      %p158 = por %p156, %p157
      %s159 = ssub.s32 %s20, %s27
      %p160 = scmp.eq.s32.totalorder %s159, 0
      %s162 = sadd.s32 %s161, 1
      %s163 = scalar_select %p160, %s161, %s162
      %p166 = pneg %p160
      %p167 = scmp.eq.s32.totalorder %s20, 1
      %p168 = por %p166, %p167
      %p169 = scmp.ne.s32.totalorder %s161, %s164
      %p170 = scmp.eq.s32.totalorder %s20, 0
      %p171 = por %p169, %p170
      %p172 = scmp.ne.s32.totalorder %s161, %s164
      %p173 = scmp.eq.s32.totalorder %s25, 1
      %p174 = por %p172, %p173
      %p175 = scmp.ne.s32.totalorder %s164, %s165
      %p176 = scmp.eq.s32.totalorder %s25, 0
      %p177 = por %p175, %p176
      %p178 = scmp.ne.s32.totalorder %s164, %s165
      %p179 = scmp.eq.s32.totalorder %s26, 1
      %p180 = por %p178, %p179
      %p182 = scmp.ne.s32.totalorder %s165, %s181
      %p183 = scmp.eq.s32.totalorder %s26, 0
      %p184 = por %p182, %p183
      %p185 = scmp.le.s32.totalorder 1, %s20
      %p186 = scmp.lt.s32.totalorder %s20, 3
      %p187 = pnand %p185, %p186
      %p188 = pneg %p187
      // Predicated region
      $region9: #{tpu_custom_call.1} parent=5 // pred_check
        _
      $region10: #{tpu_custom_call.1} parent=5 // pred_check_branch
        %190 = sbr.rel (%p187) target = $region12
      $region11: #{tpu_custom_call.1} parent=5 // pred_region
        %s191 = ssub.s32 %s20, 1
        // Predicated region
        $region13: #{tpu_custom_call.1} parent=11 // pred_check
          %p192 = pneg %p67
        $region14: #{tpu_custom_call.1} parent=11 // pred_check_branch
          %194 = sbr.rel (%p192) target = $region16
        $region15: #{tpu_custom_call.1} parent=11 // pred_region
          %s196 = ssub.s32 256, 256
          %197 = vsyncadd [#allocation6], %s196
          %s198 = sshll.u32 [#allocation5], 4
          %s199 = int_to_ptr.vmem [resolvable:$true] %s198
          %204 = dma.hbm_to_vmem [thread:$0]  %s1, 256, %s199, [#allocation6], 128, 128, 8
        $region16: #{tpu_custom_call.1} parent=11 // pred_fallthru
          _
        // Predicated region
        $region17: #{tpu_custom_call.1} parent=11 // pred_check
          %p205 = pneg %p88
        $region18: #{tpu_custom_call.1} parent=11 // pred_check_branch
          %207 = sbr.rel (%p205) target = $region20
        $region19: #{tpu_custom_call.1} parent=11 // pred_region
          %s209 = ssub.s32 256, 256
          %210 = vsyncadd [#allocation6], %s209
          %s211 = sshll.u32 [#allocation7], 4
          %s212 = int_to_ptr.vmem [resolvable:$true] %s211
          %217 = dma.hbm_to_vmem [thread:$0]  %s2, 256, %s212, [#allocation6], 128, 128, 8
        $region20: #{tpu_custom_call.1} parent=11 // pred_fallthru
          _
        // Predicated region
        $region21: #{tpu_custom_call.1} parent=11 // pred_check
          %p218 = pneg %p109
        $region22: #{tpu_custom_call.1} parent=11 // pred_check_branch
          %220 = sbr.rel (%p218) target = $region24
        $region23: #{tpu_custom_call.1} parent=11 // pred_region
          %s222 = ssub.s32 256, 256
          %223 = vsyncadd [#allocation9], %s222
          %s224 = sshll.u32 [#allocation8], 4
          %s225 = int_to_ptr.vmem [resolvable:$true] %s224
          %230 = dma.hbm_to_vmem [thread:$0]  %s3, 256, %s225, [#allocation9], 128, 128, 8
        $region24: #{tpu_custom_call.1} parent=11 // pred_fallthru
          _
        // Predicated region
        $region25: #{tpu_custom_call.1} parent=11 // pred_check
          %p231 = pneg %p130
        $region26: #{tpu_custom_call.1} parent=11 // pred_check_branch
          %233 = sbr.rel (%p231) target = $region28
        $region27: #{tpu_custom_call.1} parent=11 // pred_region
          %s235 = ssub.s32 256, 256
          %236 = vsyncadd [#allocation9], %s235
          %s237 = sshll.u32 [#allocation10], 4
          %s238 = int_to_ptr.vmem [resolvable:$true] %s237
          %243 = dma.hbm_to_vmem [thread:$0]  %s4, 256, %s238, [#allocation9], 128, 128, 8
        $region28: #{tpu_custom_call.1} parent=11 // pred_fallthru
          _
        // Predicated region
        $region29: #{tpu_custom_call.1} parent=11 // pred_check
          %p244 = pneg %p151
        $region30: #{tpu_custom_call.1} parent=11 // pred_check_branch
          %246 = sbr.rel (%p244) target = $region32
        $region31: #{tpu_custom_call.1} parent=11 // pred_region
          _
        $region32: #{tpu_custom_call.1} parent=11 // pred_fallthru
          _
      $region12: #{tpu_custom_call.1} parent=5 // pred_fallthru
        _
      %p247 = scmp.lt.s32.totalorder %s20, 2
      // Predicated region
      $region33: #{tpu_custom_call.1} parent=5 // pred_check
        %p248 = pneg %p247
      $region34: #{tpu_custom_call.1} parent=5 // pred_check_branch
        %250 = sbr.rel (%p248) target = $region36
      $region35: #{tpu_custom_call.1} parent=5 // pred_region
        // Predicated region
        $region37: #{tpu_custom_call.1} parent=35 // pred_check
          %p251 = pneg %p40
        $region38: #{tpu_custom_call.1} parent=35 // pred_check_branch
          %253 = sbr.rel (%p251) target = $region40
        $region39: #{tpu_custom_call.1} parent=35 // pred_region
          %s254 = sand.u32 %s30, 1
          %s255 = scalar_lea.sflag [#allocation3], %s254
          %s256 = sand.u32 %s30, 1
          %s257 = smul.addr %s256, 16
          %s258 = scalar_lea.vmem [#allocation2], %s257
          %s260 = ssub.s32 256, 256
          %261 = vsyncadd %s255, %s260
          %s262 = smul.addr %s20, 2
          %s263 = smul.addr %s262, 128
          %s264 = scalar_lea.hbm %s0, %s263
          %s265 = sshll.u32 %s258, 4
          %s266 = int_to_ptr.vmem [resolvable:$true] %s265
          %271 = dma.hbm_to_vmem [thread:$0]  %s264, 256, %s266, %s255, 128, 128, 8
        $region40: #{tpu_custom_call.1} parent=35 // pred_fallthru
          _
      $region36: #{tpu_custom_call.1} parent=5 // pred_fallthru
        _
      %p272 = scmp.le.s32.totalorder 1, %s20
      %p273 = scmp.lt.s32.totalorder %s20, 3
      %p274 = pnand %p272, %p273
      %p275 = pneg %p274
      // Predicated region
      $region41: #{tpu_custom_call.1} parent=5 // pred_check
        _
      $region42: #{tpu_custom_call.1} parent=5 // pred_check_branch
        %277 = sbr.rel (%p274) target = $region44
      $region43: #{tpu_custom_call.1} parent=5 // pred_region
        %s278 = ssub.s32 %s20, 1
        %s279 = sand.u32 %s33, 1
        %s280 = scalar_lea.sflag [#allocation3], %s279
        %s281 = sand.u32 %s33, 1
        %s282 = smul.addr %s281, 16
        %s283 = scalar_lea.vmem [#allocation2], %s282
        // Predicated region
        $region45: #{tpu_custom_call.1} parent=43 // pred_check
          %p284 = pneg %p46
        $region46: #{tpu_custom_call.1} parent=43 // pred_check_branch
          %286 = sbr.rel (%p284) target = $region48
        $region47: #{tpu_custom_call.1} parent=43 // pred_region
          %287 = dma.done %s280, 256
        $region48: #{tpu_custom_call.1} parent=43 // pred_fallthru
          _
        // Predicated region
        $region49: #{tpu_custom_call.1} parent=43 // pred_check
          %p288 = pneg %p67
        $region50: #{tpu_custom_call.1} parent=43 // pred_check_branch
          %290 = sbr.rel (%p288) target = $region52
        $region51: #{tpu_custom_call.1} parent=43 // pred_region
          %291 = dma.done [#allocation6], 256
        $region52: #{tpu_custom_call.1} parent=43 // pred_fallthru
          _
        // Predicated region
        $region53: #{tpu_custom_call.1} parent=43 // pred_check
          %p292 = pneg %p88
        $region54: #{tpu_custom_call.1} parent=43 // pred_check_branch
          %294 = sbr.rel (%p292) target = $region56
        $region55: #{tpu_custom_call.1} parent=43 // pred_region
          %295 = dma.done [#allocation6], 256
        $region56: #{tpu_custom_call.1} parent=43 // pred_fallthru
          _
        // Predicated region
        $region57: #{tpu_custom_call.1} parent=43 // pred_check
          %p296 = pneg %p109
        $region58: #{tpu_custom_call.1} parent=43 // pred_check_branch
          %298 = sbr.rel (%p296) target = $region60
        $region59: #{tpu_custom_call.1} parent=43 // pred_region
          %299 = dma.done [#allocation9], 256
        $region60: #{tpu_custom_call.1} parent=43 // pred_fallthru
          _
        // Predicated region
        $region61: #{tpu_custom_call.1} parent=43 // pred_check
          %p300 = pneg %p130
        $region62: #{tpu_custom_call.1} parent=43 // pred_check_branch
          %302 = sbr.rel (%p300) target = $region64
        $region63: #{tpu_custom_call.1} parent=43 // pred_region
          %303 = dma.done [#allocation9], 256
        $region64: #{tpu_custom_call.1} parent=43 // pred_fallthru
          _
        %s304 = sand.u32 %s33, 1
        %s305 = scalar_lea.sflag [#allocation3], %s304
        %s306 = sand.u32 %s33, 1
        %s307 = smul.addr %s306, 16
        %s308 = scalar_lea.vmem [#allocation2], %s307
        %p309 = pneg %p46
        %p310 = pneg %p43
        %p311 = pneg %p67
        %p312 = pneg %p64
        %p313 = pneg %p88
        %p314 = pneg %p85
        %p315 = pneg %p109
        %p316 = pneg %p106
        %p317 = pneg %p130
        %p318 = pneg %p127
        %p319 = pneg %p151
        %p320 = pneg %p148
        %p321 = pneg %p177
        %p322 = pneg %p174
        %s323 = sand.u32 %s164, 1
        %s324 = scalar_lea.sflag [#allocation4], %s323
        %s325 = sand.u32 %s164, 1
        %s326 = smul.addr %s325, 16
        %s327 = scalar_lea.vmem [#allocation11], %s326
        %v328 = vld [vmem:[#allocation5] sm:$0xff]
        %v329 = vld [vmem:[#allocation5 + $0x8] sm:$0xff]
        %v330 = vld [vmem:[#allocation7] sm:$0xff]
        %v331 = vld [vmem:[#allocation7 + $0x8] sm:$0xff]
        %v332 = vld [vmem:[#allocation8] sm:$0xff]
        %v333 = vld [vmem:[#allocation8 + $0x8] sm:$0xff]
        %v334 = vld [vmem:[#allocation10] sm:$0xff]
        %v335 = vld [vmem:[#allocation10 + $0x8] sm:$0xff]
        %v336 = vld [vmem:[%s5] sm:$0xff]
        %v337 = vld [vmem:[%s5 + $0x8] sm:$0xff]
        %v338 = vld [vmem:[%s283] sm:$0xff]
        %v339 = vld [vmem:[%s283 + $0x8] sm:$0xff]
        %vm340 = vcmask 130048
        %v342 = vsel %vm340, %v328, 0
        %v345 = vsel %vm340, %v329, 0
        %347 = vmatprep.subr.mxu0 0.0
        %v348 = vand.u32 %v338, 4294901760
        %349 = vmatpush1.msra.mxu0 %v348
        %350 = vmatprep.subr.mxu0 0.0
        %v351 = vand.u32 %v339, 4294901760
        %352 = vmatpush1.msra.mxu0 %v351
        %353 = vmatprep.subr.mxu0 0.0
        %354 = vmatpush1.msra.mxu0 0.0
        %355 = vmatprep.subr.mxu0 0.0
        %356 = vmatpush1.msra.mxu0 0.0
        %357 = vmatprep.subr.mxu0 0.0
        %358 = vmatpush1.msra.mxu0 0.0
        %359 = vmatprep.subr.mxu0 0.0
        %360 = vmatpush1.msra.mxu0 0.0
        %361 = vmatprep.subr.mxu0 0.0
        %362 = vmatpush1.msra.mxu0 0.0
        %363 = vmatprep.subr.mxu0 0.0
        %364 = vmatpush1.msra.mxu0 0.0
        %365 = vmatprep.subr.mxu0 0.0
        %366 = vmatpush1.msra.mxu0 0.0
        %367 = vmatprep.subr.mxu0 0.0
        %368 = vmatpush1.msra.mxu0 0.0
        %369 = vmatprep.subr.mxu0 0.0
        %370 = vmatpush1.msra.mxu0 0.0
        %371 = vmatprep.subr.mxu0 0.0
        %372 = vmatpush1.msra.mxu0 0.0
        %373 = vmatprep.subr.mxu0 0.0
        %374 = vmatpush1.msra.mxu0 0.0
        %375 = vmatprep.subr.mxu0 0.0
        %376 = vmatpush1.msra.mxu0 0.0
        %377 = vmatprep.subr.mxu0 0.0
        %378 = vmatpush1.msra.mxu0 0.0
        %379 = vmatprep.subr.mxu0 0.0
        %380 = vmatpush1.msra.mxu0 0.0
        %381 = vmatprep.subr.mxu0 0.0
        %382 = vmatpush1.msra.mxu0 0.0
        %383 = vmatprep.subr.mxu0 0.0
        %384 = vmatpush1.msra.mxu0 0.0
        %385 = vmatprep.subr.mxu0 0.0
        %386 = vmatpush1.msra.mxu0 0.0
        %387 = vmatprep.subr.mxu0 0.0
        %388 = vmatpush1.msra.mxu0 0.0
        %389 = vmatprep.subr.mxu0 0.0
        %390 = vmatpush1.msra.mxu0 0.0
        %391 = vmatprep.subr.mxu0 0.0
        %392 = vmatpush1.msra.mxu0 0.0
        %393 = vmatprep.subr.mxu0 0.0
        %394 = vmatpush1.msra.mxu0 0.0
        %395 = vmatprep.subr.mxu0 0.0
        %396 = vmatpush1.msra.mxu0 0.0
        %397 = vmatprep.subr.mxu0 0.0
        %398 = vmatpush1.msra.mxu0 0.0
        %399 = vmatprep.subr.mxu0 0.0
        %400 = vmatpush1.msra.mxu0 0.0
        %401 = vmatprep.subr.mxu0 0.0
        %402 = vmatpush1.msra.mxu0 0.0
        %403 = vmatprep.subr.mxu0 0.0
        %404 = vmatpush1.msra.mxu0 0.0
        %405 = vmatprep.subr.mxu0 0.0
        %406 = vmatpush1.msra.mxu0 0.0
        %407 = vmatprep.subr.mxu0 0.0
        %408 = vmatpush1.msra.mxu0 0.0
        %409 = vmatprep.subr.mxu0 0.0
        %410 = vmatpush1.msra.mxu0 0.0
        %411 = vmatprep.subr.mxu0 0.0
        %412 = vmatpush1.msra.mxu0 0.0
        %413 = vmatprep.mubr.f32.mxu0 0.0
        %v414 = vand.u32 %v342, 4294901760
        %v415 = vsub.f32 %v342, %v414
        %v416 = vand.u32 %v415, 4294901760
        %v417 = vsub.f32 %v415, %v416
        %v418 = vand.u32 %v417, 4294901760
        %419 = vmatmul.mubr.f32.gmra.mrb[0].mxu0 %v418
        %v420 = vpop.f32.mrb[0].mxu0
        %v421 = vadd.f32 0.0, %v420
        %v422 = vpop.f32.mrb[0].mxu0
        %423 = vmatprep.mubr.f32.mxu0 0.0
        %v424 = vand.u32 %v345, 4294901760
        %v425 = vsub.f32 %v345, %v424
        %v426 = vand.u32 %v425, 4294901760
        %v427 = vsub.f32 %v425, %v426
        %v428 = vand.u32 %v427, 4294901760
        %429 = vmatmul.mubr.f32.gmra.mrb[0].mxu0 %v428
        %v430 = vpop.f32.mrb[0].mxu0
        %v431 = vadd.f32 0.0, %v430
        %v432 = vpop.f32.mrb[0].mxu0
        %433 = vdwg.mxu0
        %434 = vmatprep.subr.mxu0 0.0
        %v435 = vand.u32 %v338, 4294901760
        %v436 = vsub.f32 %v338, %v435
        %v437 = vand.u32 %v436, 4294901760
        %v438 = vsub.f32 %v436, %v437
        %v439 = vand.u32 %v438, 4294901760
        %440 = vmatpush1.msra.mxu0 %v439
        %441 = vmatprep.subr.mxu0 0.0
        %v442 = vand.u32 %v339, 4294901760
        %v443 = vsub.f32 %v339, %v442
        %v444 = vand.u32 %v443, 4294901760
        %v445 = vsub.f32 %v443, %v444
        %v446 = vand.u32 %v445, 4294901760
        %447 = vmatpush1.msra.mxu0 %v446
        %448 = vmatprep.subr.mxu0 0.0
        %449 = vmatpush1.msra.mxu0 0.0
        %450 = vmatprep.subr.mxu0 0.0
        %451 = vmatpush1.msra.mxu0 0.0
        %452 = vmatprep.subr.mxu0 0.0
        %453 = vmatpush1.msra.mxu0 0.0
        %454 = vmatprep.subr.mxu0 0.0
        %455 = vmatpush1.msra.mxu0 0.0
        %456 = vmatprep.subr.mxu0 0.0
        %457 = vmatpush1.msra.mxu0 0.0
        %458 = vmatprep.subr.mxu0 0.0
        %459 = vmatpush1.msra.mxu0 0.0
        %460 = vmatprep.subr.mxu0 0.0
        %461 = vmatpush1.msra.mxu0 0.0
        %462 = vmatprep.subr.mxu0 0.0
        %463 = vmatpush1.msra.mxu0 0.0
        %464 = vmatprep.subr.mxu0 0.0
        %465 = vmatpush1.msra.mxu0 0.0
        %466 = vmatprep.subr.mxu0 0.0
        %467 = vmatpush1.msra.mxu0 0.0
        %468 = vmatprep.subr.mxu0 0.0
        %469 = vmatpush1.msra.mxu0 0.0
        %470 = vmatprep.subr.mxu0 0.0
        %471 = vmatpush1.msra.mxu0 0.0
        %472 = vmatprep.subr.mxu0 0.0
        %473 = vmatpush1.msra.mxu0 0.0
        %474 = vmatprep.subr.mxu0 0.0
        %475 = vmatpush1.msra.mxu0 0.0
        %476 = vmatprep.subr.mxu0 0.0
        %477 = vmatpush1.msra.mxu0 0.0
        %478 = vmatprep.subr.mxu0 0.0
        %479 = vmatpush1.msra.mxu0 0.0
        %480 = vmatprep.subr.mxu0 0.0
        %481 = vmatpush1.msra.mxu0 0.0
        %482 = vmatprep.subr.mxu0 0.0
        %483 = vmatpush1.msra.mxu0 0.0
        %484 = vmatprep.subr.mxu0 0.0
        %485 = vmatpush1.msra.mxu0 0.0
        %486 = vmatprep.subr.mxu0 0.0
        %487 = vmatpush1.msra.mxu0 0.0
        %488 = vmatprep.subr.mxu0 0.0
        %489 = vmatpush1.msra.mxu0 0.0
        %490 = vmatprep.subr.mxu0 0.0
        %491 = vmatpush1.msra.mxu0 0.0
        %492 = vmatprep.subr.mxu0 0.0
        %493 = vmatpush1.msra.mxu0 0.0
        %494 = vmatprep.subr.mxu0 0.0
        %495 = vmatpush1.msra.mxu0 0.0
        %496 = vmatprep.subr.mxu0 0.0
        %497 = vmatpush1.msra.mxu0 0.0
        %498 = vmatprep.subr.mxu0 0.0
        %499 = vmatpush1.msra.mxu0 0.0
        %500 = vmatprep.subr.mxu0 0.0
        %501 = vmatpush1.msra.mxu0 0.0
        %502 = vmatprep.subr.mxu0 0.0
        %503 = vmatpush1.msra.mxu0 0.0
        %504 = vmatprep.subr.mxu0 0.0
        %505 = vmatpush1.msra.mxu0 0.0
        %506 = vmatprep.subr.mxu0 0.0
        %507 = vmatpush1.msra.mxu0 0.0
        %508 = vmatprep.mubr.f32.mxu0 0.0
        %v509 = vand.u32 %v342, 4294901760
        %510 = vmatmul.mubr.f32.gmra.mrb[0].mxu0 %v509
        %v511 = vpop.f32.mrb[0].mxu0
        %v512 = vadd.f32 %v421, %v511
        %v513 = vpop.f32.mrb[0].mxu0
        %514 = vmatprep.mubr.f32.mxu0 0.0
        %v515 = vand.u32 %v345, 4294901760
        %516 = vmatmul.mubr.f32.gmra.mrb[0].mxu0 %v515
        %v517 = vpop.f32.mrb[0].mxu0
        %v518 = vadd.f32 %v431, %v517
        %v519 = vpop.f32.mrb[0].mxu0
        %520 = vdwg.mxu0
        %521 = vmatprep.subr.mxu0 0.0
        %v522 = vand.u32 %v338, 4294901760
        %v523 = vsub.f32 %v338, %v522
        %524 = vmatpush1.msra.mxu0 %v523
        %525 = vmatprep.subr.mxu0 0.0
        %v526 = vand.u32 %v339, 4294901760
        %v527 = vsub.f32 %v339, %v526
        %528 = vmatpush1.msra.mxu0 %v527
        %529 = vmatprep.subr.mxu0 0.0
        %530 = vmatpush1.msra.mxu0 0.0
        %531 = vmatprep.subr.mxu0 0.0
        %532 = vmatpush1.msra.mxu0 0.0
        %533 = vmatprep.subr.mxu0 0.0
        %534 = vmatpush1.msra.mxu0 0.0
        %535 = vmatprep.subr.mxu0 0.0
        %536 = vmatpush1.msra.mxu0 0.0
        %537 = vmatprep.subr.mxu0 0.0
        %538 = vmatpush1.msra.mxu0 0.0
        %539 = vmatprep.subr.mxu0 0.0
        %540 = vmatpush1.msra.mxu0 0.0
        %541 = vmatprep.subr.mxu0 0.0
        %542 = vmatpush1.msra.mxu0 0.0
        %543 = vmatprep.subr.mxu0 0.0
        %544 = vmatpush1.msra.mxu0 0.0
        %545 = vmatprep.subr.mxu0 0.0
        %546 = vmatpush1.msra.mxu0 0.0
        %547 = vmatprep.subr.mxu0 0.0
        %548 = vmatpush1.msra.mxu0 0.0
        %549 = vmatprep.subr.mxu0 0.0
        %550 = vmatpush1.msra.mxu0 0.0
        %551 = vmatprep.subr.mxu0 0.0
        %552 = vmatpush1.msra.mxu0 0.0
        %553 = vmatprep.subr.mxu0 0.0
        %554 = vmatpush1.msra.mxu0 0.0
        %555 = vmatprep.subr.mxu0 0.0
        %556 = vmatpush1.msra.mxu0 0.0
        %557 = vmatprep.subr.mxu0 0.0
        %558 = vmatpush1.msra.mxu0 0.0
        %559 = vmatprep.subr.mxu0 0.0
        %560 = vmatpush1.msra.mxu0 0.0
        %561 = vmatprep.subr.mxu0 0.0
        %562 = vmatpush1.msra.mxu0 0.0
        %563 = vmatprep.subr.mxu0 0.0
        %564 = vmatpush1.msra.mxu0 0.0
        %565 = vmatprep.subr.mxu0 0.0
        %566 = vmatpush1.msra.mxu0 0.0
        %567 = vmatprep.subr.mxu0 0.0
        %568 = vmatpush1.msra.mxu0 0.0
        %569 = vmatprep.subr.mxu0 0.0
        %570 = vmatpush1.msra.mxu0 0.0
        %571 = vmatprep.subr.mxu0 0.0
        %572 = vmatpush1.msra.mxu0 0.0
        %573 = vmatprep.subr.mxu0 0.0
        %574 = vmatpush1.msra.mxu0 0.0
        %575 = vmatprep.subr.mxu0 0.0
        %576 = vmatpush1.msra.mxu0 0.0
        %577 = vmatprep.subr.mxu0 0.0
        %578 = vmatpush1.msra.mxu0 0.0
        %579 = vmatprep.subr.mxu0 0.0
        %580 = vmatpush1.msra.mxu0 0.0
        %581 = vmatprep.subr.mxu0 0.0
        %582 = vmatpush1.msra.mxu0 0.0
        %583 = vmatprep.subr.mxu0 0.0
        %584 = vmatpush1.msra.mxu0 0.0
        %585 = vmatprep.subr.mxu0 0.0
        %586 = vmatpush1.msra.mxu0 0.0
        %587 = vmatprep.subr.mxu0 0.0
        %588 = vmatpush1.msra.mxu0 0.0
        %589 = vmatprep.mubr.f32.mxu0 0.0
        %v590 = vand.u32 %v342, 4294901760
        %v591 = vsub.f32 %v342, %v590
        %592 = vmatmul.mubr.f32.gmra.mrb[0].mxu0 %v591
        %v593 = vpop.f32.mrb[0].mxu0
        %v594 = vadd.f32 %v512, %v593
        %v595 = vpop.f32.mrb[0].mxu0
        %596 = vmatprep.mubr.f32.mxu0 0.0
        %v597 = vand.u32 %v345, 4294901760
        %v598 = vsub.f32 %v345, %v597
        %599 = vmatmul.mubr.f32.gmra.mrb[0].mxu0 %v598
        %v600 = vpop.f32.mrb[0].mxu0
        %v601 = vadd.f32 %v518, %v600
        %v602 = vpop.f32.mrb[0].mxu0
        %603 = vdwg.mxu0
        %604 = vmatprep.subr.mxu0 0.0
        %v605 = vand.u32 %v338, 4294901760
        %606 = vmatpush1.msra.mxu0 %v605
        %607 = vmatprep.subr.mxu0 0.0
        %v608 = vand.u32 %v339, 4294901760
        %609 = vmatpush1.msra.mxu0 %v608
        %610 = vmatprep.subr.mxu0 0.0
        %611 = vmatpush1.msra.mxu0 0.0
        %612 = vmatprep.subr.mxu0 0.0
        %613 = vmatpush1.msra.mxu0 0.0
        %614 = vmatprep.subr.mxu0 0.0
        %615 = vmatpush1.msra.mxu0 0.0
        %616 = vmatprep.subr.mxu0 0.0
        %617 = vmatpush1.msra.mxu0 0.0
        %618 = vmatprep.subr.mxu0 0.0
        %619 = vmatpush1.msra.mxu0 0.0
        %620 = vmatprep.subr.mxu0 0.0
        %621 = vmatpush1.msra.mxu0 0.0
        %622 = vmatprep.subr.mxu0 0.0
        %623 = vmatpush1.msra.mxu0 0.0
        %624 = vmatprep.subr.mxu0 0.0
        %625 = vmatpush1.msra.mxu0 0.0
        %626 = vmatprep.subr.mxu0 0.0
        %627 = vmatpush1.msra.mxu0 0.0
        %628 = vmatprep.subr.mxu0 0.0
        %629 = vmatpush1.msra.mxu0 0.0
        %630 = vmatprep.subr.mxu0 0.0
        %631 = vmatpush1.msra.mxu0 0.0
        %632 = vmatprep.subr.mxu0 0.0
        %633 = vmatpush1.msra.mxu0 0.0
        %634 = vmatprep.subr.mxu0 0.0
        %635 = vmatpush1.msra.mxu0 0.0
        %636 = vmatprep.subr.mxu0 0.0
        %637 = vmatpush1.msra.mxu0 0.0
        %638 = vmatprep.subr.mxu0 0.0
        %639 = vmatpush1.msra.mxu0 0.0
        %640 = vmatprep.subr.mxu0 0.0
        %641 = vmatpush1.msra.mxu0 0.0
        %642 = vmatprep.subr.mxu0 0.0
        %643 = vmatpush1.msra.mxu0 0.0
        %644 = vmatprep.subr.mxu0 0.0
        %645 = vmatpush1.msra.mxu0 0.0
        %646 = vmatprep.subr.mxu0 0.0
        %647 = vmatpush1.msra.mxu0 0.0
        %648 = vmatprep.subr.mxu0 0.0
        %649 = vmatpush1.msra.mxu0 0.0
        %650 = vmatprep.subr.mxu0 0.0
        %651 = vmatpush1.msra.mxu0 0.0
        %652 = vmatprep.subr.mxu0 0.0
        %653 = vmatpush1.msra.mxu0 0.0
        %654 = vmatprep.subr.mxu0 0.0
        %655 = vmatpush1.msra.mxu0 0.0
        %656 = vmatprep.subr.mxu0 0.0
        %657 = vmatpush1.msra.mxu0 0.0
        %658 = vmatprep.subr.mxu0 0.0
        %659 = vmatpush1.msra.mxu0 0.0
        %660 = vmatprep.subr.mxu0 0.0
        %661 = vmatpush1.msra.mxu0 0.0
        %662 = vmatprep.subr.mxu0 0.0
        %663 = vmatpush1.msra.mxu0 0.0
        %664 = vmatprep.subr.mxu0 0.0
        %665 = vmatpush1.msra.mxu0 0.0
        %666 = vmatprep.subr.mxu0 0.0
        %667 = vmatpush1.msra.mxu0 0.0
        %668 = vmatprep.subr.mxu0 0.0
        %669 = vmatpush1.msra.mxu0 0.0
        %670 = vmatprep.mubr.f32.mxu0 0.0
        %v671 = vand.u32 %v342, 4294901760
        %v672 = vsub.f32 %v342, %v671
        %v673 = vand.u32 %v672, 4294901760
        %674 = vmatmul.mubr.f32.gmra.mrb[0].mxu0 %v673
        %v675 = vpop.f32.mrb[0].mxu0
        %v676 = vadd.f32 %v594, %v675
        %v677 = vpop.f32.mrb[0].mxu0
        %678 = vmatprep.mubr.f32.mxu0 0.0
        %v679 = vand.u32 %v345, 4294901760
        %v680 = vsub.f32 %v345, %v679
        %v681 = vand.u32 %v680, 4294901760
        %682 = vmatmul.mubr.f32.gmra.mrb[0].mxu0 %v681
        %v683 = vpop.f32.mrb[0].mxu0
        %v684 = vadd.f32 %v601, %v683
        %v685 = vpop.f32.mrb[0].mxu0
        %686 = vdwg.mxu0
        %687 = vmatprep.subr.mxu0 0.0
        %v688 = vand.u32 %v338, 4294901760
        %v689 = vsub.f32 %v338, %v688
        %v690 = vand.u32 %v689, 4294901760
        %691 = vmatpush1.msra.mxu0 %v690
        %692 = vmatprep.subr.mxu0 0.0
        %v693 = vand.u32 %v339, 4294901760
        %v694 = vsub.f32 %v339, %v693
        %v695 = vand.u32 %v694, 4294901760
        %696 = vmatpush1.msra.mxu0 %v695
        %697 = vmatprep.subr.mxu0 0.0
        %698 = vmatpush1.msra.mxu0 0.0
        %699 = vmatprep.subr.mxu0 0.0
        %700 = vmatpush1.msra.mxu0 0.0
        %701 = vmatprep.subr.mxu0 0.0
        %702 = vmatpush1.msra.mxu0 0.0
        %703 = vmatprep.subr.mxu0 0.0
        %704 = vmatpush1.msra.mxu0 0.0
        %705 = vmatprep.subr.mxu0 0.0
        %706 = vmatpush1.msra.mxu0 0.0
        %707 = vmatprep.subr.mxu0 0.0
        %708 = vmatpush1.msra.mxu0 0.0
        %709 = vmatprep.subr.mxu0 0.0
        %710 = vmatpush1.msra.mxu0 0.0
        %711 = vmatprep.subr.mxu0 0.0
        %712 = vmatpush1.msra.mxu0 0.0
        %713 = vmatprep.subr.mxu0 0.0
        %714 = vmatpush1.msra.mxu0 0.0
        %715 = vmatprep.subr.mxu0 0.0
        %716 = vmatpush1.msra.mxu0 0.0
        %717 = vmatprep.subr.mxu0 0.0
        %718 = vmatpush1.msra.mxu0 0.0
        %719 = vmatprep.subr.mxu0 0.0
        %720 = vmatpush1.msra.mxu0 0.0
        %721 = vmatprep.subr.mxu0 0.0
        %722 = vmatpush1.msra.mxu0 0.0
        %723 = vmatprep.subr.mxu0 0.0
        %724 = vmatpush1.msra.mxu0 0.0
        %725 = vmatprep.subr.mxu0 0.0
        %726 = vmatpush1.msra.mxu0 0.0
        %727 = vmatprep.subr.mxu0 0.0
        %728 = vmatpush1.msra.mxu0 0.0
        %729 = vmatprep.subr.mxu0 0.0
        %730 = vmatpush1.msra.mxu0 0.0
        %731 = vmatprep.subr.mxu0 0.0
        %732 = vmatpush1.msra.mxu0 0.0
        %733 = vmatprep.subr.mxu0 0.0
        %734 = vmatpush1.msra.mxu0 0.0
        %735 = vmatprep.subr.mxu0 0.0
        %736 = vmatpush1.msra.mxu0 0.0
        %737 = vmatprep.subr.mxu0 0.0
        %738 = vmatpush1.msra.mxu0 0.0
        %739 = vmatprep.subr.mxu0 0.0
        %740 = vmatpush1.msra.mxu0 0.0
        %741 = vmatprep.subr.mxu0 0.0
        %742 = vmatpush1.msra.mxu0 0.0
        %743 = vmatprep.subr.mxu0 0.0
        %744 = vmatpush1.msra.mxu0 0.0
        %745 = vmatprep.subr.mxu0 0.0
        %746 = vmatpush1.msra.mxu0 0.0
        %747 = vmatprep.subr.mxu0 0.0
        %748 = vmatpush1.msra.mxu0 0.0
        %749 = vmatprep.subr.mxu0 0.0
        %750 = vmatpush1.msra.mxu0 0.0
        %751 = vmatprep.subr.mxu0 0.0
        %752 = vmatpush1.msra.mxu0 0.0
        %753 = vmatprep.subr.mxu0 0.0
        %754 = vmatpush1.msra.mxu0 0.0
        %755 = vmatprep.subr.mxu0 0.0
        %756 = vmatpush1.msra.mxu0 0.0
        %757 = vmatprep.mubr.f32.mxu0 0.0
        %v758 = vand.u32 %v342, 4294901760
        %759 = vmatmul.mubr.f32.gmra.mrb[0].mxu0 %v758
        %v760 = vpop.f32.mrb[0].mxu0
        %v761 = vadd.f32 %v676, %v760
        %v762 = vpop.f32.mrb[0].mxu0
        %763 = vmatprep.mubr.f32.mxu0 0.0
        %v764 = vand.u32 %v345, 4294901760
        %765 = vmatmul.mubr.f32.gmra.mrb[0].mxu0 %v764
        %v766 = vpop.f32.mrb[0].mxu0
        %v767 = vadd.f32 %v684, %v766
        %v768 = vpop.f32.mrb[0].mxu0
        %769 = vdwg.mxu0
        %770 = vmatprep.subr.mxu0 0.0
        %v771 = vand.u32 %v338, 4294901760
        %772 = vmatpush1.msra.mxu0 %v771
        %773 = vmatprep.subr.mxu0 0.0
        %v774 = vand.u32 %v339, 4294901760
        %775 = vmatpush1.msra.mxu0 %v774
        %776 = vmatprep.subr.mxu0 0.0
        %777 = vmatpush1.msra.mxu0 0.0
        %778 = vmatprep.subr.mxu0 0.0
        %779 = vmatpush1.msra.mxu0 0.0
        %780 = vmatprep.subr.mxu0 0.0
        %781 = vmatpush1.msra.mxu0 0.0
        %782 = vmatprep.subr.mxu0 0.0
        %783 = vmatpush1.msra.mxu0 0.0
        %784 = vmatprep.subr.mxu0 0.0
        %785 = vmatpush1.msra.mxu0 0.0
        %786 = vmatprep.subr.mxu0 0.0
        %787 = vmatpush1.msra.mxu0 0.0
        %788 = vmatprep.subr.mxu0 0.0
        %789 = vmatpush1.msra.mxu0 0.0
        %790 = vmatprep.subr.mxu0 0.0
        %791 = vmatpush1.msra.mxu0 0.0
        %792 = vmatprep.subr.mxu0 0.0
        %793 = vmatpush1.msra.mxu0 0.0
        %794 = vmatprep.subr.mxu0 0.0
        %795 = vmatpush1.msra.mxu0 0.0
        %796 = vmatprep.subr.mxu0 0.0
        %797 = vmatpush1.msra.mxu0 0.0
        %798 = vmatprep.subr.mxu0 0.0
        %799 = vmatpush1.msra.mxu0 0.0
        %800 = vmatprep.subr.mxu0 0.0
        %801 = vmatpush1.msra.mxu0 0.0
        %802 = vmatprep.subr.mxu0 0.0
        %803 = vmatpush1.msra.mxu0 0.0
        %804 = vmatprep.subr.mxu0 0.0
        %805 = vmatpush1.msra.mxu0 0.0
        %806 = vmatprep.subr.mxu0 0.0
        %807 = vmatpush1.msra.mxu0 0.0
        %808 = vmatprep.subr.mxu0 0.0
        %809 = vmatpush1.msra.mxu0 0.0
        %810 = vmatprep.subr.mxu0 0.0
        %811 = vmatpush1.msra.mxu0 0.0
        %812 = vmatprep.subr.mxu0 0.0
        %813 = vmatpush1.msra.mxu0 0.0
        %814 = vmatprep.subr.mxu0 0.0
        %815 = vmatpush1.msra.mxu0 0.0
        %816 = vmatprep.subr.mxu0 0.0
        %817 = vmatpush1.msra.mxu0 0.0
        %818 = vmatprep.subr.mxu0 0.0
        %819 = vmatpush1.msra.mxu0 0.0
        %820 = vmatprep.subr.mxu0 0.0
        %821 = vmatpush1.msra.mxu0 0.0
        %822 = vmatprep.subr.mxu0 0.0
        %823 = vmatpush1.msra.mxu0 0.0
        %824 = vmatprep.subr.mxu0 0.0
        %825 = vmatpush1.msra.mxu0 0.0
        %826 = vmatprep.subr.mxu0 0.0
        %827 = vmatpush1.msra.mxu0 0.0
        %828 = vmatprep.subr.mxu0 0.0
        %829 = vmatpush1.msra.mxu0 0.0
        %830 = vmatprep.subr.mxu0 0.0
        %831 = vmatpush1.msra.mxu0 0.0
        %832 = vmatprep.subr.mxu0 0.0
        %833 = vmatpush1.msra.mxu0 0.0
        %834 = vmatprep.subr.mxu0 0.0
        %835 = vmatpush1.msra.mxu0 0.0
        %836 = vmatprep.mubr.f32.mxu0 0.0
        %v837 = vand.u32 %v342, 4294901760
        %838 = vmatmul.mubr.f32.gmra.mrb[0].mxu0 %v837
        %v839 = vpop.f32.mrb[0].mxu0
        %v840 = vadd.f32 %v761, %v839
        %v841 = vpop.f32.mrb[0].mxu0
        %842 = vmatprep.mubr.f32.mxu0 0.0
        %v843 = vand.u32 %v345, 4294901760
        %844 = vmatmul.mubr.f32.gmra.mrb[0].mxu0 %v843
        %v845 = vpop.f32.mrb[0].mxu0
        %v846 = vadd.f32 %v767, %v845
        %v847 = vpop.f32.mrb[0].mxu0
        %848 = vdwg.mxu0
        %v850 = vsel %vm340, %v330, 0
        %v853 = vsel %vm340, %v331, 0
        %855 = vmatprep.subr.mxu0 0.0
        %v856 = vand.u32 %v338, 4294901760
        %857 = vmatpush1.msra.mxu0 %v856
        %858 = vmatprep.subr.mxu0 0.0
        %v859 = vand.u32 %v339, 4294901760
        %860 = vmatpush1.msra.mxu0 %v859
        %861 = vmatprep.subr.mxu0 0.0
        %862 = vmatpush1.msra.mxu0 0.0
        %863 = vmatprep.subr.mxu0 0.0
        %864 = vmatpush1.msra.mxu0 0.0
        %865 = vmatprep.subr.mxu0 0.0
        %866 = vmatpush1.msra.mxu0 0.0
        %867 = vmatprep.subr.mxu0 0.0
        %868 = vmatpush1.msra.mxu0 0.0
        %869 = vmatprep.subr.mxu0 0.0
        %870 = vmatpush1.msra.mxu0 0.0
        %871 = vmatprep.subr.mxu0 0.0
        %872 = vmatpush1.msra.mxu0 0.0
        %873 = vmatprep.subr.mxu0 0.0
        %874 = vmatpush1.msra.mxu0 0.0
        %875 = vmatprep.subr.mxu0 0.0
        %876 = vmatpush1.msra.mxu0 0.0
        %877 = vmatprep.subr.mxu0 0.0
        %878 = vmatpush1.msra.mxu0 0.0
        %879 = vmatprep.subr.mxu0 0.0
        %880 = vmatpush1.msra.mxu0 0.0
        %881 = vmatprep.subr.mxu0 0.0
        %882 = vmatpush1.msra.mxu0 0.0
        %883 = vmatprep.subr.mxu0 0.0
        %884 = vmatpush1.msra.mxu0 0.0
        %885 = vmatprep.subr.mxu0 0.0
        %886 = vmatpush1.msra.mxu0 0.0
        %887 = vmatprep.subr.mxu0 0.0
        %888 = vmatpush1.msra.mxu0 0.0
        %889 = vmatprep.subr.mxu0 0.0
        %890 = vmatpush1.msra.mxu0 0.0
        %891 = vmatprep.subr.mxu0 0.0
        %892 = vmatpush1.msra.mxu0 0.0
        %893 = vmatprep.subr.mxu0 0.0
        %894 = vmatpush1.msra.mxu0 0.0
        %895 = vmatprep.subr.mxu0 0.0
        %896 = vmatpush1.msra.mxu0 0.0
        %897 = vmatprep.subr.mxu0 0.0
        %898 = vmatpush1.msra.mxu0 0.0
        %899 = vmatprep.subr.mxu0 0.0
        %900 = vmatpush1.msra.mxu0 0.0
        %901 = vmatprep.subr.mxu0 0.0
        %902 = vmatpush1.msra.mxu0 0.0
        %903 = vmatprep.subr.mxu0 0.0
        %904 = vmatpush1.msra.mxu0 0.0
        %905 = vmatprep.subr.mxu0 0.0
        %906 = vmatpush1.msra.mxu0 0.0
        %907 = vmatprep.subr.mxu0 0.0
        %908 = vmatpush1.msra.mxu0 0.0
        %909 = vmatprep.subr.mxu0 0.0
        %910 = vmatpush1.msra.mxu0 0.0
        %911 = vmatprep.subr.mxu0 0.0
        %912 = vmatpush1.msra.mxu0 0.0
        %913 = vmatprep.subr.mxu0 0.0
        %914 = vmatpush1.msra.mxu0 0.0
        %915 = vmatprep.subr.mxu0 0.0
        %916 = vmatpush1.msra.mxu0 0.0
        %917 = vmatprep.subr.mxu0 0.0
        %918 = vmatpush1.msra.mxu0 0.0
        %919 = vmatprep.subr.mxu0 0.0
        %920 = vmatpush1.msra.mxu0 0.0
        %921 = vmatprep.mubr.f32.mxu0 0.0
        %v922 = vand.u32 %v850, 4294901760
        %v923 = vsub.f32 %v850, %v922
        %v924 = vand.u32 %v923, 4294901760
        %v925 = vsub.f32 %v923, %v924
        %v926 = vand.u32 %v925, 4294901760
        %927 = vmatmul.mubr.f32.gmra.mrb[0].mxu0 %v926
        %v928 = vpop.f32.mrb[0].mxu0
        %v929 = vadd.f32 0.0, %v928
        %v930 = vpop.f32.mrb[0].mxu0
        %931 = vmatprep.mubr.f32.mxu0 0.0
        %v932 = vand.u32 %v853, 4294901760
        %v933 = vsub.f32 %v853, %v932
        %v934 = vand.u32 %v933, 4294901760
        %v935 = vsub.f32 %v933, %v934
        %v936 = vand.u32 %v935, 4294901760
        %937 = vmatmul.mubr.f32.gmra.mrb[0].mxu0 %v936
        %v938 = vpop.f32.mrb[0].mxu0
        %v939 = vadd.f32 0.0, %v938
        %v940 = vpop.f32.mrb[0].mxu0
        %941 = vdwg.mxu0
        %942 = vmatprep.subr.mxu0 0.0
        %v943 = vand.u32 %v338, 4294901760
        %v944 = vsub.f32 %v338, %v943
        %v945 = vand.u32 %v944, 4294901760
        %v946 = vsub.f32 %v944, %v945
        %v947 = vand.u32 %v946, 4294901760
        %948 = vmatpush1.msra.mxu0 %v947
        %949 = vmatprep.subr.mxu0 0.0
        %v950 = vand.u32 %v339, 4294901760
        %v951 = vsub.f32 %v339, %v950
        %v952 = vand.u32 %v951, 4294901760
        %v953 = vsub.f32 %v951, %v952
        %v954 = vand.u32 %v953, 4294901760
        %955 = vmatpush1.msra.mxu0 %v954
        %956 = vmatprep.subr.mxu0 0.0
        %957 = vmatpush1.msra.mxu0 0.0
        %958 = vmatprep.subr.mxu0 0.0
        %959 = vmatpush1.msra.mxu0 0.0
        %960 = vmatprep.subr.mxu0 0.0
        %961 = vmatpush1.msra.mxu0 0.0
        %962 = vmatprep.subr.mxu0 0.0
        %963 = vmatpush1.msra.mxu0 0.0
        %964 = vmatprep.subr.mxu0 0.0
        %965 = vmatpush1.msra.mxu0 0.0
        %966 = vmatprep.subr.mxu0 0.0
        %967 = vmatpush1.msra.mxu0 0.0
        %968 = vmatprep.subr.mxu0 0.0
        %969 = vmatpush1.msra.mxu0 0.0
        %970 = vmatprep.subr.mxu0 0.0
        %971 = vmatpush1.msra.mxu0 0.0
        %972 = vmatprep.subr.mxu0 0.0
        %973 = vmatpush1.msra.mxu0 0.0
        %974 = vmatprep.subr.mxu0 0.0
        %975 = vmatpush1.msra.mxu0 0.0
        %976 = vmatprep.subr.mxu0 0.0
        %977 = vmatpush1.msra.mxu0 0.0
        %978 = vmatprep.subr.mxu0 0.0
        %979 = vmatpush1.msra.mxu0 0.0
        %980 = vmatprep.subr.mxu0 0.0
        %981 = vmatpush1.msra.mxu0 0.0
        %982 = vmatprep.subr.mxu0 0.0
        %983 = vmatpush1.msra.mxu0 0.0
        %984 = vmatprep.subr.mxu0 0.0
        %985 = vmatpush1.msra.mxu0 0.0
        %986 = vmatprep.subr.mxu0 0.0
        %987 = vmatpush1.msra.mxu0 0.0
        %988 = vmatprep.subr.mxu0 0.0
        %989 = vmatpush1.msra.mxu0 0.0
        %990 = vmatprep.subr.mxu0 0.0
        %991 = vmatpush1.msra.mxu0 0.0
        %992 = vmatprep.subr.mxu0 0.0
        %993 = vmatpush1.msra.mxu0 0.0
        %994 = vmatprep.subr.mxu0 0.0
        %995 = vmatpush1.msra.mxu0 0.0
        %996 = vmatprep.subr.mxu0 0.0
        %997 = vmatpush1.msra.mxu0 0.0
        %998 = vmatprep.subr.mxu0 0.0
        %999 = vmatpush1.msra.mxu0 0.0
        %1000 = vmatprep.subr.mxu0 0.0
        %1001 = vmatpush1.msra.mxu0 0.0
        %1002 = vmatprep.subr.mxu0 0.0
        %1003 = vmatpush1.msra.mxu0 0.0
        %1004 = vmatprep.subr.mxu0 0.0
        %1005 = vmatpush1.msra.mxu0 0.0
        %1006 = vmatprep.subr.mxu0 0.0
        %1007 = vmatpush1.msra.mxu0 0.0
        %1008 = vmatprep.subr.mxu0 0.0
        %1009 = vmatpush1.msra.mxu0 0.0
        %1010 = vmatprep.subr.mxu0 0.0
        %1011 = vmatpush1.msra.mxu0 0.0
        %1012 = vmatprep.subr.mxu0 0.0
        %1013 = vmatpush1.msra.mxu0 0.0
        %1014 = vmatprep.subr.mxu0 0.0
        %1015 = vmatpush1.msra.mxu0 0.0
        %1016 = vmatprep.mubr.f32.mxu0 0.0
        %v1017 = vand.u32 %v850, 4294901760
        %1018 = vmatmul.mubr.f32.gmra.mrb[0].mxu0 %v1017
        %v1019 = vpop.f32.mrb[0].mxu0
        %v1020 = vadd.f32 %v929, %v1019
        %v1021 = vpop.f32.mrb[0].mxu0
        %1022 = vmatprep.mubr.f32.mxu0 0.0
        %v1023 = vand.u32 %v853, 4294901760
        %1024 = vmatmul.mubr.f32.gmra.mrb[0].mxu0 %v1023
        %v1025 = vpop.f32.mrb[0].mxu0
        %v1026 = vadd.f32 %v939, %v1025
        %v1027 = vpop.f32.mrb[0].mxu0
        %1028 = vdwg.mxu0
        %1029 = vmatprep.subr.mxu0 0.0
        %v1030 = vand.u32 %v338, 4294901760
        %v1031 = vsub.f32 %v338, %v1030
        %1032 = vmatpush1.msra.mxu0 %v1031
        %1033 = vmatprep.subr.mxu0 0.0
        %v1034 = vand.u32 %v339, 4294901760
        %v1035 = vsub.f32 %v339, %v1034
        %1036 = vmatpush1.msra.mxu0 %v1035
        %1037 = vmatprep.subr.mxu0 0.0
        %1038 = vmatpush1.msra.mxu0 0.0
        %1039 = vmatprep.subr.mxu0 0.0
        %1040 = vmatpush1.msra.mxu0 0.0
        %1041 = vmatprep.subr.mxu0 0.0
        %1042 = vmatpush1.msra.mxu0 0.0
        %1043 = vmatprep.subr.mxu0 0.0
        %1044 = vmatpush1.msra.mxu0 0.0
        %1045 = vmatprep.subr.mxu0 0.0
        %1046 = vmatpush1.msra.mxu0 0.0
        %1047 = vmatprep.subr.mxu0 0.0
        %1048 = vmatpush1.msra.mxu0 0.0
        %1049 = vmatprep.subr.mxu0 0.0
        %1050 = vmatpush1.msra.mxu0 0.0
        %1051 = vmatprep.subr.mxu0 0.0
        %1052 = vmatpush1.msra.mxu0 0.0
        %1053 = vmatprep.subr.mxu0 0.0
        %1054 = vmatpush1.msra.mxu0 0.0
        %1055 = vmatprep.subr.mxu0 0.0
        %1056 = vmatpush1.msra.mxu0 0.0
        %1057 = vmatprep.subr.mxu0 0.0
        %1058 = vmatpush1.msra.mxu0 0.0
        %1059 = vmatprep.subr.mxu0 0.0
        %1060 = vmatpush1.msra.mxu0 0.0
        %1061 = vmatprep.subr.mxu0 0.0
        %1062 = vmatpush1.msra.mxu0 0.0
        %1063 = vmatprep.subr.mxu0 0.0
        %1064 = vmatpush1.msra.mxu0 0.0
        %1065 = vmatprep.subr.mxu0 0.0
        %1066 = vmatpush1.msra.mxu0 0.0
        %1067 = vmatprep.subr.mxu0 0.0
        %1068 = vmatpush1.msra.mxu0 0.0
        %1069 = vmatprep.subr.mxu0 0.0
        %1070 = vmatpush1.msra.mxu0 0.0
        %1071 = vmatprep.subr.mxu0 0.0
        %1072 = vmatpush1.msra.mxu0 0.0
        %1073 = vmatprep.subr.mxu0 0.0
        %1074 = vmatpush1.msra.mxu0 0.0
        %1075 = vmatprep.subr.mxu0 0.0
        %1076 = vmatpush1.msra.mxu0 0.0
        %1077 = vmatprep.subr.mxu0 0.0
        %1078 = vmatpush1.msra.mxu0 0.0
        %1079 = vmatprep.subr.mxu0 0.0
        %1080 = vmatpush1.msra.mxu0 0.0
        %1081 = vmatprep.subr.mxu0 0.0
        %1082 = vmatpush1.msra.mxu0 0.0
        %1083 = vmatprep.subr.mxu0 0.0
        %1084 = vmatpush1.msra.mxu0 0.0
        %1085 = vmatprep.subr.mxu0 0.0
        %1086 = vmatpush1.msra.mxu0 0.0
        %1087 = vmatprep.subr.mxu0 0.0
        %1088 = vmatpush1.msra.mxu0 0.0
        %1089 = vmatprep.subr.mxu0 0.0
        %1090 = vmatpush1.msra.mxu0 0.0
        %1091 = vmatprep.subr.mxu0 0.0
        %1092 = vmatpush1.msra.mxu0 0.0
        %1093 = vmatprep.subr.mxu0 0.0
        %1094 = vmatpush1.msra.mxu0 0.0
        %1095 = vmatprep.subr.mxu0 0.0
        %1096 = vmatpush1.msra.mxu0 0.0
        %1097 = vmatprep.mubr.f32.mxu0 0.0
        %v1098 = vand.u32 %v850, 4294901760
        %v1099 = vsub.f32 %v850, %v1098
        %1100 = vmatmul.mubr.f32.gmra.mrb[0].mxu0 %v1099
        %v1101 = vpop.f32.mrb[0].mxu0
        %v1102 = vadd.f32 %v1020, %v1101
        %v1103 = vpop.f32.mrb[0].mxu0
        %1104 = vmatprep.mubr.f32.mxu0 0.0
        %v1105 = vand.u32 %v853, 4294901760
        %v1106 = vsub.f32 %v853, %v1105
        %1107 = vmatmul.mubr.f32.gmra.mrb[0].mxu0 %v1106
        %v1108 = vpop.f32.mrb[0].mxu0
        %v1109 = vadd.f32 %v1026, %v1108
        %v1110 = vpop.f32.mrb[0].mxu0
        %1111 = vdwg.mxu0
        %1112 = vmatprep.subr.mxu0 0.0
        %v1113 = vand.u32 %v338, 4294901760
        %1114 = vmatpush1.msra.mxu0 %v1113
        %1115 = vmatprep.subr.mxu0 0.0
        %v1116 = vand.u32 %v339, 4294901760
        %1117 = vmatpush1.msra.mxu0 %v1116
        %1118 = vmatprep.subr.mxu0 0.0
        %1119 = vmatpush1.msra.mxu0 0.0
        %1120 = vmatprep.subr.mxu0 0.0
        %1121 = vmatpush1.msra.mxu0 0.0
        %1122 = vmatprep.subr.mxu0 0.0
        %1123 = vmatpush1.msra.mxu0 0.0
        %1124 = vmatprep.subr.mxu0 0.0
        %1125 = vmatpush1.msra.mxu0 0.0
        %1126 = vmatprep.subr.mxu0 0.0
        %1127 = vmatpush1.msra.mxu0 0.0
        %1128 = vmatprep.subr.mxu0 0.0
        %1129 = vmatpush1.msra.mxu0 0.0
        %1130 = vmatprep.subr.mxu0 0.0
        %1131 = vmatpush1.msra.mxu0 0.0
        %1132 = vmatprep.subr.mxu0 0.0
        %1133 = vmatpush1.msra.mxu0 0.0
        %1134 = vmatprep.subr.mxu0 0.0
        %1135 = vmatpush1.msra.mxu0 0.0
        %1136 = vmatprep.subr.mxu0 0.0
        %1137 = vmatpush1.msra.mxu0 0.0
        %1138 = vmatprep.subr.mxu0 0.0
        %1139 = vmatpush1.msra.mxu0 0.0
        %1140 = vmatprep.subr.mxu0 0.0
        %1141 = vmatpush1.msra.mxu0 0.0
        %1142 = vmatprep.subr.mxu0 0.0
        %1143 = vmatpush1.msra.mxu0 0.0
        %1144 = vmatprep.subr.mxu0 0.0
        %1145 = vmatpush1.msra.mxu0 0.0
        %1146 = vmatprep.subr.mxu0 0.0
        %1147 = vmatpush1.msra.mxu0 0.0
        %1148 = vmatprep.subr.mxu0 0.0
        %1149 = vmatpush1.msra.mxu0 0.0
        %1150 = vmatprep.subr.mxu0 0.0
        %1151 = vmatpush1.msra.mxu0 0.0
        %1152 = vmatprep.subr.mxu0 0.0
        %1153 = vmatpush1.msra.mxu0 0.0
        %1154 = vmatprep.subr.mxu0 0.0
        %1155 = vmatpush1.msra.mxu0 0.0
        %1156 = vmatprep.subr.mxu0 0.0
        %1157 = vmatpush1.msra.mxu0 0.0
        %1158 = vmatprep.subr.mxu0 0.0
        %1159 = vmatpush1.msra.mxu0 0.0
        %1160 = vmatprep.subr.mxu0 0.0
        %1161 = vmatpush1.msra.mxu0 0.0
        %1162 = vmatprep.subr.mxu0 0.0
        %1163 = vmatpush1.msra.mxu0 0.0
        %1164 = vmatprep.subr.mxu0 0.0
        %1165 = vmatpush1.msra.mxu0 0.0
        %1166 = vmatprep.subr.mxu0 0.0
        %1167 = vmatpush1.msra.mxu0 0.0
        %1168 = vmatprep.subr.mxu0 0.0
        %1169 = vmatpush1.msra.mxu0 0.0
        %1170 = vmatprep.subr.mxu0 0.0
        %1171 = vmatpush1.msra.mxu0 0.0
        %1172 = vmatprep.subr.mxu0 0.0
        %1173 = vmatpush1.msra.mxu0 0.0
        %1174 = vmatprep.subr.mxu0 0.0
        %1175 = vmatpush1.msra.mxu0 0.0
        %1176 = vmatprep.subr.mxu0 0.0
        %1177 = vmatpush1.msra.mxu0 0.0
        %1178 = vmatprep.mubr.f32.mxu0 0.0
        %v1179 = vand.u32 %v850, 4294901760
        %v1180 = vsub.f32 %v850, %v1179
        %v1181 = vand.u32 %v1180, 4294901760
        %1182 = vmatmul.mubr.f32.gmra.mrb[0].mxu0 %v1181
        %v1183 = vpop.f32.mrb[0].mxu0
        %v1184 = vadd.f32 %v1102, %v1183
        %v1185 = vpop.f32.mrb[0].mxu0
        %1186 = vmatprep.mubr.f32.mxu0 0.0
        %v1187 = vand.u32 %v853, 4294901760
        %v1188 = vsub.f32 %v853, %v1187
        %v1189 = vand.u32 %v1188, 4294901760
        %1190 = vmatmul.mubr.f32.gmra.mrb[0].mxu0 %v1189
        %v1191 = vpop.f32.mrb[0].mxu0
        %v1192 = vadd.f32 %v1109, %v1191
        %v1193 = vpop.f32.mrb[0].mxu0
        %1194 = vdwg.mxu0
        %1195 = vmatprep.subr.mxu0 0.0
        %v1196 = vand.u32 %v338, 4294901760
        %v1197 = vsub.f32 %v338, %v1196
        %v1198 = vand.u32 %v1197, 4294901760
        %1199 = vmatpush1.msra.mxu0 %v1198
        %1200 = vmatprep.subr.mxu0 0.0
        %v1201 = vand.u32 %v339, 4294901760
        %v1202 = vsub.f32 %v339, %v1201
        %v1203 = vand.u32 %v1202, 4294901760
        %1204 = vmatpush1.msra.mxu0 %v1203
        %1205 = vmatprep.subr.mxu0 0.0
        %1206 = vmatpush1.msra.mxu0 0.0
        %1207 = vmatprep.subr.mxu0 0.0
        %1208 = vmatpush1.msra.mxu0 0.0
        %1209 = vmatprep.subr.mxu0 0.0
        %1210 = vmatpush1.msra.mxu0 0.0
        %1211 = vmatprep.subr.mxu0 0.0
        %1212 = vmatpush1.msra.mxu0 0.0
        %1213 = vmatprep.subr.mxu0 0.0
        %1214 = vmatpush1.msra.mxu0 0.0
        %1215 = vmatprep.subr.mxu0 0.0
        %1216 = vmatpush1.msra.mxu0 0.0
        %1217 = vmatprep.subr.mxu0 0.0
        %1218 = vmatpush1.msra.mxu0 0.0
        %1219 = vmatprep.subr.mxu0 0.0
        %1220 = vmatpush1.msra.mxu0 0.0
        %1221 = vmatprep.subr.mxu0 0.0
        %1222 = vmatpush1.msra.mxu0 0.0
        %1223 = vmatprep.subr.mxu0 0.0
        %1224 = vmatpush1.msra.mxu0 0.0
        %1225 = vmatprep.subr.mxu0 0.0
        %1226 = vmatpush1.msra.mxu0 0.0
        %1227 = vmatprep.subr.mxu0 0.0
        %1228 = vmatpush1.msra.mxu0 0.0
        %1229 = vmatprep.subr.mxu0 0.0
        %1230 = vmatpush1.msra.mxu0 0.0
        %1231 = vmatprep.subr.mxu0 0.0
        %1232 = vmatpush1.msra.mxu0 0.0
        %1233 = vmatprep.subr.mxu0 0.0
        %1234 = vmatpush1.msra.mxu0 0.0
        %1235 = vmatprep.subr.mxu0 0.0
        %1236 = vmatpush1.msra.mxu0 0.0
        %1237 = vmatprep.subr.mxu0 0.0
        %1238 = vmatpush1.msra.mxu0 0.0
        %1239 = vmatprep.subr.mxu0 0.0
        %1240 = vmatpush1.msra.mxu0 0.0
        %1241 = vmatprep.subr.mxu0 0.0
        %1242 = vmatpush1.msra.mxu0 0.0
        %1243 = vmatprep.subr.mxu0 0.0
        %1244 = vmatpush1.msra.mxu0 0.0
        %1245 = vmatprep.subr.mxu0 0.0
        %1246 = vmatpush1.msra.mxu0 0.0
        %1247 = vmatprep.subr.mxu0 0.0
        %1248 = vmatpush1.msra.mxu0 0.0
        %1249 = vmatprep.subr.mxu0 0.0
        %1250 = vmatpush1.msra.mxu0 0.0
        %1251 = vmatprep.subr.mxu0 0.0
        %1252 = vmatpush1.msra.mxu0 0.0
        %1253 = vmatprep.subr.mxu0 0.0
        %1254 = vmatpush1.msra.mxu0 0.0
        %1255 = vmatprep.subr.mxu0 0.0
        %1256 = vmatpush1.msra.mxu0 0.0
        %1257 = vmatprep.subr.mxu0 0.0
        %1258 = vmatpush1.msra.mxu0 0.0
        %1259 = vmatprep.subr.mxu0 0.0
        %1260 = vmatpush1.msra.mxu0 0.0
        %1261 = vmatprep.subr.mxu0 0.0
        %1262 = vmatpush1.msra.mxu0 0.0
        %1263 = vmatprep.subr.mxu0 0.0
        %1264 = vmatpush1.msra.mxu0 0.0
        %1265 = vmatprep.mubr.f32.mxu0 0.0
        %v1266 = vand.u32 %v850, 4294901760
        %1267 = vmatmul.mubr.f32.gmra.mrb[0].mxu0 %v1266
        %v1268 = vpop.f32.mrb[0].mxu0
        %v1269 = vadd.f32 %v1184, %v1268
        %v1270 = vpop.f32.mrb[0].mxu0
        %1271 = vmatprep.mubr.f32.mxu0 0.0
        %v1272 = vand.u32 %v853, 4294901760
        %1273 = vmatmul.mubr.f32.gmra.mrb[0].mxu0 %v1272
        %v1274 = vpop.f32.mrb[0].mxu0
        %v1275 = vadd.f32 %v1192, %v1274
        %v1276 = vpop.f32.mrb[0].mxu0
        %1277 = vdwg.mxu0
        %1278 = vmatprep.subr.mxu0 0.0
        %v1279 = vand.u32 %v338, 4294901760
        %1280 = vmatpush1.msra.mxu0 %v1279
        %1281 = vmatprep.subr.mxu0 0.0
        %v1282 = vand.u32 %v339, 4294901760
        %1283 = vmatpush1.msra.mxu0 %v1282
        %1284 = vmatprep.subr.mxu0 0.0
        %1285 = vmatpush1.msra.mxu0 0.0
        %1286 = vmatprep.subr.mxu0 0.0
        %1287 = vmatpush1.msra.mxu0 0.0
        %1288 = vmatprep.subr.mxu0 0.0
        %1289 = vmatpush1.msra.mxu0 0.0
        %1290 = vmatprep.subr.mxu0 0.0
        %1291 = vmatpush1.msra.mxu0 0.0
        %1292 = vmatprep.subr.mxu0 0.0
        %1293 = vmatpush1.msra.mxu0 0.0
        %1294 = vmatprep.subr.mxu0 0.0
        %1295 = vmatpush1.msra.mxu0 0.0
        %1296 = vmatprep.subr.mxu0 0.0
        %1297 = vmatpush1.msra.mxu0 0.0
        %1298 = vmatprep.subr.mxu0 0.0
        %1299 = vmatpush1.msra.mxu0 0.0
        %1300 = vmatprep.subr.mxu0 0.0
        %1301 = vmatpush1.msra.mxu0 0.0
        %1302 = vmatprep.subr.mxu0 0.0
        %1303 = vmatpush1.msra.mxu0 0.0
        %1304 = vmatprep.subr.mxu0 0.0
        %1305 = vmatpush1.msra.mxu0 0.0
        %1306 = vmatprep.subr.mxu0 0.0
        %1307 = vmatpush1.msra.mxu0 0.0
        %1308 = vmatprep.subr.mxu0 0.0
        %1309 = vmatpush1.msra.mxu0 0.0
        %1310 = vmatprep.subr.mxu0 0.0
        %1311 = vmatpush1.msra.mxu0 0.0
        %1312 = vmatprep.subr.mxu0 0.0
        %1313 = vmatpush1.msra.mxu0 0.0
        %1314 = vmatprep.subr.mxu0 0.0
        %1315 = vmatpush1.msra.mxu0 0.0
        %1316 = vmatprep.subr.mxu0 0.0
        %1317 = vmatpush1.msra.mxu0 0.0
        %1318 = vmatprep.subr.mxu0 0.0
        %1319 = vmatpush1.msra.mxu0 0.0
        %1320 = vmatprep.subr.mxu0 0.0
        %1321 = vmatpush1.msra.mxu0 0.0
        %1322 = vmatprep.subr.mxu0 0.0
        %1323 = vmatpush1.msra.mxu0 0.0
        %1324 = vmatprep.subr.mxu0 0.0
        %1325 = vmatpush1.msra.mxu0 0.0
        %1326 = vmatprep.subr.mxu0 0.0
        %1327 = vmatpush1.msra.mxu0 0.0
        %1328 = vmatprep.subr.mxu0 0.0
        %1329 = vmatpush1.msra.mxu0 0.0
        %1330 = vmatprep.subr.mxu0 0.0
        %1331 = vmatpush1.msra.mxu0 0.0
        %1332 = vmatprep.subr.mxu0 0.0
        %1333 = vmatpush1.msra.mxu0 0.0
        %1334 = vmatprep.subr.mxu0 0.0
        %1335 = vmatpush1.msra.mxu0 0.0
        %1336 = vmatprep.subr.mxu0 0.0
        %1337 = vmatpush1.msra.mxu0 0.0
        %1338 = vmatprep.subr.mxu0 0.0
        %1339 = vmatpush1.msra.mxu0 0.0
        %1340 = vmatprep.subr.mxu0 0.0
        %1341 = vmatpush1.msra.mxu0 0.0
        %1342 = vmatprep.subr.mxu0 0.0
        %1343 = vmatpush1.msra.mxu0 0.0
        %1344 = vmatprep.mubr.f32.mxu0 0.0
        %v1345 = vand.u32 %v850, 4294901760
        %1346 = vmatmul.mubr.f32.gmra.mrb[0].mxu0 %v1345
        %v1347 = vpop.f32.mrb[0].mxu0
        %v1348 = vadd.f32 %v1269, %v1347
        %v1349 = vpop.f32.mrb[0].mxu0
        %1350 = vmatprep.mubr.f32.mxu0 0.0
        %v1351 = vand.u32 %v853, 4294901760
        %1352 = vmatmul.mubr.f32.gmra.mrb[0].mxu0 %v1351
        %v1353 = vpop.f32.mrb[0].mxu0
        %v1354 = vadd.f32 %v1275, %v1353
        %v1355 = vpop.f32.mrb[0].mxu0
        %1356 = vdwg.mxu0
        %v1357 = vadd.f32 %v840, %v1348
        %v1358 = vadd.f32 %v846, %v1354
        %v1359 = vsub.f32 %v1357, %v338
        %v1360 = vsub.f32 %v1358, %v339
        %v1362 = vsel %vm340, %v1359, 0
        %v1365 = vsel %vm340, %v1360, 0
        %1367 = vmatprep.subr.mxu0 0.0
        %v1368 = vand.u32 %v332, 4294901760
        %1369 = vmatpush1.msra.mxu0 %v1368
        %1370 = vmatprep.subr.mxu0 0.0
        %v1371 = vand.u32 %v333, 4294901760
        %1372 = vmatpush1.msra.mxu0 %v1371
        %1373 = vmatprep.subr.mxu0 0.0
        %1374 = vmatpush1.msra.mxu0 0.0
        %1375 = vmatprep.subr.mxu0 0.0
        %1376 = vmatpush1.msra.mxu0 0.0
        %1377 = vmatprep.subr.mxu0 0.0
        %1378 = vmatpush1.msra.mxu0 0.0
        %1379 = vmatprep.subr.mxu0 0.0
        %1380 = vmatpush1.msra.mxu0 0.0
        %1381 = vmatprep.subr.mxu0 0.0
        %1382 = vmatpush1.msra.mxu0 0.0
        %1383 = vmatprep.subr.mxu0 0.0
        %1384 = vmatpush1.msra.mxu0 0.0
        %1385 = vmatprep.subr.mxu0 0.0
        %1386 = vmatpush1.msra.mxu0 0.0
        %1387 = vmatprep.subr.mxu0 0.0
        %1388 = vmatpush1.msra.mxu0 0.0
        %1389 = vmatprep.subr.mxu0 0.0
        %1390 = vmatpush1.msra.mxu0 0.0
        %1391 = vmatprep.subr.mxu0 0.0
        %1392 = vmatpush1.msra.mxu0 0.0
        %1393 = vmatprep.subr.mxu0 0.0
        %1394 = vmatpush1.msra.mxu0 0.0
        %1395 = vmatprep.subr.mxu0 0.0
        %1396 = vmatpush1.msra.mxu0 0.0
        %1397 = vmatprep.subr.mxu0 0.0
        %1398 = vmatpush1.msra.mxu0 0.0
        %1399 = vmatprep.subr.mxu0 0.0
        %1400 = vmatpush1.msra.mxu0 0.0
        %1401 = vmatprep.subr.mxu0 0.0
        %1402 = vmatpush1.msra.mxu0 0.0
        %1403 = vmatprep.subr.mxu0 0.0
        %1404 = vmatpush1.msra.mxu0 0.0
        %1405 = vmatprep.subr.mxu0 0.0
        %1406 = vmatpush1.msra.mxu0 0.0
        %1407 = vmatprep.subr.mxu0 0.0
        %1408 = vmatpush1.msra.mxu0 0.0
        %1409 = vmatprep.subr.mxu0 0.0
        %1410 = vmatpush1.msra.mxu0 0.0
        %1411 = vmatprep.subr.mxu0 0.0
        %1412 = vmatpush1.msra.mxu0 0.0
        %1413 = vmatprep.subr.mxu0 0.0
        %1414 = vmatpush1.msra.mxu0 0.0
        %1415 = vmatprep.subr.mxu0 0.0
        %1416 = vmatpush1.msra.mxu0 0.0
        %1417 = vmatprep.subr.mxu0 0.0
        %1418 = vmatpush1.msra.mxu0 0.0
        %1419 = vmatprep.subr.mxu0 0.0
        %1420 = vmatpush1.msra.mxu0 0.0
        %1421 = vmatprep.subr.mxu0 0.0
        %1422 = vmatpush1.msra.mxu0 0.0
        %1423 = vmatprep.subr.mxu0 0.0
        %1424 = vmatpush1.msra.mxu0 0.0
        %1425 = vmatprep.subr.mxu0 0.0
        %1426 = vmatpush1.msra.mxu0 0.0
        %1427 = vmatprep.subr.mxu0 0.0
        %1428 = vmatpush1.msra.mxu0 0.0
        %1429 = vmatprep.subr.mxu0 0.0
        %1430 = vmatpush1.msra.mxu0 0.0
        %1431 = vmatprep.subr.mxu0 0.0
        %1432 = vmatpush1.msra.mxu0 0.0
        %1433 = vmatprep.mubr.f32.mxu0 0.0
        %v1434 = vand.u32 %v1362, 4294901760
        %v1435 = vsub.f32 %v1362, %v1434
        %v1436 = vand.u32 %v1435, 4294901760
        %v1437 = vsub.f32 %v1435, %v1436
        %v1438 = vand.u32 %v1437, 4294901760
        %1439 = vmatmul.mubr.f32.gmra.mrb[0].mxu0 %v1438
        %v1440 = vpop.f32.mrb[0].mxu0
        %v1441 = vadd.f32 0.66, %v1440
        %v1442 = vpop.f32.mrb[0].mxu0
        %1443 = vmatprep.mubr.f32.mxu0 0.0
        %v1444 = vand.u32 %v1365, 4294901760
        %v1445 = vsub.f32 %v1365, %v1444
        %v1446 = vand.u32 %v1445, 4294901760
        %v1447 = vsub.f32 %v1445, %v1446
        %v1448 = vand.u32 %v1447, 4294901760
        %1449 = vmatmul.mubr.f32.gmra.mrb[0].mxu0 %v1448
        %v1450 = vpop.f32.mrb[0].mxu0
        %v1451 = vadd.f32 0.66, %v1450
        %v1452 = vpop.f32.mrb[0].mxu0
        %1453 = vdwg.mxu0
        %1454 = vmatprep.subr.mxu0 0.0
        %v1455 = vand.u32 %v332, 4294901760
        %v1456 = vsub.f32 %v332, %v1455
        %v1457 = vand.u32 %v1456, 4294901760
        %v1458 = vsub.f32 %v1456, %v1457
        %v1459 = vand.u32 %v1458, 4294901760
        %1460 = vmatpush1.msra.mxu0 %v1459
        %1461 = vmatprep.subr.mxu0 0.0
        %v1462 = vand.u32 %v333, 4294901760
        %v1463 = vsub.f32 %v333, %v1462
        %v1464 = vand.u32 %v1463, 4294901760
        %v1465 = vsub.f32 %v1463, %v1464
        %v1466 = vand.u32 %v1465, 4294901760
        %1467 = vmatpush1.msra.mxu0 %v1466
        %1468 = vmatprep.subr.mxu0 0.0
        %1469 = vmatpush1.msra.mxu0 0.0
        %1470 = vmatprep.subr.mxu0 0.0
        %1471 = vmatpush1.msra.mxu0 0.0
        %1472 = vmatprep.subr.mxu0 0.0
        %1473 = vmatpush1.msra.mxu0 0.0
        %1474 = vmatprep.subr.mxu0 0.0
        %1475 = vmatpush1.msra.mxu0 0.0
        %1476 = vmatprep.subr.mxu0 0.0
        %1477 = vmatpush1.msra.mxu0 0.0
        %1478 = vmatprep.subr.mxu0 0.0
        %1479 = vmatpush1.msra.mxu0 0.0
        %1480 = vmatprep.subr.mxu0 0.0
        %1481 = vmatpush1.msra.mxu0 0.0
        %1482 = vmatprep.subr.mxu0 0.0
        %1483 = vmatpush1.msra.mxu0 0.0
        %1484 = vmatprep.subr.mxu0 0.0
        %1485 = vmatpush1.msra.mxu0 0.0
        %1486 = vmatprep.subr.mxu0 0.0
        %1487 = vmatpush1.msra.mxu0 0.0
        %1488 = vmatprep.subr.mxu0 0.0
        %1489 = vmatpush1.msra.mxu0 0.0
        %1490 = vmatprep.subr.mxu0 0.0
        %1491 = vmatpush1.msra.mxu0 0.0
        %1492 = vmatprep.subr.mxu0 0.0
        %1493 = vmatpush1.msra.mxu0 0.0
        %1494 = vmatprep.subr.mxu0 0.0
        %1495 = vmatpush1.msra.mxu0 0.0
        %1496 = vmatprep.subr.mxu0 0.0
        %1497 = vmatpush1.msra.mxu0 0.0
        %1498 = vmatprep.subr.mxu0 0.0
        %1499 = vmatpush1.msra.mxu0 0.0
        %1500 = vmatprep.subr.mxu0 0.0
        %1501 = vmatpush1.msra.mxu0 0.0
        %1502 = vmatprep.subr.mxu0 0.0
        %1503 = vmatpush1.msra.mxu0 0.0
        %1504 = vmatprep.subr.mxu0 0.0
        %1505 = vmatpush1.msra.mxu0 0.0
        %1506 = vmatprep.subr.mxu0 0.0
        %1507 = vmatpush1.msra.mxu0 0.0
        %1508 = vmatprep.subr.mxu0 0.0
        %1509 = vmatpush1.msra.mxu0 0.0
        %1510 = vmatprep.subr.mxu0 0.0
        %1511 = vmatpush1.msra.mxu0 0.0
        %1512 = vmatprep.subr.mxu0 0.0
        %1513 = vmatpush1.msra.mxu0 0.0
        %1514 = vmatprep.subr.mxu0 0.0
        %1515 = vmatpush1.msra.mxu0 0.0
        %1516 = vmatprep.subr.mxu0 0.0
        %1517 = vmatpush1.msra.mxu0 0.0
        %1518 = vmatprep.subr.mxu0 0.0
        %1519 = vmatpush1.msra.mxu0 0.0
        %1520 = vmatprep.subr.mxu0 0.0
        %1521 = vmatpush1.msra.mxu0 0.0
        %1522 = vmatprep.subr.mxu0 0.0
        %1523 = vmatpush1.msra.mxu0 0.0
        %1524 = vmatprep.subr.mxu0 0.0
        %1525 = vmatpush1.msra.mxu0 0.0
        %1526 = vmatprep.subr.mxu0 0.0
        %1527 = vmatpush1.msra.mxu0 0.0
        %1528 = vmatprep.mubr.f32.mxu0 0.0
        %v1529 = vand.u32 %v1362, 4294901760
        %1530 = vmatmul.mubr.f32.gmra.mrb[0].mxu0 %v1529
        %v1531 = vpop.f32.mrb[0].mxu0
        %v1532 = vadd.f32 %v1441, %v1531
        %v1533 = vpop.f32.mrb[0].mxu0
        %1534 = vmatprep.mubr.f32.mxu0 0.0
        %v1535 = vand.u32 %v1365, 4294901760
        %1536 = vmatmul.mubr.f32.gmra.mrb[0].mxu0 %v1535
        %v1537 = vpop.f32.mrb[0].mxu0
        %v1538 = vadd.f32 %v1451, %v1537
        %v1539 = vpop.f32.mrb[0].mxu0
        %1540 = vdwg.mxu0
        %1541 = vmatprep.subr.mxu0 0.0
        %v1542 = vand.u32 %v332, 4294901760
        %v1543 = vsub.f32 %v332, %v1542
        %1544 = vmatpush1.msra.mxu0 %v1543
        %1545 = vmatprep.subr.mxu0 0.0
        %v1546 = vand.u32 %v333, 4294901760
        %v1547 = vsub.f32 %v333, %v1546
        %1548 = vmatpush1.msra.mxu0 %v1547
        %1549 = vmatprep.subr.mxu0 0.0
        %1550 = vmatpush1.msra.mxu0 0.0
        %1551 = vmatprep.subr.mxu0 0.0
        %1552 = vmatpush1.msra.mxu0 0.0
        %1553 = vmatprep.subr.mxu0 0.0
        %1554 = vmatpush1.msra.mxu0 0.0
        %1555 = vmatprep.subr.mxu0 0.0
        %1556 = vmatpush1.msra.mxu0 0.0
        %1557 = vmatprep.subr.mxu0 0.0
        %1558 = vmatpush1.msra.mxu0 0.0
        %1559 = vmatprep.subr.mxu0 0.0
        %1560 = vmatpush1.msra.mxu0 0.0
        %1561 = vmatprep.subr.mxu0 0.0
        %1562 = vmatpush1.msra.mxu0 0.0
        %1563 = vmatprep.subr.mxu0 0.0
        %1564 = vmatpush1.msra.mxu0 0.0
        %1565 = vmatprep.subr.mxu0 0.0
        %1566 = vmatpush1.msra.mxu0 0.0
        %1567 = vmatprep.subr.mxu0 0.0
        %1568 = vmatpush1.msra.mxu0 0.0
        %1569 = vmatprep.subr.mxu0 0.0
        %1570 = vmatpush1.msra.mxu0 0.0
        %1571 = vmatprep.subr.mxu0 0.0
        %1572 = vmatpush1.msra.mxu0 0.0
        %1573 = vmatprep.subr.mxu0 0.0
        %1574 = vmatpush1.msra.mxu0 0.0
        %1575 = vmatprep.subr.mxu0 0.0
        %1576 = vmatpush1.msra.mxu0 0.0
        %1577 = vmatprep.subr.mxu0 0.0
        %1578 = vmatpush1.msra.mxu0 0.0
        %1579 = vmatprep.subr.mxu0 0.0
        %1580 = vmatpush1.msra.mxu0 0.0
        %1581 = vmatprep.subr.mxu0 0.0
        %1582 = vmatpush1.msra.mxu0 0.0
        %1583 = vmatprep.subr.mxu0 0.0
        %1584 = vmatpush1.msra.mxu0 0.0
        %1585 = vmatprep.subr.mxu0 0.0
        %1586 = vmatpush1.msra.mxu0 0.0
        %1587 = vmatprep.subr.mxu0 0.0
        %1588 = vmatpush1.msra.mxu0 0.0
        %1589 = vmatprep.subr.mxu0 0.0
        %1590 = vmatpush1.msra.mxu0 0.0
        %1591 = vmatprep.subr.mxu0 0.0
        %1592 = vmatpush1.msra.mxu0 0.0
        %1593 = vmatprep.subr.mxu0 0.0
        %1594 = vmatpush1.msra.mxu0 0.0
        %1595 = vmatprep.subr.mxu0 0.0
        %1596 = vmatpush1.msra.mxu0 0.0
        %1597 = vmatprep.subr.mxu0 0.0
        %1598 = vmatpush1.msra.mxu0 0.0
        %1599 = vmatprep.subr.mxu0 0.0
        %1600 = vmatpush1.msra.mxu0 0.0
        %1601 = vmatprep.subr.mxu0 0.0
        %1602 = vmatpush1.msra.mxu0 0.0
        %1603 = vmatprep.subr.mxu0 0.0
        %1604 = vmatpush1.msra.mxu0 0.0
        %1605 = vmatprep.subr.mxu0 0.0
        %1606 = vmatpush1.msra.mxu0 0.0
        %1607 = vmatprep.subr.mxu0 0.0
        %1608 = vmatpush1.msra.mxu0 0.0
        %1609 = vmatprep.mubr.f32.mxu0 0.0
        %v1610 = vand.u32 %v1362, 4294901760
        %v1611 = vsub.f32 %v1362, %v1610
        %1612 = vmatmul.mubr.f32.gmra.mrb[0].mxu0 %v1611
        %v1613 = vpop.f32.mrb[0].mxu0
        %v1614 = vadd.f32 %v1532, %v1613
        %v1615 = vpop.f32.mrb[0].mxu0
        %1616 = vmatprep.mubr.f32.mxu0 0.0
        %v1617 = vand.u32 %v1365, 4294901760
        %v1618 = vsub.f32 %v1365, %v1617
        %1619 = vmatmul.mubr.f32.gmra.mrb[0].mxu0 %v1618
        %v1620 = vpop.f32.mrb[0].mxu0
        %v1621 = vadd.f32 %v1538, %v1620
        %v1622 = vpop.f32.mrb[0].mxu0
        %1623 = vdwg.mxu0
        %1624 = vmatprep.subr.mxu0 0.0
        %v1625 = vand.u32 %v332, 4294901760
        %1626 = vmatpush1.msra.mxu0 %v1625
        %1627 = vmatprep.subr.mxu0 0.0
        %v1628 = vand.u32 %v333, 4294901760
        %1629 = vmatpush1.msra.mxu0 %v1628
        %1630 = vmatprep.subr.mxu0 0.0
        %1631 = vmatpush1.msra.mxu0 0.0
        %1632 = vmatprep.subr.mxu0 0.0
        %1633 = vmatpush1.msra.mxu0 0.0
        %1634 = vmatprep.subr.mxu0 0.0
        %1635 = vmatpush1.msra.mxu0 0.0
        %1636 = vmatprep.subr.mxu0 0.0
        %1637 = vmatpush1.msra.mxu0 0.0
        %1638 = vmatprep.subr.mxu0 0.0
        %1639 = vmatpush1.msra.mxu0 0.0
        %1640 = vmatprep.subr.mxu0 0.0
        %1641 = vmatpush1.msra.mxu0 0.0
        %1642 = vmatprep.subr.mxu0 0.0
        %1643 = vmatpush1.msra.mxu0 0.0
        %1644 = vmatprep.subr.mxu0 0.0
        %1645 = vmatpush1.msra.mxu0 0.0
        %1646 = vmatprep.subr.mxu0 0.0
        %1647 = vmatpush1.msra.mxu0 0.0
        %1648 = vmatprep.subr.mxu0 0.0
        %1649 = vmatpush1.msra.mxu0 0.0
        %1650 = vmatprep.subr.mxu0 0.0
        %1651 = vmatpush1.msra.mxu0 0.0
        %1652 = vmatprep.subr.mxu0 0.0
        %1653 = vmatpush1.msra.mxu0 0.0
        %1654 = vmatprep.subr.mxu0 0.0
        %1655 = vmatpush1.msra.mxu0 0.0
        %1656 = vmatprep.subr.mxu0 0.0
        %1657 = vmatpush1.msra.mxu0 0.0
        %1658 = vmatprep.subr.mxu0 0.0
        %1659 = vmatpush1.msra.mxu0 0.0
        %1660 = vmatprep.subr.mxu0 0.0
        %1661 = vmatpush1.msra.mxu0 0.0
        %1662 = vmatprep.subr.mxu0 0.0
        %1663 = vmatpush1.msra.mxu0 0.0
        %1664 = vmatprep.subr.mxu0 0.0
        %1665 = vmatpush1.msra.mxu0 0.0
        %1666 = vmatprep.subr.mxu0 0.0
        %1667 = vmatpush1.msra.mxu0 0.0
        %1668 = vmatprep.subr.mxu0 0.0
        %1669 = vmatpush1.msra.mxu0 0.0
        %1670 = vmatprep.subr.mxu0 0.0
        %1671 = vmatpush1.msra.mxu0 0.0
        %1672 = vmatprep.subr.mxu0 0.0
        %1673 = vmatpush1.msra.mxu0 0.0
        %1674 = vmatprep.subr.mxu0 0.0
        %1675 = vmatpush1.msra.mxu0 0.0
        %1676 = vmatprep.subr.mxu0 0.0
        %1677 = vmatpush1.msra.mxu0 0.0
        %1678 = vmatprep.subr.mxu0 0.0
        %1679 = vmatpush1.msra.mxu0 0.0
        %1680 = vmatprep.subr.mxu0 0.0
        %1681 = vmatpush1.msra.mxu0 0.0
        %1682 = vmatprep.subr.mxu0 0.0
        %1683 = vmatpush1.msra.mxu0 0.0
        %1684 = vmatprep.subr.mxu0 0.0
        %1685 = vmatpush1.msra.mxu0 0.0
        %1686 = vmatprep.subr.mxu0 0.0
        %1687 = vmatpush1.msra.mxu0 0.0
        %1688 = vmatprep.subr.mxu0 0.0
        %1689 = vmatpush1.msra.mxu0 0.0
        %1690 = vmatprep.mubr.f32.mxu0 0.0
        %v1691 = vand.u32 %v1362, 4294901760
        %v1692 = vsub.f32 %v1362, %v1691
        %v1693 = vand.u32 %v1692, 4294901760
        %1694 = vmatmul.mubr.f32.gmra.mrb[0].mxu0 %v1693
        %v1695 = vpop.f32.mrb[0].mxu0
        %v1696 = vadd.f32 %v1614, %v1695
        %v1697 = vpop.f32.mrb[0].mxu0
        %1698 = vmatprep.mubr.f32.mxu0 0.0
        %v1699 = vand.u32 %v1365, 4294901760
        %v1700 = vsub.f32 %v1365, %v1699
        %v1701 = vand.u32 %v1700, 4294901760
        %1702 = vmatmul.mubr.f32.gmra.mrb[0].mxu0 %v1701
        %v1703 = vpop.f32.mrb[0].mxu0
        %v1704 = vadd.f32 %v1621, %v1703
        %v1705 = vpop.f32.mrb[0].mxu0
        %1706 = vdwg.mxu0
        %1707 = vmatprep.subr.mxu0 0.0
        %v1708 = vand.u32 %v332, 4294901760
        %v1709 = vsub.f32 %v332, %v1708
        %v1710 = vand.u32 %v1709, 4294901760
        %1711 = vmatpush1.msra.mxu0 %v1710
        %1712 = vmatprep.subr.mxu0 0.0
        %v1713 = vand.u32 %v333, 4294901760
        %v1714 = vsub.f32 %v333, %v1713
        %v1715 = vand.u32 %v1714, 4294901760
        %1716 = vmatpush1.msra.mxu0 %v1715
        %1717 = vmatprep.subr.mxu0 0.0
        %1718 = vmatpush1.msra.mxu0 0.0
        %1719 = vmatprep.subr.mxu0 0.0
        %1720 = vmatpush1.msra.mxu0 0.0
        %1721 = vmatprep.subr.mxu0 0.0
        %1722 = vmatpush1.msra.mxu0 0.0
        %1723 = vmatprep.subr.mxu0 0.0
        %1724 = vmatpush1.msra.mxu0 0.0
        %1725 = vmatprep.subr.mxu0 0.0
        %1726 = vmatpush1.msra.mxu0 0.0
        %1727 = vmatprep.subr.mxu0 0.0
        %1728 = vmatpush1.msra.mxu0 0.0
        %1729 = vmatprep.subr.mxu0 0.0
        %1730 = vmatpush1.msra.mxu0 0.0
        %1731 = vmatprep.subr.mxu0 0.0
        %1732 = vmatpush1.msra.mxu0 0.0
        %1733 = vmatprep.subr.mxu0 0.0
        %1734 = vmatpush1.msra.mxu0 0.0
        %1735 = vmatprep.subr.mxu0 0.0
        %1736 = vmatpush1.msra.mxu0 0.0
        %1737 = vmatprep.subr.mxu0 0.0
        %1738 = vmatpush1.msra.mxu0 0.0
        %1739 = vmatprep.subr.mxu0 0.0
        %1740 = vmatpush1.msra.mxu0 0.0
        %1741 = vmatprep.subr.mxu0 0.0
        %1742 = vmatpush1.msra.mxu0 0.0
        %1743 = vmatprep.subr.mxu0 0.0
        %1744 = vmatpush1.msra.mxu0 0.0
        %1745 = vmatprep.subr.mxu0 0.0
        %1746 = vmatpush1.msra.mxu0 0.0
        %1747 = vmatprep.subr.mxu0 0.0
        %1748 = vmatpush1.msra.mxu0 0.0
        %1749 = vmatprep.subr.mxu0 0.0
        %1750 = vmatpush1.msra.mxu0 0.0
        %1751 = vmatprep.subr.mxu0 0.0
        %1752 = vmatpush1.msra.mxu0 0.0
        %1753 = vmatprep.subr.mxu0 0.0
        %1754 = vmatpush1.msra.mxu0 0.0
        %1755 = vmatprep.subr.mxu0 0.0
        %1756 = vmatpush1.msra.mxu0 0.0
        %1757 = vmatprep.subr.mxu0 0.0
        %1758 = vmatpush1.msra.mxu0 0.0
        %1759 = vmatprep.subr.mxu0 0.0
        %1760 = vmatpush1.msra.mxu0 0.0
        %1761 = vmatprep.subr.mxu0 0.0
        %1762 = vmatpush1.msra.mxu0 0.0
        %1763 = vmatprep.subr.mxu0 0.0
        %1764 = vmatpush1.msra.mxu0 0.0
        %1765 = vmatprep.subr.mxu0 0.0
        %1766 = vmatpush1.msra.mxu0 0.0
        %1767 = vmatprep.subr.mxu0 0.0
        %1768 = vmatpush1.msra.mxu0 0.0
        %1769 = vmatprep.subr.mxu0 0.0
        %1770 = vmatpush1.msra.mxu0 0.0
        %1771 = vmatprep.subr.mxu0 0.0
        %1772 = vmatpush1.msra.mxu0 0.0
        %1773 = vmatprep.subr.mxu0 0.0
        %1774 = vmatpush1.msra.mxu0 0.0
        %1775 = vmatprep.subr.mxu0 0.0
        %1776 = vmatpush1.msra.mxu0 0.0
        %1777 = vmatprep.mubr.f32.mxu0 0.0
        %v1778 = vand.u32 %v1362, 4294901760
        %1779 = vmatmul.mubr.f32.gmra.mrb[0].mxu0 %v1778
        %v1780 = vpop.f32.mrb[0].mxu0
        %v1781 = vadd.f32 %v1696, %v1780
        %v1782 = vpop.f32.mrb[0].mxu0
        %1783 = vmatprep.mubr.f32.mxu0 0.0
        %v1784 = vand.u32 %v1365, 4294901760
        %1785 = vmatmul.mubr.f32.gmra.mrb[0].mxu0 %v1784
        %v1786 = vpop.f32.mrb[0].mxu0
        %v1787 = vadd.f32 %v1704, %v1786
        %v1788 = vpop.f32.mrb[0].mxu0
        %1789 = vdwg.mxu0
        %1790 = vmatprep.subr.mxu0 0.0
        %v1791 = vand.u32 %v332, 4294901760
        %1792 = vmatpush1.msra.mxu0 %v1791
        %1793 = vmatprep.subr.mxu0 0.0
        %v1794 = vand.u32 %v333, 4294901760
        %1795 = vmatpush1.msra.mxu0 %v1794
        %1796 = vmatprep.subr.mxu0 0.0
        %1797 = vmatpush1.msra.mxu0 0.0
        %1798 = vmatprep.subr.mxu0 0.0
        %1799 = vmatpush1.msra.mxu0 0.0
        %1800 = vmatprep.subr.mxu0 0.0
        %1801 = vmatpush1.msra.mxu0 0.0
        %1802 = vmatprep.subr.mxu0 0.0
        %1803 = vmatpush1.msra.mxu0 0.0
        %1804 = vmatprep.subr.mxu0 0.0
        %1805 = vmatpush1.msra.mxu0 0.0
        %1806 = vmatprep.subr.mxu0 0.0
        %1807 = vmatpush1.msra.mxu0 0.0
        %1808 = vmatprep.subr.mxu0 0.0
        %1809 = vmatpush1.msra.mxu0 0.0
        %1810 = vmatprep.subr.mxu0 0.0
        %1811 = vmatpush1.msra.mxu0 0.0
        %1812 = vmatprep.subr.mxu0 0.0
        %1813 = vmatpush1.msra.mxu0 0.0
        %1814 = vmatprep.subr.mxu0 0.0
        %1815 = vmatpush1.msra.mxu0 0.0
        %1816 = vmatprep.subr.mxu0 0.0
        %1817 = vmatpush1.msra.mxu0 0.0
        %1818 = vmatprep.subr.mxu0 0.0
        %1819 = vmatpush1.msra.mxu0 0.0
        %1820 = vmatprep.subr.mxu0 0.0
        %1821 = vmatpush1.msra.mxu0 0.0
        %1822 = vmatprep.subr.mxu0 0.0
        %1823 = vmatpush1.msra.mxu0 0.0
        %1824 = vmatprep.subr.mxu0 0.0
        %1825 = vmatpush1.msra.mxu0 0.0
        %1826 = vmatprep.subr.mxu0 0.0
        %1827 = vmatpush1.msra.mxu0 0.0
        %1828 = vmatprep.subr.mxu0 0.0
        %1829 = vmatpush1.msra.mxu0 0.0
        %1830 = vmatprep.subr.mxu0 0.0
        %1831 = vmatpush1.msra.mxu0 0.0
        %1832 = vmatprep.subr.mxu0 0.0
        %1833 = vmatpush1.msra.mxu0 0.0
        %1834 = vmatprep.subr.mxu0 0.0
        %1835 = vmatpush1.msra.mxu0 0.0
        %1836 = vmatprep.subr.mxu0 0.0
        %1837 = vmatpush1.msra.mxu0 0.0
        %1838 = vmatprep.subr.mxu0 0.0
        %1839 = vmatpush1.msra.mxu0 0.0
        %1840 = vmatprep.subr.mxu0 0.0
        %1841 = vmatpush1.msra.mxu0 0.0
        %1842 = vmatprep.subr.mxu0 0.0
        %1843 = vmatpush1.msra.mxu0 0.0
        %1844 = vmatprep.subr.mxu0 0.0
        %1845 = vmatpush1.msra.mxu0 0.0
        %1846 = vmatprep.subr.mxu0 0.0
        %1847 = vmatpush1.msra.mxu0 0.0
        %1848 = vmatprep.subr.mxu0 0.0
        %1849 = vmatpush1.msra.mxu0 0.0
        %1850 = vmatprep.subr.mxu0 0.0
        %1851 = vmatpush1.msra.mxu0 0.0
        %1852 = vmatprep.subr.mxu0 0.0
        %1853 = vmatpush1.msra.mxu0 0.0
        %1854 = vmatprep.subr.mxu0 0.0
        %1855 = vmatpush1.msra.mxu0 0.0
        %1856 = vmatprep.mubr.f32.mxu0 0.0
        %v1857 = vand.u32 %v1362, 4294901760
        %1858 = vmatmul.mubr.f32.gmra.mrb[0].mxu0 %v1857
        %v1859 = vpop.f32.mrb[0].mxu0
        %v1860 = vadd.f32 %v1781, %v1859
        %v1861 = vpop.f32.mrb[0].mxu0
        %1862 = vmatprep.mubr.f32.mxu0 0.0
        %v1863 = vand.u32 %v1365, 4294901760
        %1864 = vmatmul.mubr.f32.gmra.mrb[0].mxu0 %v1863
        %v1865 = vpop.f32.mrb[0].mxu0
        %v1866 = vadd.f32 %v1787, %v1865
        %v1867 = vpop.f32.mrb[0].mxu0
        %1868 = vdwg.mxu0
        %1869 = vmatprep.subr.mxu0 0.0
        %v1870 = vand.u32 %v334, 4294901760
        %1871 = vmatpush1.msra.mxu0 %v1870
        %1872 = vmatprep.subr.mxu0 0.0
        %v1873 = vand.u32 %v335, 4294901760
        %1874 = vmatpush1.msra.mxu0 %v1873
        %1875 = vmatprep.subr.mxu0 0.0
        %1876 = vmatpush1.msra.mxu0 0.0
        %1877 = vmatprep.subr.mxu0 0.0
        %1878 = vmatpush1.msra.mxu0 0.0
        %1879 = vmatprep.subr.mxu0 0.0
        %1880 = vmatpush1.msra.mxu0 0.0
        %1881 = vmatprep.subr.mxu0 0.0
        %1882 = vmatpush1.msra.mxu0 0.0
        %1883 = vmatprep.subr.mxu0 0.0
        %1884 = vmatpush1.msra.mxu0 0.0
        %1885 = vmatprep.subr.mxu0 0.0
        %1886 = vmatpush1.msra.mxu0 0.0
        %1887 = vmatprep.subr.mxu0 0.0
        %1888 = vmatpush1.msra.mxu0 0.0
        %1889 = vmatprep.subr.mxu0 0.0
        %1890 = vmatpush1.msra.mxu0 0.0
        %1891 = vmatprep.subr.mxu0 0.0
        %1892 = vmatpush1.msra.mxu0 0.0
        %1893 = vmatprep.subr.mxu0 0.0
        %1894 = vmatpush1.msra.mxu0 0.0
        %1895 = vmatprep.subr.mxu0 0.0
        %1896 = vmatpush1.msra.mxu0 0.0
        %1897 = vmatprep.subr.mxu0 0.0
        %1898 = vmatpush1.msra.mxu0 0.0
        %1899 = vmatprep.subr.mxu0 0.0
        %1900 = vmatpush1.msra.mxu0 0.0
        %1901 = vmatprep.subr.mxu0 0.0
        %1902 = vmatpush1.msra.mxu0 0.0
        %1903 = vmatprep.subr.mxu0 0.0
        %1904 = vmatpush1.msra.mxu0 0.0
        %1905 = vmatprep.subr.mxu0 0.0
        %1906 = vmatpush1.msra.mxu0 0.0
        %1907 = vmatprep.subr.mxu0 0.0
        %1908 = vmatpush1.msra.mxu0 0.0
        %1909 = vmatprep.subr.mxu0 0.0
        %1910 = vmatpush1.msra.mxu0 0.0
        %1911 = vmatprep.subr.mxu0 0.0
        %1912 = vmatpush1.msra.mxu0 0.0
        %1913 = vmatprep.subr.mxu0 0.0
        %1914 = vmatpush1.msra.mxu0 0.0
        %1915 = vmatprep.subr.mxu0 0.0
        %1916 = vmatpush1.msra.mxu0 0.0
        %1917 = vmatprep.subr.mxu0 0.0
        %1918 = vmatpush1.msra.mxu0 0.0
        %1919 = vmatprep.subr.mxu0 0.0
        %1920 = vmatpush1.msra.mxu0 0.0
        %1921 = vmatprep.subr.mxu0 0.0
        %1922 = vmatpush1.msra.mxu0 0.0
        %1923 = vmatprep.subr.mxu0 0.0
        %1924 = vmatpush1.msra.mxu0 0.0
        %1925 = vmatprep.subr.mxu0 0.0
        %1926 = vmatpush1.msra.mxu0 0.0
        %1927 = vmatprep.subr.mxu0 0.0
        %1928 = vmatpush1.msra.mxu0 0.0
        %1929 = vmatprep.subr.mxu0 0.0
        %1930 = vmatpush1.msra.mxu0 0.0
        %1931 = vmatprep.subr.mxu0 0.0
        %1932 = vmatpush1.msra.mxu0 0.0
        %1933 = vmatprep.subr.mxu0 0.0
        %1934 = vmatpush1.msra.mxu0 0.0
        %1935 = vmatprep.mubr.f32.mxu0 0.0
        %v1936 = vand.u32 %v1362, 4294901760
        %v1937 = vsub.f32 %v1362, %v1936
        %v1938 = vand.u32 %v1937, 4294901760
        %v1939 = vsub.f32 %v1937, %v1938
        %v1940 = vand.u32 %v1939, 4294901760
        %1941 = vmatmul.mubr.f32.gmra.mrb[0].mxu0 %v1940
        %v1942 = vpop.f32.mrb[0].mxu0
        %v1943 = vadd.f32 0.66, %v1942
        %v1944 = vpop.f32.mrb[0].mxu0
        %1945 = vmatprep.mubr.f32.mxu0 0.0
        %v1946 = vand.u32 %v1365, 4294901760
        %v1947 = vsub.f32 %v1365, %v1946
        %v1948 = vand.u32 %v1947, 4294901760
        %v1949 = vsub.f32 %v1947, %v1948
        %v1950 = vand.u32 %v1949, 4294901760
        %1951 = vmatmul.mubr.f32.gmra.mrb[0].mxu0 %v1950
        %v1952 = vpop.f32.mrb[0].mxu0
        %v1953 = vadd.f32 0.66, %v1952
        %v1954 = vpop.f32.mrb[0].mxu0
        %1955 = vdwg.mxu0
        %1956 = vmatprep.subr.mxu0 0.0
        %v1957 = vand.u32 %v334, 4294901760
        %v1958 = vsub.f32 %v334, %v1957
        %v1959 = vand.u32 %v1958, 4294901760
        %v1960 = vsub.f32 %v1958, %v1959
        %v1961 = vand.u32 %v1960, 4294901760
        %1962 = vmatpush1.msra.mxu0 %v1961
        %1963 = vmatprep.subr.mxu0 0.0
        %v1964 = vand.u32 %v335, 4294901760
        %v1965 = vsub.f32 %v335, %v1964
        %v1966 = vand.u32 %v1965, 4294901760
        %v1967 = vsub.f32 %v1965, %v1966
        %v1968 = vand.u32 %v1967, 4294901760
        %1969 = vmatpush1.msra.mxu0 %v1968
        %1970 = vmatprep.subr.mxu0 0.0
        %1971 = vmatpush1.msra.mxu0 0.0
        %1972 = vmatprep.subr.mxu0 0.0
        %1973 = vmatpush1.msra.mxu0 0.0
        %1974 = vmatprep.subr.mxu0 0.0
        %1975 = vmatpush1.msra.mxu0 0.0
        %1976 = vmatprep.subr.mxu0 0.0
        %1977 = vmatpush1.msra.mxu0 0.0
        %1978 = vmatprep.subr.mxu0 0.0
        %1979 = vmatpush1.msra.mxu0 0.0
        %1980 = vmatprep.subr.mxu0 0.0
        %1981 = vmatpush1.msra.mxu0 0.0
        %1982 = vmatprep.subr.mxu0 0.0
        %1983 = vmatpush1.msra.mxu0 0.0
        %1984 = vmatprep.subr.mxu0 0.0
        %1985 = vmatpush1.msra.mxu0 0.0
        %1986 = vmatprep.subr.mxu0 0.0
        %1987 = vmatpush1.msra.mxu0 0.0
        %1988 = vmatprep.subr.mxu0 0.0
        %1989 = vmatpush1.msra.mxu0 0.0
        %1990 = vmatprep.subr.mxu0 0.0
        %1991 = vmatpush1.msra.mxu0 0.0
        %1992 = vmatprep.subr.mxu0 0.0
        %1993 = vmatpush1.msra.mxu0 0.0
        %1994 = vmatprep.subr.mxu0 0.0
        %1995 = vmatpush1.msra.mxu0 0.0
        %1996 = vmatprep.subr.mxu0 0.0
        %1997 = vmatpush1.msra.mxu0 0.0
        %1998 = vmatprep.subr.mxu0 0.0
        %1999 = vmatpush1.msra.mxu0 0.0
        %2000 = vmatprep.subr.mxu0 0.0
        %2001 = vmatpush1.msra.mxu0 0.0
        %2002 = vmatprep.subr.mxu0 0.0
        %2003 = vmatpush1.msra.mxu0 0.0
        %2004 = vmatprep.subr.mxu0 0.0
        %2005 = vmatpush1.msra.mxu0 0.0
        %2006 = vmatprep.subr.mxu0 0.0
        %2007 = vmatpush1.msra.mxu0 0.0
        %2008 = vmatprep.subr.mxu0 0.0
        %2009 = vmatpush1.msra.mxu0 0.0
        %2010 = vmatprep.subr.mxu0 0.0
        %2011 = vmatpush1.msra.mxu0 0.0
        %2012 = vmatprep.subr.mxu0 0.0
        %2013 = vmatpush1.msra.mxu0 0.0
        %2014 = vmatprep.subr.mxu0 0.0
        %2015 = vmatpush1.msra.mxu0 0.0
        %2016 = vmatprep.subr.mxu0 0.0
        %2017 = vmatpush1.msra.mxu0 0.0
        %2018 = vmatprep.subr.mxu0 0.0
        %2019 = vmatpush1.msra.mxu0 0.0
        %2020 = vmatprep.subr.mxu0 0.0
        %2021 = vmatpush1.msra.mxu0 0.0
        %2022 = vmatprep.subr.mxu0 0.0
        %2023 = vmatpush1.msra.mxu0 0.0
        %2024 = vmatprep.subr.mxu0 0.0
        %2025 = vmatpush1.msra.mxu0 0.0
        %2026 = vmatprep.subr.mxu0 0.0
        %2027 = vmatpush1.msra.mxu0 0.0
        %2028 = vmatprep.subr.mxu0 0.0
        %2029 = vmatpush1.msra.mxu0 0.0
        %2030 = vmatprep.mubr.f32.mxu0 0.0
        %v2031 = vand.u32 %v1362, 4294901760
        %2032 = vmatmul.mubr.f32.gmra.mrb[0].mxu0 %v2031
        %v2033 = vpop.f32.mrb[0].mxu0
        %v2034 = vadd.f32 %v1943, %v2033
        %v2035 = vpop.f32.mrb[0].mxu0
        %2036 = vmatprep.mubr.f32.mxu0 0.0
        %v2037 = vand.u32 %v1365, 4294901760
        %2038 = vmatmul.mubr.f32.gmra.mrb[0].mxu0 %v2037
        %v2039 = vpop.f32.mrb[0].mxu0
        %v2040 = vadd.f32 %v1953, %v2039
        %v2041 = vpop.f32.mrb[0].mxu0
        %2042 = vdwg.mxu0
        %2043 = vmatprep.subr.mxu0 0.0
        %v2044 = vand.u32 %v334, 4294901760
        %v2045 = vsub.f32 %v334, %v2044
        %2046 = vmatpush1.msra.mxu0 %v2045
        %2047 = vmatprep.subr.mxu0 0.0
        %v2048 = vand.u32 %v335, 4294901760
        %v2049 = vsub.f32 %v335, %v2048
        %2050 = vmatpush1.msra.mxu0 %v2049
        %2051 = vmatprep.subr.mxu0 0.0
        %2052 = vmatpush1.msra.mxu0 0.0
        %2053 = vmatprep.subr.mxu0 0.0
        %2054 = vmatpush1.msra.mxu0 0.0
        %2055 = vmatprep.subr.mxu0 0.0
        %2056 = vmatpush1.msra.mxu0 0.0
        %2057 = vmatprep.subr.mxu0 0.0
        %2058 = vmatpush1.msra.mxu0 0.0
        %2059 = vmatprep.subr.mxu0 0.0
        %2060 = vmatpush1.msra.mxu0 0.0
        %2061 = vmatprep.subr.mxu0 0.0
        %2062 = vmatpush1.msra.mxu0 0.0
        %2063 = vmatprep.subr.mxu0 0.0
        %2064 = vmatpush1.msra.mxu0 0.0
        %2065 = vmatprep.subr.mxu0 0.0
        %2066 = vmatpush1.msra.mxu0 0.0
        %2067 = vmatprep.subr.mxu0 0.0
        %2068 = vmatpush1.msra.mxu0 0.0
        %2069 = vmatprep.subr.mxu0 0.0
        %2070 = vmatpush1.msra.mxu0 0.0
        %2071 = vmatprep.subr.mxu0 0.0
        %2072 = vmatpush1.msra.mxu0 0.0
        %2073 = vmatprep.subr.mxu0 0.0
        %2074 = vmatpush1.msra.mxu0 0.0
        %2075 = vmatprep.subr.mxu0 0.0
        %2076 = vmatpush1.msra.mxu0 0.0
        %2077 = vmatprep.subr.mxu0 0.0
        %2078 = vmatpush1.msra.mxu0 0.0
        %2079 = vmatprep.subr.mxu0 0.0
        %2080 = vmatpush1.msra.mxu0 0.0
        %2081 = vmatprep.subr.mxu0 0.0
        %2082 = vmatpush1.msra.mxu0 0.0
        %2083 = vmatprep.subr.mxu0 0.0
        %2084 = vmatpush1.msra.mxu0 0.0
        %2085 = vmatprep.subr.mxu0 0.0
        %2086 = vmatpush1.msra.mxu0 0.0
        %2087 = vmatprep.subr.mxu0 0.0
        %2088 = vmatpush1.msra.mxu0 0.0
        %2089 = vmatprep.subr.mxu0 0.0
        %2090 = vmatpush1.msra.mxu0 0.0
        %2091 = vmatprep.subr.mxu0 0.0
        %2092 = vmatpush1.msra.mxu0 0.0
        %2093 = vmatprep.subr.mxu0 0.0
        %2094 = vmatpush1.msra.mxu0 0.0
        %2095 = vmatprep.subr.mxu0 0.0
        %2096 = vmatpush1.msra.mxu0 0.0
        %2097 = vmatprep.subr.mxu0 0.0
        %2098 = vmatpush1.msra.mxu0 0.0
        %2099 = vmatprep.subr.mxu0 0.0
        %2100 = vmatpush1.msra.mxu0 0.0
        %2101 = vmatprep.subr.mxu0 0.0
        %2102 = vmatpush1.msra.mxu0 0.0
        %2103 = vmatprep.subr.mxu0 0.0
        %2104 = vmatpush1.msra.mxu0 0.0
        %2105 = vmatprep.subr.mxu0 0.0
        %2106 = vmatpush1.msra.mxu0 0.0
        %2107 = vmatprep.subr.mxu0 0.0
        %2108 = vmatpush1.msra.mxu0 0.0
        %2109 = vmatprep.subr.mxu0 0.0
        %2110 = vmatpush1.msra.mxu0 0.0
        %2111 = vmatprep.mubr.f32.mxu0 0.0
        %v2112 = vand.u32 %v1362, 4294901760
        %v2113 = vsub.f32 %v1362, %v2112
        %2114 = vmatmul.mubr.f32.gmra.mrb[0].mxu0 %v2113
        %v2115 = vpop.f32.mrb[0].mxu0
        %v2116 = vadd.f32 %v2034, %v2115
        %v2117 = vpop.f32.mrb[0].mxu0
        %2118 = vmatprep.mubr.f32.mxu0 0.0
        %v2119 = vand.u32 %v1365, 4294901760
        %v2120 = vsub.f32 %v1365, %v2119
        %2121 = vmatmul.mubr.f32.gmra.mrb[0].mxu0 %v2120
        %v2122 = vpop.f32.mrb[0].mxu0
        %v2123 = vadd.f32 %v2040, %v2122
        %v2124 = vpop.f32.mrb[0].mxu0
        %2125 = vdwg.mxu0
        %2126 = vmatprep.subr.mxu0 0.0
        %v2127 = vand.u32 %v334, 4294901760
        %2128 = vmatpush1.msra.mxu0 %v2127
        %2129 = vmatprep.subr.mxu0 0.0
        %v2130 = vand.u32 %v335, 4294901760
        %2131 = vmatpush1.msra.mxu0 %v2130
        %2132 = vmatprep.subr.mxu0 0.0
        %2133 = vmatpush1.msra.mxu0 0.0
        %2134 = vmatprep.subr.mxu0 0.0
        %2135 = vmatpush1.msra.mxu0 0.0
        %2136 = vmatprep.subr.mxu0 0.0
        %2137 = vmatpush1.msra.mxu0 0.0
        %2138 = vmatprep.subr.mxu0 0.0
        %2139 = vmatpush1.msra.mxu0 0.0
        %2140 = vmatprep.subr.mxu0 0.0
        %2141 = vmatpush1.msra.mxu0 0.0
        %2142 = vmatprep.subr.mxu0 0.0
        %2143 = vmatpush1.msra.mxu0 0.0
        %2144 = vmatprep.subr.mxu0 0.0
        %2145 = vmatpush1.msra.mxu0 0.0
        %2146 = vmatprep.subr.mxu0 0.0
        %2147 = vmatpush1.msra.mxu0 0.0
        %2148 = vmatprep.subr.mxu0 0.0
        %2149 = vmatpush1.msra.mxu0 0.0
        %2150 = vmatprep.subr.mxu0 0.0
        %2151 = vmatpush1.msra.mxu0 0.0
        %2152 = vmatprep.subr.mxu0 0.0
        %2153 = vmatpush1.msra.mxu0 0.0
        %2154 = vmatprep.subr.mxu0 0.0
        %2155 = vmatpush1.msra.mxu0 0.0
        %2156 = vmatprep.subr.mxu0 0.0
        %2157 = vmatpush1.msra.mxu0 0.0
        %2158 = vmatprep.subr.mxu0 0.0
        %2159 = vmatpush1.msra.mxu0 0.0
        %2160 = vmatprep.subr.mxu0 0.0
        %2161 = vmatpush1.msra.mxu0 0.0
        %2162 = vmatprep.subr.mxu0 0.0
        %2163 = vmatpush1.msra.mxu0 0.0
        %2164 = vmatprep.subr.mxu0 0.0
        %2165 = vmatpush1.msra.mxu0 0.0
        %2166 = vmatprep.subr.mxu0 0.0
        %2167 = vmatpush1.msra.mxu0 0.0
        %2168 = vmatprep.subr.mxu0 0.0
        %2169 = vmatpush1.msra.mxu0 0.0
        %2170 = vmatprep.subr.mxu0 0.0
        %2171 = vmatpush1.msra.mxu0 0.0
        %2172 = vmatprep.subr.mxu0 0.0
        %2173 = vmatpush1.msra.mxu0 0.0
        %2174 = vmatprep.subr.mxu0 0.0
        %2175 = vmatpush1.msra.mxu0 0.0
        %2176 = vmatprep.subr.mxu0 0.0
        %2177 = vmatpush1.msra.mxu0 0.0
        %2178 = vmatprep.subr.mxu0 0.0
        %2179 = vmatpush1.msra.mxu0 0.0
        %2180 = vmatprep.subr.mxu0 0.0
        %2181 = vmatpush1.msra.mxu0 0.0
        %2182 = vmatprep.subr.mxu0 0.0
        %2183 = vmatpush1.msra.mxu0 0.0
        %2184 = vmatprep.subr.mxu0 0.0
        %2185 = vmatpush1.msra.mxu0 0.0
        %2186 = vmatprep.subr.mxu0 0.0
        %2187 = vmatpush1.msra.mxu0 0.0
        %2188 = vmatprep.subr.mxu0 0.0
        %2189 = vmatpush1.msra.mxu0 0.0
        %2190 = vmatprep.subr.mxu0 0.0
        %2191 = vmatpush1.msra.mxu0 0.0
        %2192 = vmatprep.mubr.f32.mxu0 0.0
        %v2193 = vand.u32 %v1362, 4294901760
        %v2194 = vsub.f32 %v1362, %v2193
        %v2195 = vand.u32 %v2194, 4294901760
        %2196 = vmatmul.mubr.f32.gmra.mrb[0].mxu0 %v2195
        %v2197 = vpop.f32.mrb[0].mxu0
        %v2198 = vadd.f32 %v2116, %v2197
        %v2199 = vpop.f32.mrb[0].mxu0
        %2200 = vmatprep.mubr.f32.mxu0 0.0
        %v2201 = vand.u32 %v1365, 4294901760
        %v2202 = vsub.f32 %v1365, %v2201
        %v2203 = vand.u32 %v2202, 4294901760
        %2204 = vmatmul.mubr.f32.gmra.mrb[0].mxu0 %v2203
        %v2205 = vpop.f32.mrb[0].mxu0
        %v2206 = vadd.f32 %v2123, %v2205
        %v2207 = vpop.f32.mrb[0].mxu0
        %2208 = vdwg.mxu0
        %2209 = vmatprep.subr.mxu0 0.0
        %v2210 = vand.u32 %v334, 4294901760
        %v2211 = vsub.f32 %v334, %v2210
        %v2212 = vand.u32 %v2211, 4294901760
        %2213 = vmatpush1.msra.mxu0 %v2212
        %2214 = vmatprep.subr.mxu0 0.0
        %v2215 = vand.u32 %v335, 4294901760
        %v2216 = vsub.f32 %v335, %v2215
        %v2217 = vand.u32 %v2216, 4294901760
        %2218 = vmatpush1.msra.mxu0 %v2217
        %2219 = vmatprep.subr.mxu0 0.0
        %2220 = vmatpush1.msra.mxu0 0.0
        %2221 = vmatprep.subr.mxu0 0.0
        %2222 = vmatpush1.msra.mxu0 0.0
        %2223 = vmatprep.subr.mxu0 0.0
        %2224 = vmatpush1.msra.mxu0 0.0
        %2225 = vmatprep.subr.mxu0 0.0
        %2226 = vmatpush1.msra.mxu0 0.0
        %2227 = vmatprep.subr.mxu0 0.0
        %2228 = vmatpush1.msra.mxu0 0.0
        %2229 = vmatprep.subr.mxu0 0.0
        %2230 = vmatpush1.msra.mxu0 0.0
        %2231 = vmatprep.subr.mxu0 0.0
        %2232 = vmatpush1.msra.mxu0 0.0
        %2233 = vmatprep.subr.mxu0 0.0
        %2234 = vmatpush1.msra.mxu0 0.0
        %2235 = vmatprep.subr.mxu0 0.0
        %2236 = vmatpush1.msra.mxu0 0.0
        %2237 = vmatprep.subr.mxu0 0.0
        %2238 = vmatpush1.msra.mxu0 0.0
        %2239 = vmatprep.subr.mxu0 0.0
        %2240 = vmatpush1.msra.mxu0 0.0
        %2241 = vmatprep.subr.mxu0 0.0
        %2242 = vmatpush1.msra.mxu0 0.0
        %2243 = vmatprep.subr.mxu0 0.0
        %2244 = vmatpush1.msra.mxu0 0.0
        %2245 = vmatprep.subr.mxu0 0.0
        %2246 = vmatpush1.msra.mxu0 0.0
        %2247 = vmatprep.subr.mxu0 0.0
        %2248 = vmatpush1.msra.mxu0 0.0
        %2249 = vmatprep.subr.mxu0 0.0
        %2250 = vmatpush1.msra.mxu0 0.0
        %2251 = vmatprep.subr.mxu0 0.0
        %2252 = vmatpush1.msra.mxu0 0.0
        %2253 = vmatprep.subr.mxu0 0.0
        %2254 = vmatpush1.msra.mxu0 0.0
        %2255 = vmatprep.subr.mxu0 0.0
        %2256 = vmatpush1.msra.mxu0 0.0
        %2257 = vmatprep.subr.mxu0 0.0
        %2258 = vmatpush1.msra.mxu0 0.0
        %2259 = vmatprep.subr.mxu0 0.0
        %2260 = vmatpush1.msra.mxu0 0.0
        %2261 = vmatprep.subr.mxu0 0.0
        %2262 = vmatpush1.msra.mxu0 0.0
        %2263 = vmatprep.subr.mxu0 0.0
        %2264 = vmatpush1.msra.mxu0 0.0
        %2265 = vmatprep.subr.mxu0 0.0
        %2266 = vmatpush1.msra.mxu0 0.0
        %2267 = vmatprep.subr.mxu0 0.0
        %2268 = vmatpush1.msra.mxu0 0.0
        %2269 = vmatprep.subr.mxu0 0.0
        %2270 = vmatpush1.msra.mxu0 0.0
        %2271 = vmatprep.subr.mxu0 0.0
        %2272 = vmatpush1.msra.mxu0 0.0
        %2273 = vmatprep.subr.mxu0 0.0
        %2274 = vmatpush1.msra.mxu0 0.0
        %2275 = vmatprep.subr.mxu0 0.0
        %2276 = vmatpush1.msra.mxu0 0.0
        %2277 = vmatprep.subr.mxu0 0.0
        %2278 = vmatpush1.msra.mxu0 0.0
        %2279 = vmatprep.mubr.f32.mxu0 0.0
        %v2280 = vand.u32 %v1362, 4294901760
        %2281 = vmatmul.mubr.f32.gmra.mrb[0].mxu0 %v2280
        %v2282 = vpop.f32.mrb[0].mxu0
        %v2283 = vadd.f32 %v2198, %v2282
        %v2284 = vpop.f32.mrb[0].mxu0
        %2285 = vmatprep.mubr.f32.mxu0 0.0
        %v2286 = vand.u32 %v1365, 4294901760
        %2287 = vmatmul.mubr.f32.gmra.mrb[0].mxu0 %v2286
        %v2288 = vpop.f32.mrb[0].mxu0
        %v2289 = vadd.f32 %v2206, %v2288
        %v2290 = vpop.f32.mrb[0].mxu0
        %2291 = vdwg.mxu0
        %2292 = vmatprep.subr.mxu0 0.0
        %v2293 = vand.u32 %v334, 4294901760
        %2294 = vmatpush1.msra.mxu0 %v2293
        %2295 = vmatprep.subr.mxu0 0.0
        %v2296 = vand.u32 %v335, 4294901760
        %2297 = vmatpush1.msra.mxu0 %v2296
        %2298 = vmatprep.subr.mxu0 0.0
        %2299 = vmatpush1.msra.mxu0 0.0
        %2300 = vmatprep.subr.mxu0 0.0
        %2301 = vmatpush1.msra.mxu0 0.0
        %2302 = vmatprep.subr.mxu0 0.0
        %2303 = vmatpush1.msra.mxu0 0.0
        %2304 = vmatprep.subr.mxu0 0.0
        %2305 = vmatpush1.msra.mxu0 0.0
        %2306 = vmatprep.subr.mxu0 0.0
        %2307 = vmatpush1.msra.mxu0 0.0
        %2308 = vmatprep.subr.mxu0 0.0
        %2309 = vmatpush1.msra.mxu0 0.0
        %2310 = vmatprep.subr.mxu0 0.0
        %2311 = vmatpush1.msra.mxu0 0.0
        %2312 = vmatprep.subr.mxu0 0.0
        %2313 = vmatpush1.msra.mxu0 0.0
        %2314 = vmatprep.subr.mxu0 0.0
        %2315 = vmatpush1.msra.mxu0 0.0
        %2316 = vmatprep.subr.mxu0 0.0
        %2317 = vmatpush1.msra.mxu0 0.0
        %2318 = vmatprep.subr.mxu0 0.0
        %2319 = vmatpush1.msra.mxu0 0.0
        %2320 = vmatprep.subr.mxu0 0.0
        %2321 = vmatpush1.msra.mxu0 0.0
        %2322 = vmatprep.subr.mxu0 0.0
        %2323 = vmatpush1.msra.mxu0 0.0
        %2324 = vmatprep.subr.mxu0 0.0
        %2325 = vmatpush1.msra.mxu0 0.0
        %2326 = vmatprep.subr.mxu0 0.0
        %2327 = vmatpush1.msra.mxu0 0.0
        %2328 = vmatprep.subr.mxu0 0.0
        %2329 = vmatpush1.msra.mxu0 0.0
        %2330 = vmatprep.subr.mxu0 0.0
        %2331 = vmatpush1.msra.mxu0 0.0
        %2332 = vmatprep.subr.mxu0 0.0
        %2333 = vmatpush1.msra.mxu0 0.0
        %2334 = vmatprep.subr.mxu0 0.0
        %2335 = vmatpush1.msra.mxu0 0.0
        %2336 = vmatprep.subr.mxu0 0.0
        %2337 = vmatpush1.msra.mxu0 0.0
        %2338 = vmatprep.subr.mxu0 0.0
        %2339 = vmatpush1.msra.mxu0 0.0
        %2340 = vmatprep.subr.mxu0 0.0
        %2341 = vmatpush1.msra.mxu0 0.0
        %2342 = vmatprep.subr.mxu0 0.0
        %2343 = vmatpush1.msra.mxu0 0.0
        %2344 = vmatprep.subr.mxu0 0.0
        %2345 = vmatpush1.msra.mxu0 0.0
        %2346 = vmatprep.subr.mxu0 0.0
        %2347 = vmatpush1.msra.mxu0 0.0
        %2348 = vmatprep.subr.mxu0 0.0
        %2349 = vmatpush1.msra.mxu0 0.0
        %2350 = vmatprep.subr.mxu0 0.0
        %2351 = vmatpush1.msra.mxu0 0.0
        %2352 = vmatprep.subr.mxu0 0.0
        %2353 = vmatpush1.msra.mxu0 0.0
        %2354 = vmatprep.subr.mxu0 0.0
        %2355 = vmatpush1.msra.mxu0 0.0
        %2356 = vmatprep.subr.mxu0 0.0
        %2357 = vmatpush1.msra.mxu0 0.0
        %2358 = vmatprep.mubr.f32.mxu0 0.0
        %v2359 = vand.u32 %v1362, 4294901760
        %2360 = vmatmul.mubr.f32.gmra.mrb[0].mxu0 %v2359
        %v2361 = vpop.f32.mrb[0].mxu0
        %v2362 = vadd.f32 %v2283, %v2361
        %v2363 = vpop.f32.mrb[0].mxu0
        %2364 = vmatprep.mubr.f32.mxu0 0.0
        %v2365 = vand.u32 %v1365, 4294901760
        %2366 = vmatmul.mubr.f32.gmra.mrb[0].mxu0 %v2365
        %v2367 = vpop.f32.mrb[0].mxu0
        %v2368 = vadd.f32 %v2289, %v2367
        %v2369 = vpop.f32.mrb[0].mxu0
        %2370 = vdwg.mxu0
        %v2372 = vsel %vm340, %v840, 0
        %v2375 = vsel %vm340, %v846, 0
        %2377 = vmatprep.subr.mxu0 0.0
        %v2378 = vand.u32 %v336, 4294901760
        %2379 = vmatpush1.msra.mxu0 %v2378
        %2380 = vmatprep.subr.mxu0 0.0
        %v2381 = vand.u32 %v337, 4294901760
        %2382 = vmatpush1.msra.mxu0 %v2381
        %2383 = vmatprep.subr.mxu0 0.0
        %2384 = vmatpush1.msra.mxu0 0.0
        %2385 = vmatprep.subr.mxu0 0.0
        %2386 = vmatpush1.msra.mxu0 0.0
        %2387 = vmatprep.subr.mxu0 0.0
        %2388 = vmatpush1.msra.mxu0 0.0
        %2389 = vmatprep.subr.mxu0 0.0
        %2390 = vmatpush1.msra.mxu0 0.0
        %2391 = vmatprep.subr.mxu0 0.0
        %2392 = vmatpush1.msra.mxu0 0.0
        %2393 = vmatprep.subr.mxu0 0.0
        %2394 = vmatpush1.msra.mxu0 0.0
        %2395 = vmatprep.subr.mxu0 0.0
        %2396 = vmatpush1.msra.mxu0 0.0
        %2397 = vmatprep.subr.mxu0 0.0
        %2398 = vmatpush1.msra.mxu0 0.0
        %2399 = vmatprep.subr.mxu0 0.0
        %2400 = vmatpush1.msra.mxu0 0.0
        %2401 = vmatprep.subr.mxu0 0.0
        %2402 = vmatpush1.msra.mxu0 0.0
        %2403 = vmatprep.subr.mxu0 0.0
        %2404 = vmatpush1.msra.mxu0 0.0
        %2405 = vmatprep.subr.mxu0 0.0
        %2406 = vmatpush1.msra.mxu0 0.0
        %2407 = vmatprep.subr.mxu0 0.0
        %2408 = vmatpush1.msra.mxu0 0.0
        %2409 = vmatprep.subr.mxu0 0.0
        %2410 = vmatpush1.msra.mxu0 0.0
        %2411 = vmatprep.subr.mxu0 0.0
        %2412 = vmatpush1.msra.mxu0 0.0
        %2413 = vmatprep.subr.mxu0 0.0
        %2414 = vmatpush1.msra.mxu0 0.0
        %2415 = vmatprep.subr.mxu0 0.0
        %2416 = vmatpush1.msra.mxu0 0.0
        %2417 = vmatprep.subr.mxu0 0.0
        %2418 = vmatpush1.msra.mxu0 0.0
        %2419 = vmatprep.subr.mxu0 0.0
        %2420 = vmatpush1.msra.mxu0 0.0
        %2421 = vmatprep.subr.mxu0 0.0
        %2422 = vmatpush1.msra.mxu0 0.0
        %2423 = vmatprep.subr.mxu0 0.0
        %2424 = vmatpush1.msra.mxu0 0.0
        %2425 = vmatprep.subr.mxu0 0.0
        %2426 = vmatpush1.msra.mxu0 0.0
        %2427 = vmatprep.subr.mxu0 0.0
        %2428 = vmatpush1.msra.mxu0 0.0
        %2429 = vmatprep.subr.mxu0 0.0
        %2430 = vmatpush1.msra.mxu0 0.0
        %2431 = vmatprep.subr.mxu0 0.0
        %2432 = vmatpush1.msra.mxu0 0.0
        %2433 = vmatprep.subr.mxu0 0.0
        %2434 = vmatpush1.msra.mxu0 0.0
        %2435 = vmatprep.subr.mxu0 0.0
        %2436 = vmatpush1.msra.mxu0 0.0
        %2437 = vmatprep.subr.mxu0 0.0
        %2438 = vmatpush1.msra.mxu0 0.0
        %2439 = vmatprep.subr.mxu0 0.0
        %2440 = vmatpush1.msra.mxu0 0.0
        %2441 = vmatprep.subr.mxu0 0.0
        %2442 = vmatpush1.msra.mxu0 0.0
        %2443 = vmatprep.mubr.f32.mxu0 0.0
        %v2444 = vand.u32 %v2372, 4294901760
        %v2445 = vsub.f32 %v2372, %v2444
        %v2446 = vand.u32 %v2445, 4294901760
        %v2447 = vsub.f32 %v2445, %v2446
        %v2448 = vand.u32 %v2447, 4294901760
        %2449 = vmatmul.mubr.f32.gmra.mrb[0].mxu0 %v2448
        %v2450 = vpop.f32.mrb[0].mxu0
        %v2451 = vadd.f32 0.66, %v2450
        %v2452 = vpop.f32.mrb[0].mxu0
        %2453 = vmatprep.mubr.f32.mxu0 0.0
        %v2454 = vand.u32 %v2375, 4294901760
        %v2455 = vsub.f32 %v2375, %v2454
        %v2456 = vand.u32 %v2455, 4294901760
        %v2457 = vsub.f32 %v2455, %v2456
        %v2458 = vand.u32 %v2457, 4294901760
        %2459 = vmatmul.mubr.f32.gmra.mrb[0].mxu0 %v2458
        %v2460 = vpop.f32.mrb[0].mxu0
        %v2461 = vadd.f32 0.66, %v2460
        %v2462 = vpop.f32.mrb[0].mxu0
        %2463 = vdwg.mxu0
        %2464 = vmatprep.subr.mxu0 0.0
        %v2465 = vand.u32 %v336, 4294901760
        %v2466 = vsub.f32 %v336, %v2465
        %v2467 = vand.u32 %v2466, 4294901760
        %v2468 = vsub.f32 %v2466, %v2467
        %v2469 = vand.u32 %v2468, 4294901760
        %2470 = vmatpush1.msra.mxu0 %v2469
        %2471 = vmatprep.subr.mxu0 0.0
        %v2472 = vand.u32 %v337, 4294901760
        %v2473 = vsub.f32 %v337, %v2472
        %v2474 = vand.u32 %v2473, 4294901760
        %v2475 = vsub.f32 %v2473, %v2474
        %v2476 = vand.u32 %v2475, 4294901760
        %2477 = vmatpush1.msra.mxu0 %v2476
        %2478 = vmatprep.subr.mxu0 0.0
        %2479 = vmatpush1.msra.mxu0 0.0
        %2480 = vmatprep.subr.mxu0 0.0
        %2481 = vmatpush1.msra.mxu0 0.0
        %2482 = vmatprep.subr.mxu0 0.0
        %2483 = vmatpush1.msra.mxu0 0.0
        %2484 = vmatprep.subr.mxu0 0.0
        %2485 = vmatpush1.msra.mxu0 0.0
        %2486 = vmatprep.subr.mxu0 0.0
        %2487 = vmatpush1.msra.mxu0 0.0
        %2488 = vmatprep.subr.mxu0 0.0
        %2489 = vmatpush1.msra.mxu0 0.0
        %2490 = vmatprep.subr.mxu0 0.0
        %2491 = vmatpush1.msra.mxu0 0.0
        %2492 = vmatprep.subr.mxu0 0.0
        %2493 = vmatpush1.msra.mxu0 0.0
        %2494 = vmatprep.subr.mxu0 0.0
        %2495 = vmatpush1.msra.mxu0 0.0
        %2496 = vmatprep.subr.mxu0 0.0
        %2497 = vmatpush1.msra.mxu0 0.0
        %2498 = vmatprep.subr.mxu0 0.0
        %2499 = vmatpush1.msra.mxu0 0.0
        %2500 = vmatprep.subr.mxu0 0.0
        %2501 = vmatpush1.msra.mxu0 0.0
        %2502 = vmatprep.subr.mxu0 0.0
        %2503 = vmatpush1.msra.mxu0 0.0
        %2504 = vmatprep.subr.mxu0 0.0
        %2505 = vmatpush1.msra.mxu0 0.0
        %2506 = vmatprep.subr.mxu0 0.0
        %2507 = vmatpush1.msra.mxu0 0.0
        %2508 = vmatprep.subr.mxu0 0.0
        %2509 = vmatpush1.msra.mxu0 0.0
        %2510 = vmatprep.subr.mxu0 0.0
        %2511 = vmatpush1.msra.mxu0 0.0
        %2512 = vmatprep.subr.mxu0 0.0
        %2513 = vmatpush1.msra.mxu0 0.0
        %2514 = vmatprep.subr.mxu0 0.0
        %2515 = vmatpush1.msra.mxu0 0.0
        %2516 = vmatprep.subr.mxu0 0.0
        %2517 = vmatpush1.msra.mxu0 0.0
        %2518 = vmatprep.subr.mxu0 0.0
        %2519 = vmatpush1.msra.mxu0 0.0
        %2520 = vmatprep.subr.mxu0 0.0
        %2521 = vmatpush1.msra.mxu0 0.0
        %2522 = vmatprep.subr.mxu0 0.0
        %2523 = vmatpush1.msra.mxu0 0.0
        %2524 = vmatprep.subr.mxu0 0.0
        %2525 = vmatpush1.msra.mxu0 0.0
        %2526 = vmatprep.subr.mxu0 0.0
        %2527 = vmatpush1.msra.mxu0 0.0
        %2528 = vmatprep.subr.mxu0 0.0
        %2529 = vmatpush1.msra.mxu0 0.0
        %2530 = vmatprep.subr.mxu0 0.0
        %2531 = vmatpush1.msra.mxu0 0.0
        %2532 = vmatprep.subr.mxu0 0.0
        %2533 = vmatpush1.msra.mxu0 0.0
        %2534 = vmatprep.subr.mxu0 0.0
        %2535 = vmatpush1.msra.mxu0 0.0
        %2536 = vmatprep.subr.mxu0 0.0
        %2537 = vmatpush1.msra.mxu0 0.0
        %2538 = vmatprep.mubr.f32.mxu0 0.0
        %v2539 = vand.u32 %v2372, 4294901760
        %2540 = vmatmul.mubr.f32.gmra.mrb[0].mxu0 %v2539
        %v2541 = vpop.f32.mrb[0].mxu0
        %v2542 = vadd.f32 %v2451, %v2541
        %v2543 = vpop.f32.mrb[0].mxu0
        %2544 = vmatprep.mubr.f32.mxu0 0.0
        %v2545 = vand.u32 %v2375, 4294901760
        %2546 = vmatmul.mubr.f32.gmra.mrb[0].mxu0 %v2545
        %v2547 = vpop.f32.mrb[0].mxu0
        %v2548 = vadd.f32 %v2461, %v2547
        %v2549 = vpop.f32.mrb[0].mxu0
        %2550 = vdwg.mxu0
        %2551 = vmatprep.subr.mxu0 0.0
        %v2552 = vand.u32 %v336, 4294901760
        %v2553 = vsub.f32 %v336, %v2552
        %2554 = vmatpush1.msra.mxu0 %v2553
        %2555 = vmatprep.subr.mxu0 0.0
        %v2556 = vand.u32 %v337, 4294901760
        %v2557 = vsub.f32 %v337, %v2556
        %2558 = vmatpush1.msra.mxu0 %v2557
        %2559 = vmatprep.subr.mxu0 0.0
        %2560 = vmatpush1.msra.mxu0 0.0
        %2561 = vmatprep.subr.mxu0 0.0
        %2562 = vmatpush1.msra.mxu0 0.0
        %2563 = vmatprep.subr.mxu0 0.0
        %2564 = vmatpush1.msra.mxu0 0.0
        %2565 = vmatprep.subr.mxu0 0.0
        %2566 = vmatpush1.msra.mxu0 0.0
        %2567 = vmatprep.subr.mxu0 0.0
        %2568 = vmatpush1.msra.mxu0 0.0
        %2569 = vmatprep.subr.mxu0 0.0
        %2570 = vmatpush1.msra.mxu0 0.0
        %2571 = vmatprep.subr.mxu0 0.0
        %2572 = vmatpush1.msra.mxu0 0.0
        %2573 = vmatprep.subr.mxu0 0.0
        %2574 = vmatpush1.msra.mxu0 0.0
        %2575 = vmatprep.subr.mxu0 0.0
        %2576 = vmatpush1.msra.mxu0 0.0
        %2577 = vmatprep.subr.mxu0 0.0
        %2578 = vmatpush1.msra.mxu0 0.0
        %2579 = vmatprep.subr.mxu0 0.0
        %2580 = vmatpush1.msra.mxu0 0.0
        %2581 = vmatprep.subr.mxu0 0.0
        %2582 = vmatpush1.msra.mxu0 0.0
        %2583 = vmatprep.subr.mxu0 0.0
        %2584 = vmatpush1.msra.mxu0 0.0
        %2585 = vmatprep.subr.mxu0 0.0
        %2586 = vmatpush1.msra.mxu0 0.0
        %2587 = vmatprep.subr.mxu0 0.0
        %2588 = vmatpush1.msra.mxu0 0.0
        %2589 = vmatprep.subr.mxu0 0.0
        %2590 = vmatpush1.msra.mxu0 0.0
        %2591 = vmatprep.subr.mxu0 0.0
        %2592 = vmatpush1.msra.mxu0 0.0
        %2593 = vmatprep.subr.mxu0 0.0
        %2594 = vmatpush1.msra.mxu0 0.0
        %2595 = vmatprep.subr.mxu0 0.0
        %2596 = vmatpush1.msra.mxu0 0.0
        %2597 = vmatprep.subr.mxu0 0.0
        %2598 = vmatpush1.msra.mxu0 0.0
        %2599 = vmatprep.subr.mxu0 0.0
        %2600 = vmatpush1.msra.mxu0 0.0
        %2601 = vmatprep.subr.mxu0 0.0
        %2602 = vmatpush1.msra.mxu0 0.0
        %2603 = vmatprep.subr.mxu0 0.0
        %2604 = vmatpush1.msra.mxu0 0.0
        %2605 = vmatprep.subr.mxu0 0.0
        %2606 = vmatpush1.msra.mxu0 0.0
        %2607 = vmatprep.subr.mxu0 0.0
        %2608 = vmatpush1.msra.mxu0 0.0
        %2609 = vmatprep.subr.mxu0 0.0
        %2610 = vmatpush1.msra.mxu0 0.0
        %2611 = vmatprep.subr.mxu0 0.0
        %2612 = vmatpush1.msra.mxu0 0.0
        %2613 = vmatprep.subr.mxu0 0.0
        %2614 = vmatpush1.msra.mxu0 0.0
        %2615 = vmatprep.subr.mxu0 0.0
        %2616 = vmatpush1.msra.mxu0 0.0
        %2617 = vmatprep.subr.mxu0 0.0
        %2618 = vmatpush1.msra.mxu0 0.0
        %2619 = vmatprep.mubr.f32.mxu0 0.0
        %v2620 = vand.u32 %v2372, 4294901760
        %v2621 = vsub.f32 %v2372, %v2620
        %2622 = vmatmul.mubr.f32.gmra.mrb[0].mxu0 %v2621
        %v2623 = vpop.f32.mrb[0].mxu0
        %v2624 = vadd.f32 %v2542, %v2623
        %v2625 = vpop.f32.mrb[0].mxu0
        %2626 = vmatprep.mubr.f32.mxu0 0.0
        %v2627 = vand.u32 %v2375, 4294901760
        %v2628 = vsub.f32 %v2375, %v2627
        %2629 = vmatmul.mubr.f32.gmra.mrb[0].mxu0 %v2628
        %v2630 = vpop.f32.mrb[0].mxu0
        %v2631 = vadd.f32 %v2548, %v2630
        %v2632 = vpop.f32.mrb[0].mxu0
        %2633 = vdwg.mxu0
        %2634 = vmatprep.subr.mxu0 0.0
        %v2635 = vand.u32 %v336, 4294901760
        %2636 = vmatpush1.msra.mxu0 %v2635
        %2637 = vmatprep.subr.mxu0 0.0
        %v2638 = vand.u32 %v337, 4294901760
        %2639 = vmatpush1.msra.mxu0 %v2638
        %2640 = vmatprep.subr.mxu0 0.0
        %2641 = vmatpush1.msra.mxu0 0.0
        %2642 = vmatprep.subr.mxu0 0.0
        %2643 = vmatpush1.msra.mxu0 0.0
        %2644 = vmatprep.subr.mxu0 0.0
        %2645 = vmatpush1.msra.mxu0 0.0
        %2646 = vmatprep.subr.mxu0 0.0
        %2647 = vmatpush1.msra.mxu0 0.0
        %2648 = vmatprep.subr.mxu0 0.0
        %2649 = vmatpush1.msra.mxu0 0.0
        %2650 = vmatprep.subr.mxu0 0.0
        %2651 = vmatpush1.msra.mxu0 0.0
        %2652 = vmatprep.subr.mxu0 0.0
        %2653 = vmatpush1.msra.mxu0 0.0
        %2654 = vmatprep.subr.mxu0 0.0
        %2655 = vmatpush1.msra.mxu0 0.0
        %2656 = vmatprep.subr.mxu0 0.0
        %2657 = vmatpush1.msra.mxu0 0.0
        %2658 = vmatprep.subr.mxu0 0.0
        %2659 = vmatpush1.msra.mxu0 0.0
        %2660 = vmatprep.subr.mxu0 0.0
        %2661 = vmatpush1.msra.mxu0 0.0
        %2662 = vmatprep.subr.mxu0 0.0
        %2663 = vmatpush1.msra.mxu0 0.0
        %2664 = vmatprep.subr.mxu0 0.0
        %2665 = vmatpush1.msra.mxu0 0.0
        %2666 = vmatprep.subr.mxu0 0.0
        %2667 = vmatpush1.msra.mxu0 0.0
        %2668 = vmatprep.subr.mxu0 0.0
        %2669 = vmatpush1.msra.mxu0 0.0
        %2670 = vmatprep.subr.mxu0 0.0
        %2671 = vmatpush1.msra.mxu0 0.0
        %2672 = vmatprep.subr.mxu0 0.0
        %2673 = vmatpush1.msra.mxu0 0.0
        %2674 = vmatprep.subr.mxu0 0.0
        %2675 = vmatpush1.msra.mxu0 0.0
        %2676 = vmatprep.subr.mxu0 0.0
        %2677 = vmatpush1.msra.mxu0 0.0
        %2678 = vmatprep.subr.mxu0 0.0
        %2679 = vmatpush1.msra.mxu0 0.0
        %2680 = vmatprep.subr.mxu0 0.0
        %2681 = vmatpush1.msra.mxu0 0.0
        %2682 = vmatprep.subr.mxu0 0.0
        %2683 = vmatpush1.msra.mxu0 0.0
        %2684 = vmatprep.subr.mxu0 0.0
        %2685 = vmatpush1.msra.mxu0 0.0
        %2686 = vmatprep.subr.mxu0 0.0
        %2687 = vmatpush1.msra.mxu0 0.0
        %2688 = vmatprep.subr.mxu0 0.0
        %2689 = vmatpush1.msra.mxu0 0.0
        %2690 = vmatprep.subr.mxu0 0.0
        %2691 = vmatpush1.msra.mxu0 0.0
        %2692 = vmatprep.subr.mxu0 0.0
        %2693 = vmatpush1.msra.mxu0 0.0
        %2694 = vmatprep.subr.mxu0 0.0
        %2695 = vmatpush1.msra.mxu0 0.0
        %2696 = vmatprep.subr.mxu0 0.0
        %2697 = vmatpush1.msra.mxu0 0.0
        %2698 = vmatprep.subr.mxu0 0.0
        %2699 = vmatpush1.msra.mxu0 0.0
        %2700 = vmatprep.mubr.f32.mxu0 0.0
        %v2701 = vand.u32 %v2372, 4294901760
        %v2702 = vsub.f32 %v2372, %v2701
        %v2703 = vand.u32 %v2702, 4294901760
        %2704 = vmatmul.mubr.f32.gmra.mrb[0].mxu0 %v2703
        %v2705 = vpop.f32.mrb[0].mxu0
        %v2706 = vadd.f32 %v2624, %v2705
        %v2707 = vpop.f32.mrb[0].mxu0
        %2708 = vmatprep.mubr.f32.mxu0 0.0
        %v2709 = vand.u32 %v2375, 4294901760
        %v2710 = vsub.f32 %v2375, %v2709
        %v2711 = vand.u32 %v2710, 4294901760
        %2712 = vmatmul.mubr.f32.gmra.mrb[0].mxu0 %v2711
        %v2713 = vpop.f32.mrb[0].mxu0
        %v2714 = vadd.f32 %v2631, %v2713
        %v2715 = vpop.f32.mrb[0].mxu0
        %2716 = vdwg.mxu0
        %2717 = vmatprep.subr.mxu0 0.0
        %v2718 = vand.u32 %v336, 4294901760
        %v2719 = vsub.f32 %v336, %v2718
        %v2720 = vand.u32 %v2719, 4294901760
        %2721 = vmatpush1.msra.mxu0 %v2720
        %2722 = vmatprep.subr.mxu0 0.0
        %v2723 = vand.u32 %v337, 4294901760
        %v2724 = vsub.f32 %v337, %v2723
        %v2725 = vand.u32 %v2724, 4294901760
        %2726 = vmatpush1.msra.mxu0 %v2725
        %2727 = vmatprep.subr.mxu0 0.0
        %2728 = vmatpush1.msra.mxu0 0.0
        %2729 = vmatprep.subr.mxu0 0.0
        %2730 = vmatpush1.msra.mxu0 0.0
        %2731 = vmatprep.subr.mxu0 0.0
        %2732 = vmatpush1.msra.mxu0 0.0
        %2733 = vmatprep.subr.mxu0 0.0
        %2734 = vmatpush1.msra.mxu0 0.0
        %2735 = vmatprep.subr.mxu0 0.0
        %2736 = vmatpush1.msra.mxu0 0.0
        %2737 = vmatprep.subr.mxu0 0.0
        %2738 = vmatpush1.msra.mxu0 0.0
        %2739 = vmatprep.subr.mxu0 0.0
        %2740 = vmatpush1.msra.mxu0 0.0
        %2741 = vmatprep.subr.mxu0 0.0
        %2742 = vmatpush1.msra.mxu0 0.0
        %2743 = vmatprep.subr.mxu0 0.0
        %2744 = vmatpush1.msra.mxu0 0.0
        %2745 = vmatprep.subr.mxu0 0.0
        %2746 = vmatpush1.msra.mxu0 0.0
        %2747 = vmatprep.subr.mxu0 0.0
        %2748 = vmatpush1.msra.mxu0 0.0
        %2749 = vmatprep.subr.mxu0 0.0
        %2750 = vmatpush1.msra.mxu0 0.0
        %2751 = vmatprep.subr.mxu0 0.0
        %2752 = vmatpush1.msra.mxu0 0.0
        %2753 = vmatprep.subr.mxu0 0.0
        %2754 = vmatpush1.msra.mxu0 0.0
        %2755 = vmatprep.subr.mxu0 0.0
        %2756 = vmatpush1.msra.mxu0 0.0
        %2757 = vmatprep.subr.mxu0 0.0
        %2758 = vmatpush1.msra.mxu0 0.0
        %2759 = vmatprep.subr.mxu0 0.0
        %2760 = vmatpush1.msra.mxu0 0.0
        %2761 = vmatprep.subr.mxu0 0.0
        %2762 = vmatpush1.msra.mxu0 0.0
        %2763 = vmatprep.subr.mxu0 0.0
        %2764 = vmatpush1.msra.mxu0 0.0
        %2765 = vmatprep.subr.mxu0 0.0
        %2766 = vmatpush1.msra.mxu0 0.0
        %2767 = vmatprep.subr.mxu0 0.0
        %2768 = vmatpush1.msra.mxu0 0.0
        %2769 = vmatprep.subr.mxu0 0.0
        %2770 = vmatpush1.msra.mxu0 0.0
        %2771 = vmatprep.subr.mxu0 0.0
        %2772 = vmatpush1.msra.mxu0 0.0
        %2773 = vmatprep.subr.mxu0 0.0
        %2774 = vmatpush1.msra.mxu0 0.0
        %2775 = vmatprep.subr.mxu0 0.0
        %2776 = vmatpush1.msra.mxu0 0.0
        %2777 = vmatprep.subr.mxu0 0.0
        %2778 = vmatpush1.msra.mxu0 0.0
        %2779 = vmatprep.subr.mxu0 0.0
        %2780 = vmatpush1.msra.mxu0 0.0
        %2781 = vmatprep.subr.mxu0 0.0
        %2782 = vmatpush1.msra.mxu0 0.0
        %2783 = vmatprep.subr.mxu0 0.0
        %2784 = vmatpush1.msra.mxu0 0.0
        %2785 = vmatprep.subr.mxu0 0.0
        %2786 = vmatpush1.msra.mxu0 0.0
        %2787 = vmatprep.mubr.f32.mxu0 0.0
        %v2788 = vand.u32 %v2372, 4294901760
        %2789 = vmatmul.mubr.f32.gmra.mrb[0].mxu0 %v2788
        %v2790 = vpop.f32.mrb[0].mxu0
        %v2791 = vadd.f32 %v2706, %v2790
        %v2792 = vpop.f32.mrb[0].mxu0
        %2793 = vmatprep.mubr.f32.mxu0 0.0
        %v2794 = vand.u32 %v2375, 4294901760
        %2795 = vmatmul.mubr.f32.gmra.mrb[0].mxu0 %v2794
        %v2796 = vpop.f32.mrb[0].mxu0
        %v2797 = vadd.f32 %v2714, %v2796
        %v2798 = vpop.f32.mrb[0].mxu0
        %2799 = vdwg.mxu0
        %2800 = vmatprep.subr.mxu0 0.0
        %v2801 = vand.u32 %v336, 4294901760
        %2802 = vmatpush1.msra.mxu0 %v2801
        %2803 = vmatprep.subr.mxu0 0.0
        %v2804 = vand.u32 %v337, 4294901760
        %2805 = vmatpush1.msra.mxu0 %v2804
        %2806 = vmatprep.subr.mxu0 0.0
        %2807 = vmatpush1.msra.mxu0 0.0
        %2808 = vmatprep.subr.mxu0 0.0
        %2809 = vmatpush1.msra.mxu0 0.0
        %2810 = vmatprep.subr.mxu0 0.0
        %2811 = vmatpush1.msra.mxu0 0.0
        %2812 = vmatprep.subr.mxu0 0.0
        %2813 = vmatpush1.msra.mxu0 0.0
        %2814 = vmatprep.subr.mxu0 0.0
        %2815 = vmatpush1.msra.mxu0 0.0
        %2816 = vmatprep.subr.mxu0 0.0
        %2817 = vmatpush1.msra.mxu0 0.0
        %2818 = vmatprep.subr.mxu0 0.0
        %2819 = vmatpush1.msra.mxu0 0.0
        %2820 = vmatprep.subr.mxu0 0.0
        %2821 = vmatpush1.msra.mxu0 0.0
        %2822 = vmatprep.subr.mxu0 0.0
        %2823 = vmatpush1.msra.mxu0 0.0
        %2824 = vmatprep.subr.mxu0 0.0
        %2825 = vmatpush1.msra.mxu0 0.0
        %2826 = vmatprep.subr.mxu0 0.0
        %2827 = vmatpush1.msra.mxu0 0.0
        %2828 = vmatprep.subr.mxu0 0.0
        %2829 = vmatpush1.msra.mxu0 0.0
        %2830 = vmatprep.subr.mxu0 0.0
        %2831 = vmatpush1.msra.mxu0 0.0
        %2832 = vmatprep.subr.mxu0 0.0
        %2833 = vmatpush1.msra.mxu0 0.0
        %2834 = vmatprep.subr.mxu0 0.0
        %2835 = vmatpush1.msra.mxu0 0.0
        %2836 = vmatprep.subr.mxu0 0.0
        %2837 = vmatpush1.msra.mxu0 0.0
        %2838 = vmatprep.subr.mxu0 0.0
        %2839 = vmatpush1.msra.mxu0 0.0
        %2840 = vmatprep.subr.mxu0 0.0
        %2841 = vmatpush1.msra.mxu0 0.0
        %2842 = vmatprep.subr.mxu0 0.0
        %2843 = vmatpush1.msra.mxu0 0.0
        %2844 = vmatprep.subr.mxu0 0.0
        %2845 = vmatpush1.msra.mxu0 0.0
        %2846 = vmatprep.subr.mxu0 0.0
        %2847 = vmatpush1.msra.mxu0 0.0
        %2848 = vmatprep.subr.mxu0 0.0
        %2849 = vmatpush1.msra.mxu0 0.0
        %2850 = vmatprep.subr.mxu0 0.0
        %2851 = vmatpush1.msra.mxu0 0.0
        %2852 = vmatprep.subr.mxu0 0.0
        %2853 = vmatpush1.msra.mxu0 0.0
        %2854 = vmatprep.subr.mxu0 0.0
        %2855 = vmatpush1.msra.mxu0 0.0
        %2856 = vmatprep.subr.mxu0 0.0
        %2857 = vmatpush1.msra.mxu0 0.0
        %2858 = vmatprep.subr.mxu0 0.0
        %2859 = vmatpush1.msra.mxu0 0.0
        %2860 = vmatprep.subr.mxu0 0.0
        %2861 = vmatpush1.msra.mxu0 0.0
        %2862 = vmatprep.subr.mxu0 0.0
        %2863 = vmatpush1.msra.mxu0 0.0
        %2864 = vmatprep.subr.mxu0 0.0
        %2865 = vmatpush1.msra.mxu0 0.0
        %2866 = vmatprep.mubr.f32.mxu0 0.0
        %v2867 = vand.u32 %v2372, 4294901760
        %2868 = vmatmul.mubr.f32.gmra.mrb[0].mxu0 %v2867
        %v2869 = vpop.f32.mrb[0].mxu0
        %v2870 = vadd.f32 %v2791, %v2869
        %v2871 = vpop.f32.mrb[0].mxu0
        %2872 = vmatprep.mubr.f32.mxu0 0.0
        %v2873 = vand.u32 %v2375, 4294901760
        %2874 = vmatmul.mubr.f32.gmra.mrb[0].mxu0 %v2873
        %v2875 = vpop.f32.mrb[0].mxu0
        %v2876 = vadd.f32 %v2797, %v2875
        %v2877 = vpop.f32.mrb[0].mxu0
        %2878 = vdwg.mxu0
        %v2880 = vsel %vm340, %v1348, 0
        %v2883 = vsel %vm340, %v1354, 0
        %2885 = vmatprep.subr.mxu0 0.0
        %v2886 = vand.u32 %v336, 4294901760
        %2887 = vmatpush1.msra.mxu0 %v2886
        %2888 = vmatprep.subr.mxu0 0.0
        %v2889 = vand.u32 %v337, 4294901760
        %2890 = vmatpush1.msra.mxu0 %v2889
        %2891 = vmatprep.subr.mxu0 0.0
        %2892 = vmatpush1.msra.mxu0 0.0
        %2893 = vmatprep.subr.mxu0 0.0
        %2894 = vmatpush1.msra.mxu0 0.0
        %2895 = vmatprep.subr.mxu0 0.0
        %2896 = vmatpush1.msra.mxu0 0.0
        %2897 = vmatprep.subr.mxu0 0.0
        %2898 = vmatpush1.msra.mxu0 0.0
        %2899 = vmatprep.subr.mxu0 0.0
        %2900 = vmatpush1.msra.mxu0 0.0
        %2901 = vmatprep.subr.mxu0 0.0
        %2902 = vmatpush1.msra.mxu0 0.0
        %2903 = vmatprep.subr.mxu0 0.0
        %2904 = vmatpush1.msra.mxu0 0.0
        %2905 = vmatprep.subr.mxu0 0.0
        %2906 = vmatpush1.msra.mxu0 0.0
        %2907 = vmatprep.subr.mxu0 0.0
        %2908 = vmatpush1.msra.mxu0 0.0
        %2909 = vmatprep.subr.mxu0 0.0
        %2910 = vmatpush1.msra.mxu0 0.0
        %2911 = vmatprep.subr.mxu0 0.0
        %2912 = vmatpush1.msra.mxu0 0.0
        %2913 = vmatprep.subr.mxu0 0.0
        %2914 = vmatpush1.msra.mxu0 0.0
        %2915 = vmatprep.subr.mxu0 0.0
        %2916 = vmatpush1.msra.mxu0 0.0
        %2917 = vmatprep.subr.mxu0 0.0
        %2918 = vmatpush1.msra.mxu0 0.0
        %2919 = vmatprep.subr.mxu0 0.0
        %2920 = vmatpush1.msra.mxu0 0.0
        %2921 = vmatprep.subr.mxu0 0.0
        %2922 = vmatpush1.msra.mxu0 0.0
        %2923 = vmatprep.subr.mxu0 0.0
        %2924 = vmatpush1.msra.mxu0 0.0
        %2925 = vmatprep.subr.mxu0 0.0
        %2926 = vmatpush1.msra.mxu0 0.0
        %2927 = vmatprep.subr.mxu0 0.0
        %2928 = vmatpush1.msra.mxu0 0.0
        %2929 = vmatprep.subr.mxu0 0.0
        %2930 = vmatpush1.msra.mxu0 0.0
        %2931 = vmatprep.subr.mxu0 0.0
        %2932 = vmatpush1.msra.mxu0 0.0
        %2933 = vmatprep.subr.mxu0 0.0
        %2934 = vmatpush1.msra.mxu0 0.0
        %2935 = vmatprep.subr.mxu0 0.0
        %2936 = vmatpush1.msra.mxu0 0.0
        %2937 = vmatprep.subr.mxu0 0.0
        %2938 = vmatpush1.msra.mxu0 0.0
        %2939 = vmatprep.subr.mxu0 0.0
        %2940 = vmatpush1.msra.mxu0 0.0
        %2941 = vmatprep.subr.mxu0 0.0
        %2942 = vmatpush1.msra.mxu0 0.0
        %2943 = vmatprep.subr.mxu0 0.0
        %2944 = vmatpush1.msra.mxu0 0.0
        %2945 = vmatprep.subr.mxu0 0.0
        %2946 = vmatpush1.msra.mxu0 0.0
        %2947 = vmatprep.subr.mxu0 0.0
        %2948 = vmatpush1.msra.mxu0 0.0
        %2949 = vmatprep.subr.mxu0 0.0
        %2950 = vmatpush1.msra.mxu0 0.0
        %2951 = vmatprep.mubr.f32.mxu0 0.0
        %v2952 = vand.u32 %v2880, 4294901760
        %v2953 = vsub.f32 %v2880, %v2952
        %v2954 = vand.u32 %v2953, 4294901760
        %v2955 = vsub.f32 %v2953, %v2954
        %v2956 = vand.u32 %v2955, 4294901760
        %2957 = vmatmul.mubr.f32.gmra.mrb[0].mxu0 %v2956
        %v2958 = vpop.f32.mrb[0].mxu0
        %v2959 = vadd.f32 0.66, %v2958
        %v2960 = vpop.f32.mrb[0].mxu0
        %2961 = vmatprep.mubr.f32.mxu0 0.0
        %v2962 = vand.u32 %v2883, 4294901760
        %v2963 = vsub.f32 %v2883, %v2962
        %v2964 = vand.u32 %v2963, 4294901760
        %v2965 = vsub.f32 %v2963, %v2964
        %v2966 = vand.u32 %v2965, 4294901760
        %2967 = vmatmul.mubr.f32.gmra.mrb[0].mxu0 %v2966
        %v2968 = vpop.f32.mrb[0].mxu0
        %v2969 = vadd.f32 0.66, %v2968
        %v2970 = vpop.f32.mrb[0].mxu0
        %2971 = vdwg.mxu0
        %2972 = vmatprep.subr.mxu0 0.0
        %v2973 = vand.u32 %v336, 4294901760
        %v2974 = vsub.f32 %v336, %v2973
        %v2975 = vand.u32 %v2974, 4294901760
        %v2976 = vsub.f32 %v2974, %v2975
        %v2977 = vand.u32 %v2976, 4294901760
        %2978 = vmatpush1.msra.mxu0 %v2977
        %2979 = vmatprep.subr.mxu0 0.0
        %v2980 = vand.u32 %v337, 4294901760
        %v2981 = vsub.f32 %v337, %v2980
        %v2982 = vand.u32 %v2981, 4294901760
        %v2983 = vsub.f32 %v2981, %v2982
        %v2984 = vand.u32 %v2983, 4294901760
        %2985 = vmatpush1.msra.mxu0 %v2984
        %2986 = vmatprep.subr.mxu0 0.0
        %2987 = vmatpush1.msra.mxu0 0.0
        %2988 = vmatprep.subr.mxu0 0.0
        %2989 = vmatpush1.msra.mxu0 0.0
        %2990 = vmatprep.subr.mxu0 0.0
        %2991 = vmatpush1.msra.mxu0 0.0
        %2992 = vmatprep.subr.mxu0 0.0
        %2993 = vmatpush1.msra.mxu0 0.0
        %2994 = vmatprep.subr.mxu0 0.0
        %2995 = vmatpush1.msra.mxu0 0.0
        %2996 = vmatprep.subr.mxu0 0.0
        %2997 = vmatpush1.msra.mxu0 0.0
        %2998 = vmatprep.subr.mxu0 0.0
        %2999 = vmatpush1.msra.mxu0 0.0
        %3000 = vmatprep.subr.mxu0 0.0
        %3001 = vmatpush1.msra.mxu0 0.0
        %3002 = vmatprep.subr.mxu0 0.0
        %3003 = vmatpush1.msra.mxu0 0.0
        %3004 = vmatprep.subr.mxu0 0.0
        %3005 = vmatpush1.msra.mxu0 0.0
        %3006 = vmatprep.subr.mxu0 0.0
        %3007 = vmatpush1.msra.mxu0 0.0
        %3008 = vmatprep.subr.mxu0 0.0
        %3009 = vmatpush1.msra.mxu0 0.0
        %3010 = vmatprep.subr.mxu0 0.0
        %3011 = vmatpush1.msra.mxu0 0.0
        %3012 = vmatprep.subr.mxu0 0.0
        %3013 = vmatpush1.msra.mxu0 0.0
        %3014 = vmatprep.subr.mxu0 0.0
        %3015 = vmatpush1.msra.mxu0 0.0
        %3016 = vmatprep.subr.mxu0 0.0
        %3017 = vmatpush1.msra.mxu0 0.0
        %3018 = vmatprep.subr.mxu0 0.0
        %3019 = vmatpush1.msra.mxu0 0.0
        %3020 = vmatprep.subr.mxu0 0.0
        %3021 = vmatpush1.msra.mxu0 0.0
        %3022 = vmatprep.subr.mxu0 0.0
        %3023 = vmatpush1.msra.mxu0 0.0
        %3024 = vmatprep.subr.mxu0 0.0
        %3025 = vmatpush1.msra.mxu0 0.0
        %3026 = vmatprep.subr.mxu0 0.0
        %3027 = vmatpush1.msra.mxu0 0.0
        %3028 = vmatprep.subr.mxu0 0.0
        %3029 = vmatpush1.msra.mxu0 0.0
        %3030 = vmatprep.subr.mxu0 0.0
        %3031 = vmatpush1.msra.mxu0 0.0
        %3032 = vmatprep.subr.mxu0 0.0
        %3033 = vmatpush1.msra.mxu0 0.0
        %3034 = vmatprep.subr.mxu0 0.0
        %3035 = vmatpush1.msra.mxu0 0.0
        %3036 = vmatprep.subr.mxu0 0.0
        %3037 = vmatpush1.msra.mxu0 0.0
        %3038 = vmatprep.subr.mxu0 0.0
        %3039 = vmatpush1.msra.mxu0 0.0
        %3040 = vmatprep.subr.mxu0 0.0
        %3041 = vmatpush1.msra.mxu0 0.0
        %3042 = vmatprep.subr.mxu0 0.0
        %3043 = vmatpush1.msra.mxu0 0.0
        %3044 = vmatprep.subr.mxu0 0.0
        %3045 = vmatpush1.msra.mxu0 0.0
        %3046 = vmatprep.mubr.f32.mxu0 0.0
        %v3047 = vand.u32 %v2880, 4294901760
        %3048 = vmatmul.mubr.f32.gmra.mrb[0].mxu0 %v3047
        %v3049 = vpop.f32.mrb[0].mxu0
        %v3050 = vadd.f32 %v2959, %v3049
        %v3051 = vpop.f32.mrb[0].mxu0
        %3052 = vmatprep.mubr.f32.mxu0 0.0
        %v3053 = vand.u32 %v2883, 4294901760
        %3054 = vmatmul.mubr.f32.gmra.mrb[0].mxu0 %v3053
        %v3055 = vpop.f32.mrb[0].mxu0
        %v3056 = vadd.f32 %v2969, %v3055
        %v3057 = vpop.f32.mrb[0].mxu0
        %3058 = vdwg.mxu0
        %3059 = vmatprep.subr.mxu0 0.0
        %v3060 = vand.u32 %v336, 4294901760
        %v3061 = vsub.f32 %v336, %v3060
        %3062 = vmatpush1.msra.mxu0 %v3061
        %3063 = vmatprep.subr.mxu0 0.0
        %v3064 = vand.u32 %v337, 4294901760
        %v3065 = vsub.f32 %v337, %v3064
        %3066 = vmatpush1.msra.mxu0 %v3065
        %3067 = vmatprep.subr.mxu0 0.0
        %3068 = vmatpush1.msra.mxu0 0.0
        %3069 = vmatprep.subr.mxu0 0.0
        %3070 = vmatpush1.msra.mxu0 0.0
        %3071 = vmatprep.subr.mxu0 0.0
        %3072 = vmatpush1.msra.mxu0 0.0
        %3073 = vmatprep.subr.mxu0 0.0
        %3074 = vmatpush1.msra.mxu0 0.0
        %3075 = vmatprep.subr.mxu0 0.0
        %3076 = vmatpush1.msra.mxu0 0.0
        %3077 = vmatprep.subr.mxu0 0.0
        %3078 = vmatpush1.msra.mxu0 0.0
        %3079 = vmatprep.subr.mxu0 0.0
        %3080 = vmatpush1.msra.mxu0 0.0
        %3081 = vmatprep.subr.mxu0 0.0
        %3082 = vmatpush1.msra.mxu0 0.0
        %3083 = vmatprep.subr.mxu0 0.0
        %3084 = vmatpush1.msra.mxu0 0.0
        %3085 = vmatprep.subr.mxu0 0.0
        %3086 = vmatpush1.msra.mxu0 0.0
        %3087 = vmatprep.subr.mxu0 0.0
        %3088 = vmatpush1.msra.mxu0 0.0
        %3089 = vmatprep.subr.mxu0 0.0
        %3090 = vmatpush1.msra.mxu0 0.0
        %3091 = vmatprep.subr.mxu0 0.0
        %3092 = vmatpush1.msra.mxu0 0.0
        %3093 = vmatprep.subr.mxu0 0.0
        %3094 = vmatpush1.msra.mxu0 0.0
        %3095 = vmatprep.subr.mxu0 0.0
        %3096 = vmatpush1.msra.mxu0 0.0
        %3097 = vmatprep.subr.mxu0 0.0
        %3098 = vmatpush1.msra.mxu0 0.0
        %3099 = vmatprep.subr.mxu0 0.0
        %3100 = vmatpush1.msra.mxu0 0.0
        %3101 = vmatprep.subr.mxu0 0.0
        %3102 = vmatpush1.msra.mxu0 0.0
        %3103 = vmatprep.subr.mxu0 0.0
        %3104 = vmatpush1.msra.mxu0 0.0
        %3105 = vmatprep.subr.mxu0 0.0
        %3106 = vmatpush1.msra.mxu0 0.0
        %3107 = vmatprep.subr.mxu0 0.0
        %3108 = vmatpush1.msra.mxu0 0.0
        %3109 = vmatprep.subr.mxu0 0.0
        %3110 = vmatpush1.msra.mxu0 0.0
        %3111 = vmatprep.subr.mxu0 0.0
        %3112 = vmatpush1.msra.mxu0 0.0
        %3113 = vmatprep.subr.mxu0 0.0
        %3114 = vmatpush1.msra.mxu0 0.0
        %3115 = vmatprep.subr.mxu0 0.0
        %3116 = vmatpush1.msra.mxu0 0.0
        %3117 = vmatprep.subr.mxu0 0.0
        %3118 = vmatpush1.msra.mxu0 0.0
        %3119 = vmatprep.subr.mxu0 0.0
        %3120 = vmatpush1.msra.mxu0 0.0
        %3121 = vmatprep.subr.mxu0 0.0
        %3122 = vmatpush1.msra.mxu0 0.0
        %3123 = vmatprep.subr.mxu0 0.0
        %3124 = vmatpush1.msra.mxu0 0.0
        %3125 = vmatprep.subr.mxu0 0.0
        %3126 = vmatpush1.msra.mxu0 0.0
        %3127 = vmatprep.mubr.f32.mxu0 0.0
        %v3128 = vand.u32 %v2880, 4294901760
        %v3129 = vsub.f32 %v2880, %v3128
        %3130 = vmatmul.mubr.f32.gmra.mrb[0].mxu0 %v3129
        %v3131 = vpop.f32.mrb[0].mxu0
        %v3132 = vadd.f32 %v3050, %v3131
        %v3133 = vpop.f32.mrb[0].mxu0
        %3134 = vmatprep.mubr.f32.mxu0 0.0
        %v3135 = vand.u32 %v2883, 4294901760
        %v3136 = vsub.f32 %v2883, %v3135
        %3137 = vmatmul.mubr.f32.gmra.mrb[0].mxu0 %v3136
        %v3138 = vpop.f32.mrb[0].mxu0
        %v3139 = vadd.f32 %v3056, %v3138
        %v3140 = vpop.f32.mrb[0].mxu0
        %3141 = vdwg.mxu0
        %3142 = vmatprep.subr.mxu0 0.0
        %v3143 = vand.u32 %v336, 4294901760
        %3144 = vmatpush1.msra.mxu0 %v3143
        %3145 = vmatprep.subr.mxu0 0.0
        %v3146 = vand.u32 %v337, 4294901760
        %3147 = vmatpush1.msra.mxu0 %v3146
        %3148 = vmatprep.subr.mxu0 0.0
        %3149 = vmatpush1.msra.mxu0 0.0
        %3150 = vmatprep.subr.mxu0 0.0
        %3151 = vmatpush1.msra.mxu0 0.0
        %3152 = vmatprep.subr.mxu0 0.0
        %3153 = vmatpush1.msra.mxu0 0.0
        %3154 = vmatprep.subr.mxu0 0.0
        %3155 = vmatpush1.msra.mxu0 0.0
        %3156 = vmatprep.subr.mxu0 0.0
        %3157 = vmatpush1.msra.mxu0 0.0
        %3158 = vmatprep.subr.mxu0 0.0
        %3159 = vmatpush1.msra.mxu0 0.0
        %3160 = vmatprep.subr.mxu0 0.0
        %3161 = vmatpush1.msra.mxu0 0.0
        %3162 = vmatprep.subr.mxu0 0.0
        %3163 = vmatpush1.msra.mxu0 0.0
        %3164 = vmatprep.subr.mxu0 0.0
        %3165 = vmatpush1.msra.mxu0 0.0
        %3166 = vmatprep.subr.mxu0 0.0
        %3167 = vmatpush1.msra.mxu0 0.0
        %3168 = vmatprep.subr.mxu0 0.0
        %3169 = vmatpush1.msra.mxu0 0.0
        %3170 = vmatprep.subr.mxu0 0.0
        %3171 = vmatpush1.msra.mxu0 0.0
        %3172 = vmatprep.subr.mxu0 0.0
        %3173 = vmatpush1.msra.mxu0 0.0
        %3174 = vmatprep.subr.mxu0 0.0
        %3175 = vmatpush1.msra.mxu0 0.0
        %3176 = vmatprep.subr.mxu0 0.0
        %3177 = vmatpush1.msra.mxu0 0.0
        %3178 = vmatprep.subr.mxu0 0.0
        %3179 = vmatpush1.msra.mxu0 0.0
        %3180 = vmatprep.subr.mxu0 0.0
        %3181 = vmatpush1.msra.mxu0 0.0
        %3182 = vmatprep.subr.mxu0 0.0
        %3183 = vmatpush1.msra.mxu0 0.0
        %3184 = vmatprep.subr.mxu0 0.0
        %3185 = vmatpush1.msra.mxu0 0.0
        %3186 = vmatprep.subr.mxu0 0.0
        %3187 = vmatpush1.msra.mxu0 0.0
        %3188 = vmatprep.subr.mxu0 0.0
        %3189 = vmatpush1.msra.mxu0 0.0
        %3190 = vmatprep.subr.mxu0 0.0
        %3191 = vmatpush1.msra.mxu0 0.0
        %3192 = vmatprep.subr.mxu0 0.0
        %3193 = vmatpush1.msra.mxu0 0.0
        %3194 = vmatprep.subr.mxu0 0.0
        %3195 = vmatpush1.msra.mxu0 0.0
        %3196 = vmatprep.subr.mxu0 0.0
        %3197 = vmatpush1.msra.mxu0 0.0
        %3198 = vmatprep.subr.mxu0 0.0
        %3199 = vmatpush1.msra.mxu0 0.0
        %3200 = vmatprep.subr.mxu0 0.0
        %3201 = vmatpush1.msra.mxu0 0.0
        %3202 = vmatprep.subr.mxu0 0.0
        %3203 = vmatpush1.msra.mxu0 0.0
        %3204 = vmatprep.subr.mxu0 0.0
        %3205 = vmatpush1.msra.mxu0 0.0
        %3206 = vmatprep.subr.mxu0 0.0
        %3207 = vmatpush1.msra.mxu0 0.0
        %3208 = vmatprep.mubr.f32.mxu0 0.0
        %v3209 = vand.u32 %v2880, 4294901760
        %v3210 = vsub.f32 %v2880, %v3209
        %v3211 = vand.u32 %v3210, 4294901760
        %3212 = vmatmul.mubr.f32.gmra.mrb[0].mxu0 %v3211
        %v3213 = vpop.f32.mrb[0].mxu0
        %v3214 = vadd.f32 %v3132, %v3213
        %v3215 = vpop.f32.mrb[0].mxu0
        %3216 = vmatprep.mubr.f32.mxu0 0.0
        %v3217 = vand.u32 %v2883, 4294901760
        %v3218 = vsub.f32 %v2883, %v3217
        %v3219 = vand.u32 %v3218, 4294901760
        %3220 = vmatmul.mubr.f32.gmra.mrb[0].mxu0 %v3219
        %v3221 = vpop.f32.mrb[0].mxu0
        %v3222 = vadd.f32 %v3139, %v3221
        %v3223 = vpop.f32.mrb[0].mxu0
        %3224 = vdwg.mxu0
        %3225 = vmatprep.subr.mxu0 0.0
        %v3226 = vand.u32 %v336, 4294901760
        %v3227 = vsub.f32 %v336, %v3226
        %v3228 = vand.u32 %v3227, 4294901760
        %3229 = vmatpush1.msra.mxu0 %v3228
        %3230 = vmatprep.subr.mxu0 0.0
        %v3231 = vand.u32 %v337, 4294901760
        %v3232 = vsub.f32 %v337, %v3231
        %v3233 = vand.u32 %v3232, 4294901760
        %3234 = vmatpush1.msra.mxu0 %v3233
        %3235 = vmatprep.subr.mxu0 0.0
        %3236 = vmatpush1.msra.mxu0 0.0
        %3237 = vmatprep.subr.mxu0 0.0
        %3238 = vmatpush1.msra.mxu0 0.0
        %3239 = vmatprep.subr.mxu0 0.0
        %3240 = vmatpush1.msra.mxu0 0.0
        %3241 = vmatprep.subr.mxu0 0.0
        %3242 = vmatpush1.msra.mxu0 0.0
        %3243 = vmatprep.subr.mxu0 0.0
        %3244 = vmatpush1.msra.mxu0 0.0
        %3245 = vmatprep.subr.mxu0 0.0
        %3246 = vmatpush1.msra.mxu0 0.0
        %3247 = vmatprep.subr.mxu0 0.0
        %3248 = vmatpush1.msra.mxu0 0.0
        %3249 = vmatprep.subr.mxu0 0.0
        %3250 = vmatpush1.msra.mxu0 0.0
        %3251 = vmatprep.subr.mxu0 0.0
        %3252 = vmatpush1.msra.mxu0 0.0
        %3253 = vmatprep.subr.mxu0 0.0
        %3254 = vmatpush1.msra.mxu0 0.0
        %3255 = vmatprep.subr.mxu0 0.0
        %3256 = vmatpush1.msra.mxu0 0.0
        %3257 = vmatprep.subr.mxu0 0.0
        %3258 = vmatpush1.msra.mxu0 0.0
        %3259 = vmatprep.subr.mxu0 0.0
        %3260 = vmatpush1.msra.mxu0 0.0
        %3261 = vmatprep.subr.mxu0 0.0
        %3262 = vmatpush1.msra.mxu0 0.0
        %3263 = vmatprep.subr.mxu0 0.0
        %3264 = vmatpush1.msra.mxu0 0.0
        %3265 = vmatprep.subr.mxu0 0.0
        %3266 = vmatpush1.msra.mxu0 0.0
        %3267 = vmatprep.subr.mxu0 0.0
        %3268 = vmatpush1.msra.mxu0 0.0
        %3269 = vmatprep.subr.mxu0 0.0
        %3270 = vmatpush1.msra.mxu0 0.0
        %3271 = vmatprep.subr.mxu0 0.0
        %3272 = vmatpush1.msra.mxu0 0.0
        %3273 = vmatprep.subr.mxu0 0.0
        %3274 = vmatpush1.msra.mxu0 0.0
        %3275 = vmatprep.subr.mxu0 0.0
        %3276 = vmatpush1.msra.mxu0 0.0
        %3277 = vmatprep.subr.mxu0 0.0
        %3278 = vmatpush1.msra.mxu0 0.0
        %3279 = vmatprep.subr.mxu0 0.0
        %3280 = vmatpush1.msra.mxu0 0.0
        %3281 = vmatprep.subr.mxu0 0.0
        %3282 = vmatpush1.msra.mxu0 0.0
        %3283 = vmatprep.subr.mxu0 0.0
        %3284 = vmatpush1.msra.mxu0 0.0
        %3285 = vmatprep.subr.mxu0 0.0
        %3286 = vmatpush1.msra.mxu0 0.0
        %3287 = vmatprep.subr.mxu0 0.0
        %3288 = vmatpush1.msra.mxu0 0.0
        %3289 = vmatprep.subr.mxu0 0.0
        %3290 = vmatpush1.msra.mxu0 0.0
        %3291 = vmatprep.subr.mxu0 0.0
        %3292 = vmatpush1.msra.mxu0 0.0
        %3293 = vmatprep.subr.mxu0 0.0
        %3294 = vmatpush1.msra.mxu0 0.0
        %3295 = vmatprep.mubr.f32.mxu0 0.0
        %v3296 = vand.u32 %v2880, 4294901760
        %3297 = vmatmul.mubr.f32.gmra.mrb[0].mxu0 %v3296
        %v3298 = vpop.f32.mrb[0].mxu0
        %v3299 = vadd.f32 %v3214, %v3298
        %v3300 = vpop.f32.mrb[0].mxu0
        %3301 = vmatprep.mubr.f32.mxu0 0.0
        %v3302 = vand.u32 %v2883, 4294901760
        %3303 = vmatmul.mubr.f32.gmra.mrb[0].mxu0 %v3302
        %v3304 = vpop.f32.mrb[0].mxu0
        %v3305 = vadd.f32 %v3222, %v3304
        %v3306 = vpop.f32.mrb[0].mxu0
        %3307 = vdwg.mxu0
        %3308 = vmatprep.subr.mxu0 0.0
        %v3309 = vand.u32 %v336, 4294901760
        %3310 = vmatpush1.msra.mxu0 %v3309
        %3311 = vmatprep.subr.mxu0 0.0
        %v3312 = vand.u32 %v337, 4294901760
        %3313 = vmatpush1.msra.mxu0 %v3312
        %3314 = vmatprep.subr.mxu0 0.0
        %3315 = vmatpush1.msra.mxu0 0.0
        %3316 = vmatprep.subr.mxu0 0.0
        %3317 = vmatpush1.msra.mxu0 0.0
        %3318 = vmatprep.subr.mxu0 0.0
        %3319 = vmatpush1.msra.mxu0 0.0
        %3320 = vmatprep.subr.mxu0 0.0
        %3321 = vmatpush1.msra.mxu0 0.0
        %3322 = vmatprep.subr.mxu0 0.0
        %3323 = vmatpush1.msra.mxu0 0.0
        %3324 = vmatprep.subr.mxu0 0.0
        %3325 = vmatpush1.msra.mxu0 0.0
        %3326 = vmatprep.subr.mxu0 0.0
        %3327 = vmatpush1.msra.mxu0 0.0
        %3328 = vmatprep.subr.mxu0 0.0
        %3329 = vmatpush1.msra.mxu0 0.0
        %3330 = vmatprep.subr.mxu0 0.0
        %3331 = vmatpush1.msra.mxu0 0.0
        %3332 = vmatprep.subr.mxu0 0.0
        %3333 = vmatpush1.msra.mxu0 0.0
        %3334 = vmatprep.subr.mxu0 0.0
        %3335 = vmatpush1.msra.mxu0 0.0
        %3336 = vmatprep.subr.mxu0 0.0
        %3337 = vmatpush1.msra.mxu0 0.0
        %3338 = vmatprep.subr.mxu0 0.0
        %3339 = vmatpush1.msra.mxu0 0.0
        %3340 = vmatprep.subr.mxu0 0.0
        %3341 = vmatpush1.msra.mxu0 0.0
        %3342 = vmatprep.subr.mxu0 0.0
        %3343 = vmatpush1.msra.mxu0 0.0
        %3344 = vmatprep.subr.mxu0 0.0
        %3345 = vmatpush1.msra.mxu0 0.0
        %3346 = vmatprep.subr.mxu0 0.0
        %3347 = vmatpush1.msra.mxu0 0.0
        %3348 = vmatprep.subr.mxu0 0.0
        %3349 = vmatpush1.msra.mxu0 0.0
        %3350 = vmatprep.subr.mxu0 0.0
        %3351 = vmatpush1.msra.mxu0 0.0
        %3352 = vmatprep.subr.mxu0 0.0
        %3353 = vmatpush1.msra.mxu0 0.0
        %3354 = vmatprep.subr.mxu0 0.0
        %3355 = vmatpush1.msra.mxu0 0.0
        %3356 = vmatprep.subr.mxu0 0.0
        %3357 = vmatpush1.msra.mxu0 0.0
        %3358 = vmatprep.subr.mxu0 0.0
        %3359 = vmatpush1.msra.mxu0 0.0
        %3360 = vmatprep.subr.mxu0 0.0
        %3361 = vmatpush1.msra.mxu0 0.0
        %3362 = vmatprep.subr.mxu0 0.0
        %3363 = vmatpush1.msra.mxu0 0.0
        %3364 = vmatprep.subr.mxu0 0.0
        %3365 = vmatpush1.msra.mxu0 0.0
        %3366 = vmatprep.subr.mxu0 0.0
        %3367 = vmatpush1.msra.mxu0 0.0
        %3368 = vmatprep.subr.mxu0 0.0
        %3369 = vmatpush1.msra.mxu0 0.0
        %3370 = vmatprep.subr.mxu0 0.0
        %3371 = vmatpush1.msra.mxu0 0.0
        %3372 = vmatprep.subr.mxu0 0.0
        %3373 = vmatpush1.msra.mxu0 0.0
        %3374 = vmatprep.mubr.f32.mxu0 0.0
        %v3375 = vand.u32 %v2880, 4294901760
        %3376 = vmatmul.mubr.f32.gmra.mrb[0].mxu0 %v3375
        %v3377 = vpop.f32.mrb[0].mxu0
        %v3378 = vadd.f32 %v3299, %v3377
        %v3379 = vpop.f32.mrb[0].mxu0
        %3380 = vmatprep.mubr.f32.mxu0 0.0
        %v3381 = vand.u32 %v2883, 4294901760
        %3382 = vmatmul.mubr.f32.gmra.mrb[0].mxu0 %v3381
        %v3383 = vpop.f32.mrb[0].mxu0
        %v3384 = vadd.f32 %v3305, %v3383
        %v3385 = vpop.f32.mrb[0].mxu0
        %3386 = vdwg.mxu0
        %v3387 = vlog2.pop %v1860
        %v3388 = vmul.f32 %v3387, 0.6931472
        %v3389 = vlog2.pop %v1866
        %v3390 = vmul.f32 %v3389, 0.6931472
        %v3391 = vlog2.pop %v2362
        %v3392 = vmul.f32 %v3391, 0.6931472
        %v3393 = vlog2.pop %v2368
        %v3394 = vmul.f32 %v3393, 0.6931472
        %v3395 = vsub.f32 %v3388, %v3392
        %v3396 = vsub.f32 %v3390, %v3394
        %v3397 = vlog2.pop %v2870
        %v3398 = vmul.f32 %v3397, 0.6931472
        %v3399 = vlog2.pop %v2876
        %v3400 = vmul.f32 %v3399, 0.6931472
        %v3401 = vlog2.pop %v3378
        %v3402 = vmul.f32 %v3401, 0.6931472
        %v3403 = vlog2.pop %v3384
        %v3404 = vmul.f32 %v3403, 0.6931472
        %v3405 = vsub.f32 %v3398, %v3402
        %v3406 = vsub.f32 %v3400, %v3404
        %v3407 = vmul.f32 %v3395, %v3395
        %v3408 = vmul.f32 %v3396, %v3396
        %v3409 = vmul.f32 %v3405, %v3405
        %v3410 = vmul.f32 %v3406, %v3406
        %v3411 = vadd.f32 %v3407, %v3409
        %v3412 = vadd.f32 %v3408, %v3410
        %v3413 = vrsqrt.pop %v3411
        %v3414 = vmul.f32 %v3411, %v3413
        %vm3415 = vcmp.eq.f32.partialorder %v3411, inf
        %v3416 = vsel %vm3415, %v3411, %v3414
        %vm3417 = vcmp.eq.f32.partialorder %v3411, 0.0
        %v3418 = vand.u32 %v3411, 2147483648
        %v3419 = vsel %vm3417, %v3418, %v3416
        %v3420 = vrsqrt.pop %v3412
        %v3421 = vmul.f32 %v3412, %v3420
        %vm3422 = vcmp.eq.f32.partialorder %v3412, inf
        %v3423 = vsel %vm3422, %v3412, %v3421
        %vm3424 = vcmp.eq.f32.partialorder %v3412, 0.0
        %v3425 = vand.u32 %v3412, 2147483648
        %v3426 = vsel %vm3424, %v3425, %v3423
        %3427 = vst.msk [vmem:[%s327] sm:$0xff] %vm340, %v3419
        %3428 = vst.msk [vmem:[%s327 + $0x8] sm:$0xff] %vm340, %v3426
        %s3429 = sand.u32 %s164, 1
        %s3430 = scalar_lea.sflag [#allocation4], %s3429
        %s3431 = sand.u32 %s164, 1
        %s3432 = smul.addr %s3431, 16
        %s3433 = scalar_lea.vmem [#allocation11], %s3432
        // Predicated region
        $region65: #{tpu_custom_call.1} parent=43 // pred_check
          %p3434 = pneg %p174
        $region66: #{tpu_custom_call.1} parent=43 // pred_check_branch
          %3436 = sbr.rel (%p3434) target = $region68
        $region67: #{tpu_custom_call.1} parent=43 // pred_region
          %s3438 = ssub.s32 256, 256
          %3439 = vsyncadd %s3430, %s3438
          %s3440 = smul.addr %s25, 2
          %s3441 = smul.addr %s3440, 128
          %s3442 = scalar_lea.hbm %s6, %s3441
          %s3443 = sshll.u32 %s3433, 4
          %s3444 = int_to_ptr.vmem [resolvable:$true] %s3443
          %3449 = dma.vmem_to_hbm [thread:$0]  %s3444, 256, %s3442, %s3430, 128, 128, 8
        $region68: #{tpu_custom_call.1} parent=43 // pred_fallthru
          _
      $region44: #{tpu_custom_call.1} parent=5 // pred_fallthru
        _
      %p3450 = scmp.le.s32.totalorder 2, %s20
      // Predicated region
      $region69: #{tpu_custom_call.1} parent=5 // pred_check
        %p3451 = pneg %p3450
      $region70: #{tpu_custom_call.1} parent=5 // pred_check_branch
        %3453 = sbr.rel (%p3451) target = $region72
      $region71: #{tpu_custom_call.1} parent=5 // pred_region
        %s3454 = ssub.s32 %s20, 2
        // Predicated region
        $region73: #{tpu_custom_call.1} parent=71 // pred_check
          %p3455 = pneg %p180
        $region74: #{tpu_custom_call.1} parent=71 // pred_check_branch
          %3457 = sbr.rel (%p3455) target = $region76
        $region75: #{tpu_custom_call.1} parent=71 // pred_region
          %s3458 = sand.u32 %s165, 1
          %s3459 = scalar_lea.sflag [#allocation4], %s3458
          %s3460 = sand.u32 %s165, 1
          %s3461 = smul.addr %s3460, 16
          %s3462 = scalar_lea.vmem [#allocation11], %s3461
          %3463 = dma.done %s3459, 256
        $region76: #{tpu_custom_call.1} parent=71 // pred_fallthru
          _
      $region72: #{tpu_custom_call.1} parent=5 // pred_fallthru
        _
    $region6: #{tpu_custom_call.1} parent=1 // loop_footer
      %s24 = sadd.s32 1, %s20
    $region7: #{tpu_custom_call.1} parent=1 // loop_footer_branch
      %19 = sbr.rel target = $region3
    $region8: #{tpu_custom_call.1} parent=1 // loop_exit
      _
    %3464 = vsyncpa [#allocation3], 1
    %s3465 = scalar_lea.sflag [#allocation3], 1
    %3466 = vsyncpa %s3465, 1
    %3467 = vsyncpa [#allocation6], 1
    %3468 = vsyncpa [#allocation9], 1
    %3469 = vsyncpa [#allocation4], 1
    %s3470 = scalar_lea.sflag [#allocation4], 1
    %3471 = vsyncpa %s3470, 1

</llo_original>
